<compile_context>
chip_gen: v7x
topology: tpu7x:2x2x1
jax: 0.10.0
libtpu: 0.0.40
codegen_flags: <defaults>
</compile_context>

<pallas_src>
import functools
import math

import jax
import jax.numpy as jnp
from jax.experimental import pallas as pl
from jax.experimental.pallas import tpu as pltpu


# ----------------------------------------------------------------------------
# In-kernel helpers
# ----------------------------------------------------------------------------
def _layernorm(x, gamma, beta, eps=1e-5):
    mean = jnp.mean(x, axis=-1, keepdims=True)
    var = jnp.mean(jnp.square(x - mean), axis=-1, keepdims=True)
    return (x - mean) * jax.lax.rsqrt(var + eps) * gamma + beta


def _mha_core(x_res, h_q, h_kv, mask2,
              wq_ref, bq_ref, wk_ref, bk_ref, wv_ref, bv_ref, wo_ref, bo_ref):
    """Multi-head attention + output projection + residual, all in VMEM.

    x_res : (Tq, C) residual stream (f32)
    h_q   : (Tq, C) layer-normed query activations (f32)
    h_kv  : (Tk, C) key/value activations (f32)
    mask2 : (Mq, Tk) f32 mask broadcast against (Tq, Tk); 0 => masked.
    """
    num_heads = wq_ref.shape[0]
    d_k = wq_ref.shape[-1]
    scale = 1.0 / math.sqrt(d_k)

    hq_b = h_q.astype(jnp.bfloat16)
    hkv_b = h_kv.astype(jnp.bfloat16)

    acc = x_res + bo_ref[...]                       # residual + output bias
    for head in range(num_heads):                    # static unroll over heads
        q = jnp.dot(hq_b, wq_ref[head],
                    preferred_element_type=jnp.float32) + bq_ref[head]
        k = jnp.dot(hkv_b, wk_ref[head],
                    preferred_element_type=jnp.float32) + bk_ref[head]
        v = jnp.dot(hkv_b, wv_ref[head],
                    preferred_element_type=jnp.float32) + bv_ref[head]
        # scores (Tq, Tk): contract over d_k (rhs-transposed matmul on the MXU)
        s = jax.lax.dot_general(
            q.astype(jnp.bfloat16), k.astype(jnp.bfloat16),
            (((1,), (1,)), ((), ())),
            preferred_element_type=jnp.float32) * scale
        s = jnp.where(mask2 == 0.0, -1e9, s)
        m = jnp.max(s, axis=-1, keepdims=True)
        e = jnp.exp(s - m)
        denom = jnp.sum(e, axis=-1, keepdims=True)
        p = e * pl.reciprocal(denom, approx=True)
        ctx = jnp.dot(p.astype(jnp.bfloat16), v.astype(jnp.bfloat16),
                      preferred_element_type=jnp.float32)          # (Tq, d_k)
        # accumulating the per-head slice of Wo == concat(heads) @ Wo
        acc = acc + jnp.dot(ctx.astype(jnp.bfloat16), wo_ref[head],
                            preferred_element_type=jnp.float32)
    return acc


# ----------------------------------------------------------------------------
# Fused sub-layer kernels
# ----------------------------------------------------------------------------
def _self_attn_kernel(x_ref, mask_ref, g_ref, b_ref,
                      wq_ref, bq_ref, wk_ref, bk_ref, wv_ref, bv_ref,
                      wo_ref, bo_ref, o_ref):
    x = x_ref[0]                                     # (T, C) f32
    h = _layernorm(x, g_ref[...], b_ref[...])
    o_ref[0] = _mha_core(x, h, h, mask_ref[0],
                         wq_ref, bq_ref, wk_ref, bk_ref, wv_ref, bv_ref,
                         wo_ref, bo_ref)


def _cross_attn_kernel(x_ref, kv_ref, mask_ref, g_ref, b_ref,
                       wq_ref, bq_ref, wk_ref, bk_ref, wv_ref, bv_ref,
                       wo_ref, bo_ref, o_ref):
    x = x_ref[0]                                     # (Tq, C) f32
    h = _layernorm(x, g_ref[...], b_ref[...])
    o_ref[0] = _mha_core(x, h, kv_ref[0], mask_ref[0],
                         wq_ref, bq_ref, wk_ref, bk_ref, wv_ref, bv_ref,
                         wo_ref, bo_ref)


def _ffn_kernel(x_ref, g_ref, b_ref, w1_ref, b1_ref, w2_ref, b2_ref, o_ref):
    x = x_ref[0]                                     # (tt, C) f32
    h = _layernorm(x, g_ref[...], b_ref[...])
    h1 = jnp.dot(h.astype(jnp.bfloat16), w1_ref[...],
                 preferred_element_type=jnp.float32) + b1_ref[...]
    h1 = jnp.maximum(h1, 0.0)
    y = jnp.dot(h1.astype(jnp.bfloat16), w2_ref[...],
                preferred_element_type=jnp.float32) + b2_ref[...]
    o_ref[0] = x + y


def _embed_kernel(e_ref, p_ref, o_ref):
    scale = math.sqrt(e_ref.shape[-1])               # sqrt(d_model), static
    o_ref[0] = e_ref[0] * scale + p_ref[0]


# ----------------------------------------------------------------------------
# pallas_call wrappers
# ----------------------------------------------------------------------------
_MHA_KEYS = ("ln_g", "ln_b", "wq", "bq", "wk", "bk", "wv", "bv", "wo", "bo")


def _const_spec(shape):
    return pl.BlockSpec(shape, lambda b: (0,) * len(shape))


def _mha_param_specs(p):
    return [_const_spec(p[k].shape) for k in _MHA_KEYS]


def _mha_param_args(p):
    return tuple(p[k] for k in _MHA_KEYS)


def self_attention_sublayer(x, mask, p):
    B, T, C = x.shape
    Bm, Mq, Tk = mask.shape
    mask_idx = (lambda b: (b, 0, 0)) if Bm > 1 else (lambda b: (0, 0, 0))
    return pl.pallas_call(
        _self_attn_kernel,
        grid=(B,),
        out_shape=jax.ShapeDtypeStruct((B, T, C), jnp.float32),
        in_specs=[pl.BlockSpec((1, T, C), lambda b: (b, 0, 0)),
                  pl.BlockSpec((1, Mq, Tk), mask_idx)] + _mha_param_specs(p),
        out_specs=pl.BlockSpec((1, T, C), lambda b: (b, 0, 0)),
        compiler_params=pltpu.CompilerParams(dimension_semantics=("parallel",)),
        input_output_aliases={0: 0},
    )(x, mask, *_mha_param_args(p))


def cross_attention_sublayer(x, enc_out, mask, p):
    B, Tq, C = x.shape
    _, Tk, Ce = enc_out.shape
    Bm, Mq, Tm = mask.shape
    mask_idx = (lambda b: (b, 0, 0)) if Bm > 1 else (lambda b: (0, 0, 0))
    return pl.pallas_call(
        _cross_attn_kernel,
        grid=(B,),
        out_shape=jax.ShapeDtypeStruct((B, Tq, C), jnp.float32),
        in_specs=[pl.BlockSpec((1, Tq, C), lambda b: (b, 0, 0)),
                  pl.BlockSpec((1, Tk, Ce), lambda b: (b, 0, 0)),
                  pl.BlockSpec((1, Mq, Tm), mask_idx)] + _mha_param_specs(p),
        out_specs=pl.BlockSpec((1, Tq, C), lambda b: (b, 0, 0)),
        compiler_params=pltpu.CompilerParams(dimension_semantics=("parallel",)),
        input_output_aliases={0: 0},
    )(x, enc_out, mask, *_mha_param_args(p))


def _pick_tile(n):
    for t in (512, 256, 128, 64, 32, 16, 8):
        if n % t == 0:
            return t
    return n


def ffn_sublayer(x, p):
    B, T, C = x.shape
    tt = _pick_tile(T)

    def const2(shape):
        return pl.BlockSpec(shape, lambda b, t: (0,) * len(shape))

    return pl.pallas_call(
        _ffn_kernel,
        grid=(B, T // tt),
        out_shape=jax.ShapeDtypeStruct((B, T, C), jnp.float32),
        in_specs=[pl.BlockSpec((1, tt, C), lambda b, t: (b, t, 0)),
                  const2(p["ln_g"].shape), const2(p["ln_b"].shape),
                  const2(p["w1"].shape), const2(p["b1"].shape),
                  const2(p["w2"].shape), const2(p["b2"].shape)],
        out_specs=pl.BlockSpec((1, tt, C), lambda b, t: (b, t, 0)),
        compiler_params=pltpu.CompilerParams(
            dimension_semantics=("parallel", "parallel")),
        input_output_aliases={0: 0},
    )(x, p["ln_g"], p["ln_b"], p["w1"], p["b1"], p["w2"], p["b2"])


def embed_combine(emb, pos):
    B, T, C = emb.shape
    return pl.pallas_call(
        _embed_kernel,
        grid=(B,),
        out_shape=jax.ShapeDtypeStruct((B, T, C), jnp.float32),
        in_specs=[pl.BlockSpec((1, T, C), lambda b: (b, 0, 0)),
                  pl.BlockSpec((1, T, C), lambda b: (0, 0, 0))],
        out_specs=pl.BlockSpec((1, T, C), lambda b: (b, 0, 0)),
        compiler_params=pltpu.CompilerParams(dimension_semantics=("parallel",)),
        input_output_aliases={0: 0},
    )(emb, pos)


# ----------------------------------------------------------------------------
# Decoder forward (parameter plumbing; masks are NOT broadcast-materialized)
# ----------------------------------------------------------------------------
def decoder_forward(params, trg_seq, trg_mask, src_mask, enc_output):
    B, T = trg_seq.shape
    T_src = enc_output.shape[1]

    # TODO(synk): the embedding lookup (gather) stays in plain JAX/XLA.
    emb = params["embedding"][trg_seq]                  # (B, T, C) f32
    pos = params["pos_table"][:T][None]                 # (1, T, C) sinusoidal
    x = embed_combine(emb, pos)
    # TODO(synk): nn.Dropout layers are identity here (inference mode).

    if trg_mask.ndim == 2:
        slf_mask = trg_mask.astype(jnp.float32)[None]   # (1, T, T)
    else:
        slf_mask = trg_mask.astype(jnp.float32)         # (B, T, T)

    if src_mask is None:
        enc_mask = jnp.ones((1, 1, T_src), jnp.float32)
    else:
        enc_mask = src_mask.astype(jnp.float32)
        if enc_mask.ndim == 2:
            enc_mask = enc_mask[:, None, :]
        # stays (B, 1, T_src); broadcast over query rows happens in-kernel

    for lp in params["layers"]:
        x = self_attention_sublayer(x, slf_mask, lp["slf"])
        x = cross_attention_sublayer(x, enc_output, enc_mask, lp["crs"])
        x = ffn_sublayer(x, lp["ffn"])
    return x


# ----------------------------------------------------------------------------
# Deterministic parameter init (matmul weights stored bf16, per-head layout)
# ----------------------------------------------------------------------------
def _sinusoid_table(n_position, d_hid):
    pos = jnp.arange(n_position, dtype=jnp.float32)[:, None]
    i = jnp.arange(d_hid)[None, :]
    angle = pos / jnp.power(10000.0, (2 * (i // 2)).astype(jnp.float32) / d_hid)
    return jnp.where(i % 2 == 0, jnp.sin(angle), jnp.cos(angle)).astype(jnp.float32)


def init_params(key, vocab, d_model, word_max_len, num_heads, d_k, layers, d_ff):
    n_draws = 1 + layers * (2 * 8 + 4)
    keys = iter(jax.random.split(key, n_draws + 4))

    def wmat(shape):
        return (jax.random.normal(next(keys), shape, jnp.float32) * 0.02
                ).astype(jnp.bfloat16)

    def bvec(shape):
        return jax.random.normal(next(keys), shape, jnp.float32) * 0.02

    def mha_params():
        return dict(
            ln_g=jnp.ones((1, d_model), jnp.float32),
            ln_b=jnp.zeros((1, d_model), jnp.float32),
            wq=wmat((num_heads, d_model, d_k)), bq=bvec((num_heads, 1, d_k)),
            wk=wmat((num_heads, d_model, d_k)), bk=bvec((num_heads, 1, d_k)),
            wv=wmat((num_heads, d_model, d_k)), bv=bvec((num_heads, 1, d_k)),
            wo=wmat((num_heads, d_k, d_model)), bo=bvec((1, d_model)),
        )

    def ffn_params():
        return dict(
            ln_g=jnp.ones((1, d_model), jnp.float32),
            ln_b=jnp.zeros((1, d_model), jnp.float32),
            w1=wmat((d_model, d_ff)), b1=bvec((1, d_ff)),
            w2=wmat((d_ff, d_model)), b2=bvec((1, d_model)),
        )

    return {
        "embedding": jax.random.normal(next(keys), (vocab, d_model),
                                       jnp.float32) * 0.02,
        "pos_table": _sinusoid_table(word_max_len, d_model),
        "layers": [dict(slf=mha_params(), crs=mha_params(), ffn=ffn_params())
                   for _ in range(layers)],
    }


# ----------------------------------------------------------------------------
# Demo
# ----------------------------------------------------------------------------
if __name__ == "__main__":
    vocab = 50
    d_model = 32
    word_max_len = 16
    num_heads = 2
    d_k = 16
    n_layers = 2
    d_ff = 64
    B, T_out, T_in = 2, 8, 8

    root = jax.random.PRNGKey(0)
    k_par, k_seq, k_enc = jax.random.split(root, 3)

    params = init_params(k_par, vocab, d_model, word_max_len, num_heads, d_k,
                         n_layers, d_ff)

    trg_seq = jax.random.randint(k_seq, (B, T_out), 0, vocab)
    trg_mask = jnp.tril(jnp.ones((T_out, T_out), jnp.float32))   # causal mask
    src_mask = jnp.ones((B, 1, T_in), jnp.float32)
    enc_output = jax.random.normal(k_enc, (B, T_in, d_model), jnp.float32)

    fwd = jax.jit(decoder_forward)
    out = jax.block_until_ready(
        fwd(params, trg_seq, trg_mask, src_mask, enc_output))

    assert out.shape == (B, T_out, d_model), out.shape
    assert bool(jnp.all(jnp.isfinite(out)))
    print("KERNEL_OK")
</pallas_src>

<mosaic_0001>
module attributes {stable_mosaic.version = 11 : i64} {
  func.func @_embed_kernel(%arg0: i32, %arg1: memref<1x8x32xf32, #tpu.memory_space<vmem>>, %arg2: memref<1x8x32xf32, #tpu.memory_space<vmem>>, %arg3: memref<1x8x32xf32, #tpu.memory_space<vmem>>) attributes {dimension_semantics = [#tpu.dimension_semantics<parallel>], iteration_bounds = array<i64: 2>, scalar_prefetch = 0 : i64, scratch_operands = 0 : i64, tpu.core_type = #tpu.core_type<tc>, window_params = [{transform_indices = @transform_0, window_bounds = array<i64: 1, 8, 32>}, {pipeline_mode = #tpu.pipeline_mode<synchronous>, transform_indices = @transform_1, window_bounds = array<i64: 1, 8, 32>}, {transform_indices = @transform_2, window_bounds = array<i64: 1, 8, 32>}]} {
    %c0 = arith.constant 0 : index
    %c0_0 = arith.constant 0 : index
    %c0_1 = arith.constant 0 : index
    %0 = vector.load %arg1[%c0, %c0_0, %c0_1] : memref<1x8x32xf32, #tpu.memory_space<vmem>>, vector<1x8x32xf32>
    %1 = vector.shape_cast %0 : vector<1x8x32xf32> to vector<8x32xf32>
    %cst = arith.constant 5.65685415 : f32
    %2 = vector.broadcast %cst : f32 to vector<8x32xf32>
    %3 = arith.mulf %1, %2 : vector<8x32xf32>
    %c0_2 = arith.constant 0 : index
    %c0_3 = arith.constant 0 : index
    %c0_4 = arith.constant 0 : index
    %4 = vector.load %arg2[%c0_2, %c0_3, %c0_4] : memref<1x8x32xf32, #tpu.memory_space<vmem>>, vector<1x8x32xf32>
    %5 = vector.shape_cast %4 : vector<1x8x32xf32> to vector<8x32xf32>
    %6 = arith.addf %3, %5 : vector<8x32xf32>
    %c0_5 = arith.constant 0 : index
    %c0_6 = arith.constant 0 : index
    %c0_7 = arith.constant 0 : index
    %7 = vector.load %arg3[%c0_5, %c0_6, %c0_7] : memref<1x8x32xf32, #tpu.memory_space<vmem>>, vector<1x8x32xf32>
    %8 = vector.shape_cast %7 : vector<1x8x32xf32> to vector<8x32xf32>
    %9 = vector.shape_cast %6 : vector<8x32xf32> to vector<1x8x32xf32>
    tpu.vector_store %arg3[%c0_5, %c0_6, %c0_7], %9 {strides = array<i32>} : memref<1x8x32xf32, #tpu.memory_space<vmem>>, vector<1x8x32xf32>,
    return
  }
  func.func @transform_0(%arg0: i32) -> (i32, i32, i32) {
    %c0_i32 = arith.constant 0 : i32
    %c0_i32_0 = arith.constant 0 : i32
    %c0_i32_1 = arith.constant 0 : i32
    return %arg0, %c0_i32, %c0_i32_0 : i32, i32, i32
  }
  func.func @transform_1(%arg0: i32) -> (i32, i32, i32) {
    %c0_i32 = arith.constant 0 : i32
    %c0_i32_0 = arith.constant 0 : i32
    %c0_i32_1 = arith.constant 0 : i32
    %c0_i32_2 = arith.constant 0 : i32
    return %c0_i32, %c0_i32_0, %c0_i32_1 : i32, i32, i32
  }
  func.func @transform_2(%arg0: i32) -> (i32, i32, i32) {
    %c0_i32 = arith.constant 0 : i32
    %c0_i32_0 = arith.constant 0 : i32
    %c0_i32_1 = arith.constant 0 : i32
    return %arg0, %c0_i32, %c0_i32_0 : i32, i32, i32
  }
}

module attributes {stable_mosaic.version = 11 : i64} {
  func.func @_self_attn_kernel(%arg0: i32, %arg1: memref<1x8x32xf32, #tpu.memory_space<vmem>>, %arg2: memref<1x8x8xf32, #tpu.memory_space<vmem>>, %arg3: memref<1x32xf32, #tpu.memory_space<vmem>>, %arg4: memref<1x32xf32, #tpu.memory_space<vmem>>, %arg5: memref<2x32x16xbf16, #tpu.memory_space<vmem>>, %arg6: memref<2x1x16xf32, #tpu.memory_space<vmem>>, %arg7: memref<2x32x16xbf16, #tpu.memory_space<vmem>>, %arg8: memref<2x1x16xf32, #tpu.memory_space<vmem>>, %arg9: memref<2x32x16xbf16, #tpu.memory_space<vmem>>, %arg10: memref<2x1x16xf32, #tpu.memory_space<vmem>>, %arg11: memref<2x16x32xbf16, #tpu.memory_space<vmem>>, %arg12: memref<1x32xf32, #tpu.memory_space<vmem>>, %arg13: memref<1x8x32xf32, #tpu.memory_space<vmem>>) attributes {dimension_semantics = [#tpu.dimension_semantics<parallel>], iteration_bounds = array<i64: 2>, scalar_prefetch = 0 : i64, scratch_operands = 0 : i64, tpu.core_type = #tpu.core_type<tc>, window_params = [{transform_indices = @transform_0, window_bounds = array<i64: 1, 8, 32>}, {pipeline_mode = #tpu.pipeline_mode<synchronous>, transform_indices = @transform_1, window_bounds = array<i64: 1, 8, 8>}, {pipeline_mode = #tpu.pipeline_mode<synchronous>, transform_indices = @transform_2, window_bounds = array<i64: 1, 32>}, {pipeline_mode = #tpu.pipeline_mode<synchronous>, transform_indices = @transform_3, window_bounds = array<i64: 1, 32>}, {pipeline_mode = #tpu.pipeline_mode<synchronous>, transform_indices = @transform_4, window_bounds = array<i64: 2, 32, 16>}, {pipeline_mode = #tpu.pipeline_mode<synchronous>, transform_indices = @transform_5, window_bounds = array<i64: 2, 1, 16>}, {pipeline_mode = #tpu.pipeline_mode<synchronous>, transform_indices = @transform_6, window_bounds = array<i64: 2, 32, 16>}, {pipeline_mode = #tpu.pipeline_mode<synchronous>, transform_indices = @transform_7, window_bounds = array<i64: 2, 1, 16>}, {pipeline_mode = #tpu.pipeline_mode<synchronous>, transform_indices = @transform_8, window_bounds = array<i64: 2, 32, 16>}, {pipeline_mode = #tpu.pipeline_mode<synchronous>, transform_indices = @transform_9, window_bounds = array<i64: 2, 1, 16>}, {pipeline_mode = #tpu.pipeline_mode<synchronous>, transform_indices = @transform_10, window_bounds = array<i64: 2, 16, 32>}, {pipeline_mode = #tpu.pipeline_mode<synchronous>, transform_indices = @transform_11, window_bounds = array<i64: 1, 32>}, {transform_indices = @transform_12, window_bounds = array<i64: 1, 8, 32>}]} {
    %c0 = arith.constant 0 : index
    %c0_0 = arith.constant 0 : index
    %c0_1 = arith.constant 0 : index
    %0 = vector.load %arg1[%c0, %c0_0, %c0_1] : memref<1x8x32xf32, #tpu.memory_space<vmem>>, vector<1x8x32xf32>
    %1 = vector.shape_cast %0 : vector<1x8x32xf32> to vector<8x32xf32>
    %c0_2 = arith.constant 0 : index
    %c0_3 = arith.constant 0 : index
    %2 = vector.load %arg3[%c0_2, %c0_3] : memref<1x32xf32, #tpu.memory_space<vmem>>, vector<1x32xf32>
    %c0_4 = arith.constant 0 : index
    %c0_5 = arith.constant 0 : index
    %3 = vector.load %arg4[%c0_4, %c0_5] : memref<1x32xf32, #tpu.memory_space<vmem>>, vector<1x32xf32>
    %cst = arith.constant dense<0.000000e+00> : vector<8xf32>
    %4 = vector.multi_reduction <add>, %1, %cst [1] : vector<8x32xf32> to vector<8xf32>
    %5 = vector.shape_cast %4 : vector<8xf32> to vector<8x1xf32>
    %cst_6 = arith.constant 3.200000e+01 : f32
    %6 = vector.broadcast %cst_6 : f32 to vector<8x1xf32>
    %7 = arith.divf %5, %6 : vector<8x1xf32>
    %8 = vector.broadcast %7 : vector<8x1xf32> to vector<8x32xf32>
    %9 = arith.subf %1, %8 : vector<8x32xf32>
    %10 = arith.mulf %9, %9 : vector<8x32xf32>
    %cst_7 = arith.constant dense<0.000000e+00> : vector<8xf32>
    %11 = vector.multi_reduction <add>, %10, %cst_7 [1] : vector<8x32xf32> to vector<8xf32>
    %12 = vector.shape_cast %11 : vector<8xf32> to vector<8x1xf32>
    %cst_8 = arith.constant 3.200000e+01 : f32
    %13 = vector.broadcast %cst_8 : f32 to vector<8x1xf32>
    %14 = arith.divf %12, %13 : vector<8x1xf32>
    %15 = vector.broadcast %7 : vector<8x1xf32> to vector<8x32xf32>
    %16 = arith.subf %1, %15 : vector<8x32xf32>
    %cst_9 = arith.constant 9.99999974E-6 : f32
    %17 = vector.broadcast %cst_9 : f32 to vector<8x1xf32>
    %18 = arith.addf %14, %17 : vector<8x1xf32>
    %19 = math.rsqrt %18 : vector<8x1xf32>
    %20 = vector.broadcast %19 : vector<8x1xf32> to vector<8x32xf32>
    %21 = arith.mulf %16, %20 : vector<8x32xf32>
    %22 = vector.broadcast %2 : vector<1x32xf32> to vector<8x32xf32>
    %23 = arith.mulf %21, %22 : vector<8x32xf32>
    %24 = vector.broadcast %3 : vector<1x32xf32> to vector<8x32xf32>
    %25 = arith.addf %23, %24 : vector<8x32xf32>
    %c0_10 = arith.constant 0 : index
    %c0_11 = arith.constant 0 : index
    %c0_12 = arith.constant 0 : index
    %26 = vector.load %arg2[%c0_10, %c0_11, %c0_12] : memref<1x8x8xf32, #tpu.memory_space<vmem>>, vector<1x8x8xf32>
    %27 = vector.shape_cast %26 : vector<1x8x8xf32> to vector<8x8xf32>
    %28 = arith.truncf %25 : vector<8x32xf32> to vector<8x32xbf16>
    %29 = arith.truncf %25 : vector<8x32xf32> to vector<8x32xbf16>
    %c0_13 = arith.constant 0 : index
    %c0_14 = arith.constant 0 : index
    %30 = vector.load %arg12[%c0_13, %c0_14] : memref<1x32xf32, #tpu.memory_space<vmem>>, vector<1x32xf32>
    %31 = vector.broadcast %30 : vector<1x32xf32> to vector<8x32xf32>
    %32 = arith.addf %1, %31 : vector<8x32xf32>
    %c0_15 = arith.constant 0 : index
    %c0_16 = arith.constant 0 : index
    %c0_17 = arith.constant 0 : index
    %33 = vector.load %arg5[%c0_15, %c0_16, %c0_17] : memref<2x32x16xbf16, #tpu.memory_space<vmem>>, vector<1x32x16xbf16>
    %34 = vector.shape_cast %33 : vector<1x32x16xbf16> to vector<32x16xbf16>
    %cst_18 = arith.constant dense<0.000000e+00> : vector<8x16xf32>
    %35 = tpu.matmul %28, %34, %cst_18 {dimension_numbers = #tpu.dot_dimension_numbers<[1], [0], [0], [1], [0, 0, 1, 1], [], []>} : vector<8x32xbf16>, vector<32x16xbf16>, vector<8x16xf32> -> vector<8x16xf32>
    %c0_19 = arith.constant 0 : index
    %c0_20 = arith.constant 0 : index
    %c0_21 = arith.constant 0 : index
    %36 = vector.load %arg6[%c0_19, %c0_20, %c0_21] : memref<2x1x16xf32, #tpu.memory_space<vmem>>, vector<1x1x16xf32>
    %37 = vector.shape_cast %36 : vector<1x1x16xf32> to vector<1x16xf32>
    %38 = vector.broadcast %37 : vector<1x16xf32> to vector<8x16xf32>
    %39 = arith.addf %35, %38 : vector<8x16xf32>
    %c0_22 = arith.constant 0 : index
    %c0_23 = arith.constant 0 : index
    %c0_24 = arith.constant 0 : index
    %40 = vector.load %arg7[%c0_22, %c0_23, %c0_24] : memref<2x32x16xbf16, #tpu.memory_space<vmem>>, vector<1x32x16xbf16>
    %41 = vector.shape_cast %40 : vector<1x32x16xbf16> to vector<32x16xbf16>
    %cst_25 = arith.constant dense<0.000000e+00> : vector<8x16xf32>
    %42 = tpu.matmul %29, %41, %cst_25 {dimension_numbers = #tpu.dot_dimension_numbers<[1], [0], [0], [1], [0, 0, 1, 1], [], []>} : vector<8x32xbf16>, vector<32x16xbf16>, vector<8x16xf32> -> vector<8x16xf32>
    %c0_26 = arith.constant 0 : index
    %c0_27 = arith.constant 0 : index
    %c0_28 = arith.constant 0 : index
    %43 = vector.load %arg8[%c0_26, %c0_27, %c0_28] : memref<2x1x16xf32, #tpu.memory_space<vmem>>, vector<1x1x16xf32>
    %44 = vector.shape_cast %43 : vector<1x1x16xf32> to vector<1x16xf32>
    %45 = vector.broadcast %44 : vector<1x16xf32> to vector<8x16xf32>
    %46 = arith.addf %42, %45 : vector<8x16xf32>
    %c0_29 = arith.constant 0 : index
    %c0_30 = arith.constant 0 : index
    %c0_31 = arith.constant 0 : index
    %47 = vector.load %arg9[%c0_29, %c0_30, %c0_31] : memref<2x32x16xbf16, #tpu.memory_space<vmem>>, vector<1x32x16xbf16>
    %48 = vector.shape_cast %47 : vector<1x32x16xbf16> to vector<32x16xbf16>
    %cst_32 = arith.constant dense<0.000000e+00> : vector<8x16xf32>
    %49 = tpu.matmul %29, %48, %cst_32 {dimension_numbers = #tpu.dot_dimension_numbers<[1], [0], [0], [1], [0, 0, 1, 1], [], []>} : vector<8x32xbf16>, vector<32x16xbf16>, vector<8x16xf32> -> vector<8x16xf32>
    %c0_33 = arith.constant 0 : index
    %c0_34 = arith.constant 0 : index
    %c0_35 = arith.constant 0 : index
    %50 = vector.load %arg10[%c0_33, %c0_34, %c0_35] : memref<2x1x16xf32, #tpu.memory_space<vmem>>, vector<1x1x16xf32>
    %51 = vector.shape_cast %50 : vector<1x1x16xf32> to vector<1x16xf32>
    %52 = vector.broadcast %51 : vector<1x16xf32> to vector<8x16xf32>
    %53 = arith.addf %49, %52 : vector<8x16xf32>
    %54 = arith.truncf %39 : vector<8x16xf32> to vector<8x16xbf16>
    %55 = arith.truncf %46 : vector<8x16xf32> to vector<8x16xbf16>
    %cst_36 = arith.constant dense<0.000000e+00> : vector<8x8xf32>
    %56 = tpu.matmul %54, %55, %cst_36 {dimension_numbers = #tpu.dot_dimension_numbers<[1], [1], [0], [0], [0, 0, 1, 0], [], []>} : vector<8x16xbf16>, vector<8x16xbf16>, vector<8x8xf32> -> vector<8x8xf32>
    %cst_37 = arith.constant 2.500000e-01 : f32
    %57 = vector.broadcast %cst_37 : f32 to vector<8x8xf32>
    %58 = arith.mulf %56, %57 : vector<8x8xf32>
    %cst_38 = arith.constant 0.000000e+00 : f32
    %59 = vector.broadcast %cst_38 : f32 to vector<8x8xf32>
    %60 = arith.cmpf oeq, %27, %59 : vector<8x8xf32>
    %cst_39 = arith.constant -1.000000e+09 : f32
    %61 = vector.broadcast %cst_39 : f32 to vector<8x8xf32>
    %62 = arith.select %60, %61, %58 : vector<8x8xi1>, vector<8x8xf32>
    %cst_40 = arith.constant dense<0xFF800000> : vector<8xf32>
    %63 = vector.multi_reduction <maximumf>, %62, %cst_40 [1] : vector<8x8xf32> to vector<8xf32>
    %64 = vector.shape_cast %63 : vector<8xf32> to vector<8x1xf32>
    %65 = vector.broadcast %64 : vector<8x1xf32> to vector<8x8xf32>
    %66 = arith.subf %62, %65 : vector<8x8xf32>
    %67 = math.exp %66 : vector<8x8xf32>
    %cst_41 = arith.constant dense<0.000000e+00> : vector<8xf32>
    %68 = vector.multi_reduction <add>, %67, %cst_41 [1] : vector<8x8xf32> to vector<8xf32>
    %69 = vector.shape_cast %68 : vector<8xf32> to vector<8x1xf32>
    %70 = tpu.reciprocal %69 {approx = true} : vector<8x1xf32> -> vector<8x1xf32>
    %71 = vector.broadcast %70 : vector<8x1xf32> to vector<8x8xf32>
    %72 = arith.mulf %67, %71 : vector<8x8xf32>
    %73 = arith.truncf %72 : vector<8x8xf32> to vector<8x8xbf16>
    %74 = arith.truncf %53 : vector<8x16xf32> to vector<8x16xbf16>
    %cst_42 = arith.constant dense<0.000000e+00> : vector<8x16xf32>
    %75 = tpu.matmul %73, %74, %cst_42 {dimension_numbers = #tpu.dot_dimension_numbers<[1], [0], [0], [1], [0, 0, 1, 1], [], []>} : vector<8x8xbf16>, vector<8x16xbf16>, vector<8x16xf32> -> vector<8x16xf32>
    %76 = arith.truncf %75 : vector<8x16xf32> to vector<8x16xbf16>
    %c0_43 = arith.constant 0 : index
    %c0_44 = arith.constant 0 : index
    %c0_45 = arith.constant 0 : index
    %77 = vector.load %arg11[%c0_43, %c0_44, %c0_45] : memref<2x16x32xbf16, #tpu.memory_space<vmem>>, vector<1x16x32xbf16>
    %78 = vector.shape_cast %77 : vector<1x16x32xbf16> to vector<16x32xbf16>
    %cst_46 = arith.constant dense<0.000000e+00> : vector<8x32xf32>
    %79 = tpu.matmul %76, %78, %cst_46 {dimension_numbers = #tpu.dot_dimension_numbers<[1], [0], [0], [1], [0, 0, 1, 1], [], []>} : vector<8x16xbf16>, vector<16x32xbf16>, vector<8x32xf32> -> vector<8x32xf32>
    %80 = arith.addf %32, %79 : vector<8x32xf32>
    %c1 = arith.constant 1 : index
    %c0_47 = arith.constant 0 : index
    %c0_48 = arith.constant 0 : index
    %81 = vector.load %arg5[%c1, %c0_47, %c0_48] : memref<2x32x16xbf16, #tpu.memory_space<vmem>>, vector<1x32x16xbf16>
    %82 = vector.shape_cast %81 : vector<1x32x16xbf16> to vector<32x16xbf16>
    %cst_49 = arith.constant dense<0.000000e+00> : vector<8x16xf32>
    %83 = tpu.matmul %28, %82, %cst_49 {dimension_numbers = #tpu.dot_dimension_numbers<[1], [0], [0], [1], [0, 0, 1, 1], [], []>} : vector<8x32xbf16>, vector<32x16xbf16>, vector<8x16xf32> -> vector<8x16xf32>
    %c1_50 = arith.constant 1 : index
    %c0_51 = arith.constant 0 : index
    %c0_52 = arith.constant 0 : index
    %84 = vector.load %arg6[%c1_50, %c0_51, %c0_52] : memref<2x1x16xf32, #tpu.memory_space<vmem>>, vector<1x1x16xf32>
    %85 = vector.shape_cast %84 : vector<1x1x16xf32> to vector<1x16xf32>
    %86 = vector.broadcast %85 : vector<1x16xf32> to vector<8x16xf32>
    %87 = arith.addf %83, %86 : vector<8x16xf32>
    %c1_53 = arith.constant 1 : index
    %c0_54 = arith.constant 0 : index
    %c0_55 = arith.constant 0 : index
    %88 = vector.load %arg7[%c1_53, %c0_54, %c0_55] : memref<2x32x16xbf16, #tpu.memory_space<vmem>>, vector<1x32x16xbf16>
    %89 = vector.shape_cast %88 : vector<1x32x16xbf16> to vector<32x16xbf16>
    %cst_56 = arith.constant dense<0.000000e+00> : vector<8x16xf32>
    %90 = tpu.matmul %29, %89, %cst_56 {dimension_numbers = #tpu.dot_dimension_numbers<[1], [0], [0], [1], [0, 0, 1, 1], [], []>} : vector<8x32xbf16>, vector<32x16xbf16>, vector<8x16xf32> -> vector<8x16xf32>
    %c1_57 = arith.constant 1 : index
    %c0_58 = arith.constant 0 : index
    %c0_59 = arith.constant 0 : index
    %91 = vector.load %arg8[%c1_57, %c0_58, %c0_59] : memref<2x1x16xf32, #tpu.memory_space<vmem>>, vector<1x1x16xf32>
    %92 = vector.shape_cast %91 : vector<1x1x16xf32> to vector<1x16xf32>
    %93 = vector.broadcast %92 : vector<1x16xf32> to vector<8x16xf32>
    %94 = arith.addf %90, %93 : vector<8x16xf32>
    %c1_60 = arith.constant 1 : index
    %c0_61 = arith.constant 0 : index
    %c0_62 = arith.constant 0 : index
    %95 = vector.load %arg9[%c1_60, %c0_61, %c0_62] : memref<2x32x16xbf16, #tpu.memory_space<vmem>>, vector<1x32x16xbf16>
    %96 = vector.shape_cast %95 : vector<1x32x16xbf16> to vector<32x16xbf16>
    %cst_63 = arith.constant dense<0.000000e+00> : vector<8x16xf32>
    %97 = tpu.matmul %29, %96, %cst_63 {dimension_numbers = #tpu.dot_dimension_numbers<[1], [0], [0], [1], [0, 0, 1, 1], [], []>} : vector<8x32xbf16>, vector<32x16xbf16>, vector<8x16xf32> -> vector<8x16xf32>
    %c1_64 = arith.constant 1 : index
    %c0_65 = arith.constant 0 : index
    %c0_66 = arith.constant 0 : index
    %98 = vector.load %arg10[%c1_64, %c0_65, %c0_66] : memref<2x1x16xf32, #tpu.memory_space<vmem>>, vector<1x1x16xf32>
    %99 = vector.shape_cast %98 : vector<1x1x16xf32> to vector<1x16xf32>
    %100 = vector.broadcast %99 : vector<1x16xf32> to vector<8x16xf32>
    %101 = arith.addf %97, %100 : vector<8x16xf32>
    %102 = arith.truncf %87 : vector<8x16xf32> to vector<8x16xbf16>
    %103 = arith.truncf %94 : vector<8x16xf32> to vector<8x16xbf16>
    %cst_67 = arith.constant dense<0.000000e+00> : vector<8x8xf32>
    %104 = tpu.matmul %102, %103, %cst_67 {dimension_numbers = #tpu.dot_dimension_numbers<[1], [1], [0], [0], [0, 0, 1, 0], [], []>} : vector<8x16xbf16>, vector<8x16xbf16>, vector<8x8xf32> -> vector<8x8xf32>
    %cst_68 = arith.constant 2.500000e-01 : f32
    %105 = vector.broadcast %cst_68 : f32 to vector<8x8xf32>
    %106 = arith.mulf %104, %105 : vector<8x8xf32>
    %cst_69 = arith.constant 0.000000e+00 : f32
    %107 = vector.broadcast %cst_69 : f32 to vector<8x8xf32>
    %108 = arith.cmpf oeq, %27, %107 : vector<8x8xf32>
    %cst_70 = arith.constant -1.000000e+09 : f32
    %109 = vector.broadcast %cst_70 : f32 to vector<8x8xf32>
    %110 = arith.select %108, %109, %106 : vector<8x8xi1>, vector<8x8xf32>
    %cst_71 = arith.constant dense<0xFF800000> : vector<8xf32>
    %111 = vector.multi_reduction <maximumf>, %110, %cst_71 [1] : vector<8x8xf32> to vector<8xf32>
    %112 = vector.shape_cast %111 : vector<8xf32> to vector<8x1xf32>
    %113 = vector.broadcast %112 : vector<8x1xf32> to vector<8x8xf32>
    %114 = arith.subf %110, %113 : vector<8x8xf32>
    %115 = math.exp %114 : vector<8x8xf32>
    %cst_72 = arith.constant dense<0.000000e+00> : vector<8xf32>
    %116 = vector.multi_reduction <add>, %115, %cst_72 [1] : vector<8x8xf32> to vector<8xf32>
    %117 = vector.shape_cast %116 : vector<8xf32> to vector<8x1xf32>
    %118 = tpu.reciprocal %117 {approx = true} : vector<8x1xf32> -> vector<8x1xf32>
    %119 = vector.broadcast %118 : vector<8x1xf32> to vector<8x8xf32>
    %120 = arith.mulf %115, %119 : vector<8x8xf32>
    %121 = arith.truncf %120 : vector<8x8xf32> to vector<8x8xbf16>
    %122 = arith.truncf %101 : vector<8x16xf32> to vector<8x16xbf16>
    %cst_73 = arith.constant dense<0.000000e+00> : vector<8x16xf32>
    %123 = tpu.matmul %121, %122, %cst_73 {dimension_numbers = #tpu.dot_dimension_numbers<[1], [0], [0], [1], [0, 0, 1, 1], [], []>} : vector<8x8xbf16>, vector<8x16xbf16>, vector<8x16xf32> -> vector<8x16xf32>
    %124 = arith.truncf %123 : vector<8x16xf32> to vector<8x16xbf16>
    %c1_74 = arith.constant 1 : index
    %c0_75 = arith.constant 0 : index
    %c0_76 = arith.constant 0 : index
    %125 = vector.load %arg11[%c1_74, %c0_75, %c0_76] : memref<2x16x32xbf16, #tpu.memory_space<vmem>>, vector<1x16x32xbf16>
    %126 = vector.shape_cast %125 : vector<1x16x32xbf16> to vector<16x32xbf16>
    %cst_77 = arith.constant dense<0.000000e+00> : vector<8x32xf32>
    %127 = tpu.matmul %124, %126, %cst_77 {dimension_numbers = #tpu.dot_dimension_numbers<[1], [0], [0], [1], [0, 0, 1, 1], [], []>} : vector<8x16xbf16>, vector<16x32xbf16>, vector<8x32xf32> -> vector<8x32xf32>
    %128 = arith.addf %80, %127 : vector<8x32xf32>
    %c0_78 = arith.constant 0 : index
    %c0_79 = arith.constant 0 : index
    %c0_80 = arith.constant 0 : index
    %129 = vector.load %arg13[%c0_78, %c0_79, %c0_80] : memref<1x8x32xf32, #tpu.memory_space<vmem>>, vector<1x8x32xf32>
    %130 = vector.shape_cast %129 : vector<1x8x32xf32> to vector<8x32xf32>
    %131 = vector.shape_cast %128 : vector<8x32xf32> to vector<1x8x32xf32>
    tpu.vector_store %arg13[%c0_78, %c0_79, %c0_80], %131 {strides = array<i32>} : memref<1x8x32xf32, #tpu.memory_space<vmem>>, vector<1x8x32xf32>,
    return
  }
  func.func @transform_0(%arg0: i32) -> (i32, i32, i32) {
    %c0_i32 = arith.constant 0 : i32
    %c0_i32_0 = arith.constant 0 : i32
    %c0_i32_1 = arith.constant 0 : i32
    return %arg0, %c0_i32, %c0_i32_0 : i32, i32, i32
  }
  func.func @transform_1(%arg0: i32) -> (i32, i32, i32) {
    %c0_i32 = arith.constant 0 : i32
    %c0_i32_0 = arith.constant 0 : i32
    %c0_i32_1 = arith.constant 0 : i32
    %c0_i32_2 = arith.constant 0 : i32
    return %c0_i32, %c0_i32_0, %c0_i32_1 : i32, i32, i32
  }
  func.func @transform_2(%arg0: i32) -> (i32, i32) {
    %c0_i32 = arith.constant 0 : i32
    %c0_i32_0 = arith.constant 0 : i32
    %c0_i32_1 = arith.constant 0 : i32
    return %c0_i32, %c0_i32_0 : i32, i32
  }
  func.func @transform_3(%arg0: i32) -> (i32, i32) {
    %c0_i32 = arith.constant 0 : i32
    %c0_i32_0 = arith.constant 0 : i32
    %c0_i32_1 = arith.constant 0 : i32
    return %c0_i32, %c0_i32_0 : i32, i32
  }
  func.func @transform_4(%arg0: i32) -> (i32, i32, i32) {
    %c0_i32 = arith.constant 0 : i32
    %c0_i32_0 = arith.constant 0 : i32
    %c0_i32_1 = arith.constant 0 : i32
    %c0_i32_2 = arith.constant 0 : i32
    return %c0_i32, %c0_i32_0, %c0_i32_1 : i32, i32, i32
  }
  func.func @transform_5(%arg0: i32) -> (i32, i32, i32) {
    %c0_i32 = arith.constant 0 : i32
    %c0_i32_0 = arith.constant 0 : i32
    %c0_i32_1 = arith.constant 0 : i32
    %c0_i32_2 = arith.constant 0 : i32
    return %c0_i32, %c0_i32_0, %c0_i32_1 : i32, i32, i32
  }
  func.func @transform_6(%arg0: i32) -> (i32, i32, i32) {
    %c0_i32 = arith.constant 0 : i32
    %c0_i32_0 = arith.constant 0 : i32
    %c0_i32_1 = arith.constant 0 : i32
    %c0_i32_2 = arith.constant 0 : i32
    return %c0_i32, %c0_i32_0, %c0_i32_1 : i32, i32, i32
  }
  func.func @transform_7(%arg0: i32) -> (i32, i32, i32) {
    %c0_i32 = arith.constant 0 : i32
    %c0_i32_0 = arith.constant 0 : i32
    %c0_i32_1 = arith.constant 0 : i32
    %c0_i32_2 = arith.constant 0 : i32
    return %c0_i32, %c0_i32_0, %c0_i32_1 : i32, i32, i32
  }
  func.func @transform_8(%arg0: i32) -> (i32, i32, i32) {
    %c0_i32 = arith.constant 0 : i32
    %c0_i32_0 = arith.constant 0 : i32
    %c0_i32_1 = arith.constant 0 : i32
    %c0_i32_2 = arith.constant 0 : i32
    return %c0_i32, %c0_i32_0, %c0_i32_1 : i32, i32, i32
  }
  func.func @transform_9(%arg0: i32) -> (i32, i32, i32) {
    %c0_i32 = arith.constant 0 : i32
    %c0_i32_0 = arith.constant 0 : i32
    %c0_i32_1 = arith.constant 0 : i32
    %c0_i32_2 = arith.constant 0 : i32
    return %c0_i32, %c0_i32_0, %c0_i32_1 : i32, i32, i32
  }
  func.func @transform_10(%arg0: i32) -> (i32, i32, i32) {
    %c0_i32 = arith.constant 0 : i32
    %c0_i32_0 = arith.constant 0 : i32
    %c0_i32_1 = arith.constant 0 : i32
    %c0_i32_2 = arith.constant 0 : i32
    return %c0_i32, %c0_i32_0, %c0_i32_1 : i32, i32, i32
  }
  func.func @transform_11(%arg0: i32) -> (i32, i32) {
    %c0_i32 = arith.constant 0 : i32
    %c0_i32_0 = arith.constant 0 : i32
    %c0_i32_1 = arith.constant 0 : i32
    return %c0_i32, %c0_i32_0 : i32, i32
  }
  func.func @transform_12(%arg0: i32) -> (i32, i32, i32) {
    %c0_i32 = arith.constant 0 : i32
    %c0_i32_0 = arith.constant 0 : i32
    %c0_i32_1 = arith.constant 0 : i32
    return %arg0, %c0_i32, %c0_i32_0 : i32, i32, i32
  }
}

module attributes {stable_mosaic.version = 11 : i64} {
  func.func @_cross_attn_kernel(%arg0: i32, %arg1: memref<1x8x32xf32, #tpu.memory_space<vmem>>, %arg2: memref<1x8x32xf32, #tpu.memory_space<vmem>>, %arg3: memref<1x1x8xf32, #tpu.memory_space<vmem>>, %arg4: memref<1x32xf32, #tpu.memory_space<vmem>>, %arg5: memref<1x32xf32, #tpu.memory_space<vmem>>, %arg6: memref<2x32x16xbf16, #tpu.memory_space<vmem>>, %arg7: memref<2x1x16xf32, #tpu.memory_space<vmem>>, %arg8: memref<2x32x16xbf16, #tpu.memory_space<vmem>>, %arg9: memref<2x1x16xf32, #tpu.memory_space<vmem>>, %arg10: memref<2x32x16xbf16, #tpu.memory_space<vmem>>, %arg11: memref<2x1x16xf32, #tpu.memory_space<vmem>>, %arg12: memref<2x16x32xbf16, #tpu.memory_space<vmem>>, %arg13: memref<1x32xf32, #tpu.memory_space<vmem>>, %arg14: memref<1x8x32xf32, #tpu.memory_space<vmem>>) attributes {dimension_semantics = [#tpu.dimension_semantics<parallel>], iteration_bounds = array<i64: 2>, scalar_prefetch = 0 : i64, scratch_operands = 0 : i64, tpu.core_type = #tpu.core_type<tc>, window_params = [{transform_indices = @transform_0, window_bounds = array<i64: 1, 8, 32>}, {transform_indices = @transform_1, window_bounds = array<i64: 1, 8, 32>}, {transform_indices = @transform_2, window_bounds = array<i64: 1, 1, 8>}, {pipeline_mode = #tpu.pipeline_mode<synchronous>, transform_indices = @transform_3, window_bounds = array<i64: 1, 32>}, {pipeline_mode = #tpu.pipeline_mode<synchronous>, transform_indices = @transform_4, window_bounds = array<i64: 1, 32>}, {pipeline_mode = #tpu.pipeline_mode<synchronous>, transform_indices = @transform_5, window_bounds = array<i64: 2, 32, 16>}, {pipeline_mode = #tpu.pipeline_mode<synchronous>, transform_indices = @transform_6, window_bounds = array<i64: 2, 1, 16>}, {pipeline_mode = #tpu.pipeline_mode<synchronous>, transform_indices = @transform_7, window_bounds = array<i64: 2, 32, 16>}, {pipeline_mode = #tpu.pipeline_mode<synchronous>, transform_indices = @transform_8, window_bounds = array<i64: 2, 1, 16>}, {pipeline_mode = #tpu.pipeline_mode<synchronous>, transform_indices = @transform_9, window_bounds = array<i64: 2, 32, 16>}, {pipeline_mode = #tpu.pipeline_mode<synchronous>, transform_indices = @transform_10, window_bounds = array<i64: 2, 1, 16>}, {pipeline_mode = #tpu.pipeline_mode<synchronous>, transform_indices = @transform_11, window_bounds = array<i64: 2, 16, 32>}, {pipeline_mode = #tpu.pipeline_mode<synchronous>, transform_indices = @transform_12, window_bounds = array<i64: 1, 32>}, {transform_indices = @transform_13, window_bounds = array<i64: 1, 8, 32>}]} {
    %c0 = arith.constant 0 : index
    %c0_0 = arith.constant 0 : index
    %c0_1 = arith.constant 0 : index
    %0 = vector.load %arg1[%c0, %c0_0, %c0_1] : memref<1x8x32xf32, #tpu.memory_space<vmem>>, vector<1x8x32xf32>
    %1 = vector.shape_cast %0 : vector<1x8x32xf32> to vector<8x32xf32>
    %c0_2 = arith.constant 0 : index
    %c0_3 = arith.constant 0 : index
    %2 = vector.load %arg4[%c0_2, %c0_3] : memref<1x32xf32, #tpu.memory_space<vmem>>, vector<1x32xf32>
    %c0_4 = arith.constant 0 : index
    %c0_5 = arith.constant 0 : index
    %3 = vector.load %arg5[%c0_4, %c0_5] : memref<1x32xf32, #tpu.memory_space<vmem>>, vector<1x32xf32>
    %cst = arith.constant dense<0.000000e+00> : vector<8xf32>
    %4 = vector.multi_reduction <add>, %1, %cst [1] : vector<8x32xf32> to vector<8xf32>
    %5 = vector.shape_cast %4 : vector<8xf32> to vector<8x1xf32>
    %cst_6 = arith.constant 3.200000e+01 : f32
    %6 = vector.broadcast %cst_6 : f32 to vector<8x1xf32>
    %7 = arith.divf %5, %6 : vector<8x1xf32>
    %8 = vector.broadcast %7 : vector<8x1xf32> to vector<8x32xf32>
    %9 = arith.subf %1, %8 : vector<8x32xf32>
    %10 = arith.mulf %9, %9 : vector<8x32xf32>
    %cst_7 = arith.constant dense<0.000000e+00> : vector<8xf32>
    %11 = vector.multi_reduction <add>, %10, %cst_7 [1] : vector<8x32xf32> to vector<8xf32>
    %12 = vector.shape_cast %11 : vector<8xf32> to vector<8x1xf32>
    %cst_8 = arith.constant 3.200000e+01 : f32
    %13 = vector.broadcast %cst_8 : f32 to vector<8x1xf32>
    %14 = arith.divf %12, %13 : vector<8x1xf32>
    %15 = vector.broadcast %7 : vector<8x1xf32> to vector<8x32xf32>
    %16 = arith.subf %1, %15 : vector<8x32xf32>
    %cst_9 = arith.constant 9.99999974E-6 : f32
    %17 = vector.broadcast %cst_9 : f32 to vector<8x1xf32>
    %18 = arith.addf %14, %17 : vector<8x1xf32>
    %19 = math.rsqrt %18 : vector<8x1xf32>
    %20 = vector.broadcast %19 : vector<8x1xf32> to vector<8x32xf32>
    %21 = arith.mulf %16, %20 : vector<8x32xf32>
    %22 = vector.broadcast %2 : vector<1x32xf32> to vector<8x32xf32>
    %23 = arith.mulf %21, %22 : vector<8x32xf32>
    %24 = vector.broadcast %3 : vector<1x32xf32> to vector<8x32xf32>
    %25 = arith.addf %23, %24 : vector<8x32xf32>
    %c0_10 = arith.constant 0 : index
    %c0_11 = arith.constant 0 : index
    %c0_12 = arith.constant 0 : index
    %26 = vector.load %arg2[%c0_10, %c0_11, %c0_12] : memref<1x8x32xf32, #tpu.memory_space<vmem>>, vector<1x8x32xf32>
    %27 = vector.shape_cast %26 : vector<1x8x32xf32> to vector<8x32xf32>
    %c0_13 = arith.constant 0 : index
    %c0_14 = arith.constant 0 : index
    %c0_15 = arith.constant 0 : index
    %28 = vector.load %arg3[%c0_13, %c0_14, %c0_15] : memref<1x1x8xf32, #tpu.memory_space<vmem>>, vector<1x1x8xf32>
    %29 = vector.shape_cast %28 : vector<1x1x8xf32> to vector<1x8xf32>
    %30 = arith.truncf %25 : vector<8x32xf32> to vector<8x32xbf16>
    %31 = arith.truncf %27 : vector<8x32xf32> to vector<8x32xbf16>
    %c0_16 = arith.constant 0 : index
    %c0_17 = arith.constant 0 : index
    %32 = vector.load %arg13[%c0_16, %c0_17] : memref<1x32xf32, #tpu.memory_space<vmem>>, vector<1x32xf32>
    %33 = vector.broadcast %32 : vector<1x32xf32> to vector<8x32xf32>
    %34 = arith.addf %1, %33 : vector<8x32xf32>
    %c0_18 = arith.constant 0 : index
    %c0_19 = arith.constant 0 : index
    %c0_20 = arith.constant 0 : index
    %35 = vector.load %arg6[%c0_18, %c0_19, %c0_20] : memref<2x32x16xbf16, #tpu.memory_space<vmem>>, vector<1x32x16xbf16>
    %36 = vector.shape_cast %35 : vector<1x32x16xbf16> to vector<32x16xbf16>
    %cst_21 = arith.constant dense<0.000000e+00> : vector<8x16xf32>
    %37 = tpu.matmul %30, %36, %cst_21 {dimension_numbers = #tpu.dot_dimension_numbers<[1], [0], [0], [1], [0, 0, 1, 1], [], []>} : vector<8x32xbf16>, vector<32x16xbf16>, vector<8x16xf32> -> vector<8x16xf32>
    %c0_22 = arith.constant 0 : index
    %c0_23 = arith.constant 0 : index
    %c0_24 = arith.constant 0 : index
    %38 = vector.load %arg7[%c0_22, %c0_23, %c0_24] : memref<2x1x16xf32, #tpu.memory_space<vmem>>, vector<1x1x16xf32>
    %39 = vector.shape_cast %38 : vector<1x1x16xf32> to vector<1x16xf32>
    %40 = vector.broadcast %39 : vector<1x16xf32> to vector<8x16xf32>
    %41 = arith.addf %37, %40 : vector<8x16xf32>
    %c0_25 = arith.constant 0 : index
    %c0_26 = arith.constant 0 : index
    %c0_27 = arith.constant 0 : index
    %42 = vector.load %arg8[%c0_25, %c0_26, %c0_27] : memref<2x32x16xbf16, #tpu.memory_space<vmem>>, vector<1x32x16xbf16>
    %43 = vector.shape_cast %42 : vector<1x32x16xbf16> to vector<32x16xbf16>
    %cst_28 = arith.constant dense<0.000000e+00> : vector<8x16xf32>
    %44 = tpu.matmul %31, %43, %cst_28 {dimension_numbers = #tpu.dot_dimension_numbers<[1], [0], [0], [1], [0, 0, 1, 1], [], []>} : vector<8x32xbf16>, vector<32x16xbf16>, vector<8x16xf32> -> vector<8x16xf32>
    %c0_29 = arith.constant 0 : index
    %c0_30 = arith.constant 0 : index
    %c0_31 = arith.constant 0 : index
    %45 = vector.load %arg9[%c0_29, %c0_30, %c0_31] : memref<2x1x16xf32, #tpu.memory_space<vmem>>, vector<1x1x16xf32>
    %46 = vector.shape_cast %45 : vector<1x1x16xf32> to vector<1x16xf32>
    %47 = vector.broadcast %46 : vector<1x16xf32> to vector<8x16xf32>
    %48 = arith.addf %44, %47 : vector<8x16xf32>
    %c0_32 = arith.constant 0 : index
    %c0_33 = arith.constant 0 : index
    %c0_34 = arith.constant 0 : index
    %49 = vector.load %arg10[%c0_32, %c0_33, %c0_34] : memref<2x32x16xbf16, #tpu.memory_space<vmem>>, vector<1x32x16xbf16>
    %50 = vector.shape_cast %49 : vector<1x32x16xbf16> to vector<32x16xbf16>
    %cst_35 = arith.constant dense<0.000000e+00> : vector<8x16xf32>
    %51 = tpu.matmul %31, %50, %cst_35 {dimension_numbers = #tpu.dot_dimension_numbers<[1], [0], [0], [1], [0, 0, 1, 1], [], []>} : vector<8x32xbf16>, vector<32x16xbf16>, vector<8x16xf32> -> vector<8x16xf32>
    %c0_36 = arith.constant 0 : index
    %c0_37 = arith.constant 0 : index
    %c0_38 = arith.constant 0 : index
    %52 = vector.load %arg11[%c0_36, %c0_37, %c0_38] : memref<2x1x16xf32, #tpu.memory_space<vmem>>, vector<1x1x16xf32>
    %53 = vector.shape_cast %52 : vector<1x1x16xf32> to vector<1x16xf32>
    %54 = vector.broadcast %53 : vector<1x16xf32> to vector<8x16xf32>
    %55 = arith.addf %51, %54 : vector<8x16xf32>
    %56 = arith.truncf %41 : vector<8x16xf32> to vector<8x16xbf16>
    %57 = arith.truncf %48 : vector<8x16xf32> to vector<8x16xbf16>
    %cst_39 = arith.constant dense<0.000000e+00> : vector<8x8xf32>
    %58 = tpu.matmul %56, %57, %cst_39 {dimension_numbers = #tpu.dot_dimension_numbers<[1], [1], [0], [0], [0, 0, 1, 0], [], []>} : vector<8x16xbf16>, vector<8x16xbf16>, vector<8x8xf32> -> vector<8x8xf32>
    %cst_40 = arith.constant 2.500000e-01 : f32
    %59 = vector.broadcast %cst_40 : f32 to vector<8x8xf32>
    %60 = arith.mulf %58, %59 : vector<8x8xf32>
    %cst_41 = arith.constant 0.000000e+00 : f32
    %61 = vector.broadcast %cst_41 : f32 to vector<1x8xf32>
    %62 = arith.cmpf oeq, %29, %61 : vector<1x8xf32>
    %cst_42 = arith.constant -1.000000e+09 : f32
    %63 = vector.shape_cast %62 : vector<1x8xi1> to vector<1x8xi1>
    %64 = vector.broadcast %63 : vector<1x8xi1> to vector<8x8xi1>
    %65 = vector.broadcast %cst_42 : f32 to vector<8x8xf32>
    %66 = arith.select %64, %65, %60 : vector<8x8xi1>, vector<8x8xf32>
    %cst_43 = arith.constant dense<0xFF800000> : vector<8xf32>
    %67 = vector.multi_reduction <maximumf>, %66, %cst_43 [1] : vector<8x8xf32> to vector<8xf32>
    %68 = vector.shape_cast %67 : vector<8xf32> to vector<8x1xf32>
    %69 = vector.broadcast %68 : vector<8x1xf32> to vector<8x8xf32>
    %70 = arith.subf %66, %69 : vector<8x8xf32>
    %71 = math.exp %70 : vector<8x8xf32>
    %cst_44 = arith.constant dense<0.000000e+00> : vector<8xf32>
    %72 = vector.multi_reduction <add>, %71, %cst_44 [1] : vector<8x8xf32> to vector<8xf32>
    %73 = vector.shape_cast %72 : vector<8xf32> to vector<8x1xf32>
    %74 = tpu.reciprocal %73 {approx = true} : vector<8x1xf32> -> vector<8x1xf32>
    %75 = vector.broadcast %74 : vector<8x1xf32> to vector<8x8xf32>
    %76 = arith.mulf %71, %75 : vector<8x8xf32>
    %77 = arith.truncf %76 : vector<8x8xf32> to vector<8x8xbf16>
    %78 = arith.truncf %55 : vector<8x16xf32> to vector<8x16xbf16>
    %cst_45 = arith.constant dense<0.000000e+00> : vector<8x16xf32>
    %79 = tpu.matmul %77, %78, %cst_45 {dimension_numbers = #tpu.dot_dimension_numbers<[1], [0], [0], [1], [0, 0, 1, 1], [], []>} : vector<8x8xbf16>, vector<8x16xbf16>, vector<8x16xf32> -> vector<8x16xf32>
    %80 = arith.truncf %79 : vector<8x16xf32> to vector<8x16xbf16>
    %c0_46 = arith.constant 0 : index
    %c0_47 = arith.constant 0 : index
    %c0_48 = arith.constant 0 : index
    %81 = vector.load %arg12[%c0_46, %c0_47, %c0_48] : memref<2x16x32xbf16, #tpu.memory_space<vmem>>, vector<1x16x32xbf16>
    %82 = vector.shape_cast %81 : vector<1x16x32xbf16> to vector<16x32xbf16>
    %cst_49 = arith.constant dense<0.000000e+00> : vector<8x32xf32>
    %83 = tpu.matmul %80, %82, %cst_49 {dimension_numbers = #tpu.dot_dimension_numbers<[1], [0], [0], [1], [0, 0, 1, 1], [], []>} : vector<8x16xbf16>, vector<16x32xbf16>, vector<8x32xf32> -> vector<8x32xf32>
    %84 = arith.addf %34, %83 : vector<8x32xf32>
    %c1 = arith.constant 1 : index
    %c0_50 = arith.constant 0 : index
    %c0_51 = arith.constant 0 : index
    %85 = vector.load %arg6[%c1, %c0_50, %c0_51] : memref<2x32x16xbf16, #tpu.memory_space<vmem>>, vector<1x32x16xbf16>
    %86 = vector.shape_cast %85 : vector<1x32x16xbf16> to vector<32x16xbf16>
    %cst_52 = arith.constant dense<0.000000e+00> : vector<8x16xf32>
    %87 = tpu.matmul %30, %86, %cst_52 {dimension_numbers = #tpu.dot_dimension_numbers<[1], [0], [0], [1], [0, 0, 1, 1], [], []>} : vector<8x32xbf16>, vector<32x16xbf16>, vector<8x16xf32> -> vector<8x16xf32>
    %c1_53 = arith.constant 1 : index
    %c0_54 = arith.constant 0 : index
    %c0_55 = arith.constant 0 : index
    %88 = vector.load %arg7[%c1_53, %c0_54, %c0_55] : memref<2x1x16xf32, #tpu.memory_space<vmem>>, vector<1x1x16xf32>
    %89 = vector.shape_cast %88 : vector<1x1x16xf32> to vector<1x16xf32>
    %90 = vector.broadcast %89 : vector<1x16xf32> to vector<8x16xf32>
    %91 = arith.addf %87, %90 : vector<8x16xf32>
    %c1_56 = arith.constant 1 : index
    %c0_57 = arith.constant 0 : index
    %c0_58 = arith.constant 0 : index
    %92 = vector.load %arg8[%c1_56, %c0_57, %c0_58] : memref<2x32x16xbf16, #tpu.memory_space<vmem>>, vector<1x32x16xbf16>
    %93 = vector.shape_cast %92 : vector<1x32x16xbf16> to vector<32x16xbf16>
    %cst_59 = arith.constant dense<0.000000e+00> : vector<8x16xf32>
    %94 = tpu.matmul %31, %93, %cst_59 {dimension_numbers = #tpu.dot_dimension_numbers<[1], [0], [0], [1], [0, 0, 1, 1], [], []>} : vector<8x32xbf16>, vector<32x16xbf16>, vector<8x16xf32> -> vector<8x16xf32>
    %c1_60 = arith.constant 1 : index
    %c0_61 = arith.constant 0 : index
    %c0_62 = arith.constant 0 : index
    %95 = vector.load %arg9[%c1_60, %c0_61, %c0_62] : memref<2x1x16xf32, #tpu.memory_space<vmem>>, vector<1x1x16xf32>
    %96 = vector.shape_cast %95 : vector<1x1x16xf32> to vector<1x16xf32>
    %97 = vector.broadcast %96 : vector<1x16xf32> to vector<8x16xf32>
    %98 = arith.addf %94, %97 : vector<8x16xf32>
    %c1_63 = arith.constant 1 : index
    %c0_64 = arith.constant 0 : index
    %c0_65 = arith.constant 0 : index
    %99 = vector.load %arg10[%c1_63, %c0_64, %c0_65] : memref<2x32x16xbf16, #tpu.memory_space<vmem>>, vector<1x32x16xbf16>
    %100 = vector.shape_cast %99 : vector<1x32x16xbf16> to vector<32x16xbf16>
    %cst_66 = arith.constant dense<0.000000e+00> : vector<8x16xf32>
    %101 = tpu.matmul %31, %100, %cst_66 {dimension_numbers = #tpu.dot_dimension_numbers<[1], [0], [0], [1], [0, 0, 1, 1], [], []>} : vector<8x32xbf16>, vector<32x16xbf16>, vector<8x16xf32> -> vector<8x16xf32>
    %c1_67 = arith.constant 1 : index
    %c0_68 = arith.constant 0 : index
    %c0_69 = arith.constant 0 : index
    %102 = vector.load %arg11[%c1_67, %c0_68, %c0_69] : memref<2x1x16xf32, #tpu.memory_space<vmem>>, vector<1x1x16xf32>
    %103 = vector.shape_cast %102 : vector<1x1x16xf32> to vector<1x16xf32>
    %104 = vector.broadcast %103 : vector<1x16xf32> to vector<8x16xf32>
    %105 = arith.addf %101, %104 : vector<8x16xf32>
    %106 = arith.truncf %91 : vector<8x16xf32> to vector<8x16xbf16>
    %107 = arith.truncf %98 : vector<8x16xf32> to vector<8x16xbf16>
    %cst_70 = arith.constant dense<0.000000e+00> : vector<8x8xf32>
    %108 = tpu.matmul %106, %107, %cst_70 {dimension_numbers = #tpu.dot_dimension_numbers<[1], [1], [0], [0], [0, 0, 1, 0], [], []>} : vector<8x16xbf16>, vector<8x16xbf16>, vector<8x8xf32> -> vector<8x8xf32>
    %cst_71 = arith.constant 2.500000e-01 : f32
    %109 = vector.broadcast %cst_71 : f32 to vector<8x8xf32>
    %110 = arith.mulf %108, %109 : vector<8x8xf32>
    %cst_72 = arith.constant 0.000000e+00 : f32
    %111 = vector.broadcast %cst_72 : f32 to vector<1x8xf32>
    %112 = arith.cmpf oeq, %29, %111 : vector<1x8xf32>
    %cst_73 = arith.constant -1.000000e+09 : f32
    %113 = vector.shape_cast %112 : vector<1x8xi1> to vector<1x8xi1>
    %114 = vector.broadcast %113 : vector<1x8xi1> to vector<8x8xi1>
    %115 = vector.broadcast %cst_73 : f32 to vector<8x8xf32>
    %116 = arith.select %114, %115, %110 : vector<8x8xi1>, vector<8x8xf32>
    %cst_74 = arith.constant dense<0xFF800000> : vector<8xf32>
    %117 = vector.multi_reduction <maximumf>, %116, %cst_74 [1] : vector<8x8xf32> to vector<8xf32>
    %118 = vector.shape_cast %117 : vector<8xf32> to vector<8x1xf32>
    %119 = vector.broadcast %118 : vector<8x1xf32> to vector<8x8xf32>
    %120 = arith.subf %116, %119 : vector<8x8xf32>
    %121 = math.exp %120 : vector<8x8xf32>
    %cst_75 = arith.constant dense<0.000000e+00> : vector<8xf32>
    %122 = vector.multi_reduction <add>, %121, %cst_75 [1] : vector<8x8xf32> to vector<8xf32>
    %123 = vector.shape_cast %122 : vector<8xf32> to vector<8x1xf32>
    %124 = tpu.reciprocal %123 {approx = true} : vector<8x1xf32> -> vector<8x1xf32>
    %125 = vector.broadcast %124 : vector<8x1xf32> to vector<8x8xf32>
    %126 = arith.mulf %121, %125 : vector<8x8xf32>
    %127 = arith.truncf %126 : vector<8x8xf32> to vector<8x8xbf16>
    %128 = arith.truncf %105 : vector<8x16xf32> to vector<8x16xbf16>
    %cst_76 = arith.constant dense<0.000000e+00> : vector<8x16xf32>
    %129 = tpu.matmul %127, %128, %cst_76 {dimension_numbers = #tpu.dot_dimension_numbers<[1], [0], [0], [1], [0, 0, 1, 1], [], []>} : vector<8x8xbf16>, vector<8x16xbf16>, vector<8x16xf32> -> vector<8x16xf32>
    %130 = arith.truncf %129 : vector<8x16xf32> to vector<8x16xbf16>
    %c1_77 = arith.constant 1 : index
    %c0_78 = arith.constant 0 : index
    %c0_79 = arith.constant 0 : index
    %131 = vector.load %arg12[%c1_77, %c0_78, %c0_79] : memref<2x16x32xbf16, #tpu.memory_space<vmem>>, vector<1x16x32xbf16>
    %132 = vector.shape_cast %131 : vector<1x16x32xbf16> to vector<16x32xbf16>
    %cst_80 = arith.constant dense<0.000000e+00> : vector<8x32xf32>
    %133 = tpu.matmul %130, %132, %cst_80 {dimension_numbers = #tpu.dot_dimension_numbers<[1], [0], [0], [1], [0, 0, 1, 1], [], []>} : vector<8x16xbf16>, vector<16x32xbf16>, vector<8x32xf32> -> vector<8x32xf32>
    %134 = arith.addf %84, %133 : vector<8x32xf32>
    %c0_81 = arith.constant 0 : index
    %c0_82 = arith.constant 0 : index
    %c0_83 = arith.constant 0 : index
    %135 = vector.load %arg14[%c0_81, %c0_82, %c0_83] : memref<1x8x32xf32, #tpu.memory_space<vmem>>, vector<1x8x32xf32>
    %136 = vector.shape_cast %135 : vector<1x8x32xf32> to vector<8x32xf32>
    %137 = vector.shape_cast %134 : vector<8x32xf32> to vector<1x8x32xf32>
    tpu.vector_store %arg14[%c0_81, %c0_82, %c0_83], %137 {strides = array<i32>} : memref<1x8x32xf32, #tpu.memory_space<vmem>>, vector<1x8x32xf32>,
    return
  }
  func.func @transform_0(%arg0: i32) -> (i32, i32, i32) {
    %c0_i32 = arith.constant 0 : i32
    %c0_i32_0 = arith.constant 0 : i32
    %c0_i32_1 = arith.constant 0 : i32
    return %arg0, %c0_i32, %c0_i32_0 : i32, i32, i32
  }
  func.func @transform_1(%arg0: i32) -> (i32, i32, i32) {
    %c0_i32 = arith.constant 0 : i32
    %c0_i32_0 = arith.constant 0 : i32
    %c0_i32_1 = arith.constant 0 : i32
    return %arg0, %c0_i32, %c0_i32_0 : i32, i32, i32
  }
  func.func @transform_2(%arg0: i32) -> (i32, i32, i32) {
    %c0_i32 = arith.constant 0 : i32
    %c0_i32_0 = arith.constant 0 : i32
    %c0_i32_1 = arith.constant 0 : i32
    return %arg0, %c0_i32, %c0_i32_0 : i32, i32, i32
  }
  func.func @transform_3(%arg0: i32) -> (i32, i32) {
    %c0_i32 = arith.constant 0 : i32
    %c0_i32_0 = arith.constant 0 : i32
    %c0_i32_1 = arith.constant 0 : i32
    return %c0_i32, %c0_i32_0 : i32, i32
  }
  func.func @transform_4(%arg0: i32) -> (i32, i32) {
    %c0_i32 = arith.constant 0 : i32
    %c0_i32_0 = arith.constant 0 : i32
    %c0_i32_1 = arith.constant 0 : i32
    return %c0_i32, %c0_i32_0 : i32, i32
  }
  func.func @transform_5(%arg0: i32) -> (i32, i32, i32) {
    %c0_i32 = arith.constant 0 : i32
    %c0_i32_0 = arith.constant 0 : i32
    %c0_i32_1 = arith.constant 0 : i32
    %c0_i32_2 = arith.constant 0 : i32
    return %c0_i32, %c0_i32_0, %c0_i32_1 : i32, i32, i32
  }
  func.func @transform_6(%arg0: i32) -> (i32, i32, i32) {
    %c0_i32 = arith.constant 0 : i32
    %c0_i32_0 = arith.constant 0 : i32
    %c0_i32_1 = arith.constant 0 : i32
    %c0_i32_2 = arith.constant 0 : i32
    return %c0_i32, %c0_i32_0, %c0_i32_1 : i32, i32, i32
  }
  func.func @transform_7(%arg0: i32) -> (i32, i32, i32) {
    %c0_i32 = arith.constant 0 : i32
    %c0_i32_0 = arith.constant 0 : i32
    %c0_i32_1 = arith.constant 0 : i32
    %c0_i32_2 = arith.constant 0 : i32
    return %c0_i32, %c0_i32_0, %c0_i32_1 : i32, i32, i32
  }
  func.func @transform_8(%arg0: i32) -> (i32, i32, i32) {
    %c0_i32 = arith.constant 0 : i32
    %c0_i32_0 = arith.constant 0 : i32
    %c0_i32_1 = arith.constant 0 : i32
    %c0_i32_2 = arith.constant 0 : i32
    return %c0_i32, %c0_i32_0, %c0_i32_1 : i32, i32, i32
  }
  func.func @transform_9(%arg0: i32) -> (i32, i32, i32) {
    %c0_i32 = arith.constant 0 : i32
    %c0_i32_0 = arith.constant 0 : i32
    %c0_i32_1 = arith.constant 0 : i32
    %c0_i32_2 = arith.constant 0 : i32
    return %c0_i32, %c0_i32_0, %c0_i32_1 : i32, i32, i32
  }
  func.func @transform_10(%arg0: i32) -> (i32, i32, i32) {
    %c0_i32 = arith.constant 0 : i32
    %c0_i32_0 = arith.constant 0 : i32
    %c0_i32_1 = arith.constant 0 : i32
    %c0_i32_2 = arith.constant 0 : i32
    return %c0_i32, %c0_i32_0, %c0_i32_1 : i32, i32, i32
  }
  func.func @transform_11(%arg0: i32) -> (i32, i32, i32) {
    %c0_i32 = arith.constant 0 : i32
    %c0_i32_0 = arith.constant 0 : i32
    %c0_i32_1 = arith.constant 0 : i32
    %c0_i32_2 = arith.constant 0 : i32
    return %c0_i32, %c0_i32_0, %c0_i32_1 : i32, i32, i32
  }
  func.func @transform_12(%arg0: i32) -> (i32, i32) {
    %c0_i32 = arith.constant 0 : i32
    %c0_i32_0 = arith.constant 0 : i32
    %c0_i32_1 = arith.constant 0 : i32
    return %c0_i32, %c0_i32_0 : i32, i32
  }
  func.func @transform_13(%arg0: i32) -> (i32, i32, i32) {
    %c0_i32 = arith.constant 0 : i32
    %c0_i32_0 = arith.constant 0 : i32
    %c0_i32_1 = arith.constant 0 : i32
    return %arg0, %c0_i32, %c0_i32_0 : i32, i32, i32
  }
}

module attributes {stable_mosaic.version = 11 : i64} {
  func.func @_ffn_kernel(%arg0: i32, %arg1: i32, %arg2: memref<1x8x32xf32, #tpu.memory_space<vmem>>, %arg3: memref<1x32xf32, #tpu.memory_space<vmem>>, %arg4: memref<1x32xf32, #tpu.memory_space<vmem>>, %arg5: memref<32x64xbf16, #tpu.memory_space<vmem>>, %arg6: memref<1x64xf32, #tpu.memory_space<vmem>>, %arg7: memref<64x32xbf16, #tpu.memory_space<vmem>>, %arg8: memref<1x32xf32, #tpu.memory_space<vmem>>, %arg9: memref<1x8x32xf32, #tpu.memory_space<vmem>>) attributes {dimension_semantics = [#tpu.dimension_semantics<parallel>, #tpu.dimension_semantics<parallel>], iteration_bounds = array<i64: 2, 1>, scalar_prefetch = 0 : i64, scratch_operands = 0 : i64, tpu.core_type = #tpu.core_type<tc>, window_params = [{transform_indices = @transform_0, window_bounds = array<i64: 1, 8, 32>}, {pipeline_mode = #tpu.pipeline_mode<synchronous>, transform_indices = @transform_1, window_bounds = array<i64: 1, 32>}, {pipeline_mode = #tpu.pipeline_mode<synchronous>, transform_indices = @transform_2, window_bounds = array<i64: 1, 32>}, {pipeline_mode = #tpu.pipeline_mode<synchronous>, transform_indices = @transform_3, window_bounds = array<i64: 32, 64>}, {pipeline_mode = #tpu.pipeline_mode<synchronous>, transform_indices = @transform_4, window_bounds = array<i64: 1, 64>}, {pipeline_mode = #tpu.pipeline_mode<synchronous>, transform_indices = @transform_5, window_bounds = array<i64: 64, 32>}, {pipeline_mode = #tpu.pipeline_mode<synchronous>, transform_indices = @transform_6, window_bounds = array<i64: 1, 32>}, {transform_indices = @transform_7, window_bounds = array<i64: 1, 8, 32>}]} {
    %c0 = arith.constant 0 : index
    %c0_0 = arith.constant 0 : index
    %c0_1 = arith.constant 0 : index
    %0 = vector.load %arg2[%c0, %c0_0, %c0_1] : memref<1x8x32xf32, #tpu.memory_space<vmem>>, vector<1x8x32xf32>
    %1 = vector.shape_cast %0 : vector<1x8x32xf32> to vector<8x32xf32>
    %c0_2 = arith.constant 0 : index
    %c0_3 = arith.constant 0 : index
    %2 = vector.load %arg3[%c0_2, %c0_3] : memref<1x32xf32, #tpu.memory_space<vmem>>, vector<1x32xf32>
    %c0_4 = arith.constant 0 : index
    %c0_5 = arith.constant 0 : index
    %3 = vector.load %arg4[%c0_4, %c0_5] : memref<1x32xf32, #tpu.memory_space<vmem>>, vector<1x32xf32>
    %cst = arith.constant dense<0.000000e+00> : vector<8xf32>
    %4 = vector.multi_reduction <add>, %1, %cst [1] : vector<8x32xf32> to vector<8xf32>
    %5 = vector.shape_cast %4 : vector<8xf32> to vector<8x1xf32>
    %cst_6 = arith.constant 3.200000e+01 : f32
    %6 = vector.broadcast %cst_6 : f32 to vector<8x1xf32>
    %7 = arith.divf %5, %6 : vector<8x1xf32>
    %8 = vector.broadcast %7 : vector<8x1xf32> to vector<8x32xf32>
    %9 = arith.subf %1, %8 : vector<8x32xf32>
    %10 = arith.mulf %9, %9 : vector<8x32xf32>
    %cst_7 = arith.constant dense<0.000000e+00> : vector<8xf32>
    %11 = vector.multi_reduction <add>, %10, %cst_7 [1] : vector<8x32xf32> to vector<8xf32>
    %12 = vector.shape_cast %11 : vector<8xf32> to vector<8x1xf32>
    %cst_8 = arith.constant 3.200000e+01 : f32
    %13 = vector.broadcast %cst_8 : f32 to vector<8x1xf32>
    %14 = arith.divf %12, %13 : vector<8x1xf32>
    %15 = vector.broadcast %7 : vector<8x1xf32> to vector<8x32xf32>
    %16 = arith.subf %1, %15 : vector<8x32xf32>
    %cst_9 = arith.constant 9.99999974E-6 : f32
    %17 = vector.broadcast %cst_9 : f32 to vector<8x1xf32>
    %18 = arith.addf %14, %17 : vector<8x1xf32>
    %19 = math.rsqrt %18 : vector<8x1xf32>
    %20 = vector.broadcast %19 : vector<8x1xf32> to vector<8x32xf32>
    %21 = arith.mulf %16, %20 : vector<8x32xf32>
    %22 = vector.broadcast %2 : vector<1x32xf32> to vector<8x32xf32>
    %23 = arith.mulf %21, %22 : vector<8x32xf32>
    %24 = vector.broadcast %3 : vector<1x32xf32> to vector<8x32xf32>
    %25 = arith.addf %23, %24 : vector<8x32xf32>
    %26 = arith.truncf %25 : vector<8x32xf32> to vector<8x32xbf16>
    %c0_10 = arith.constant 0 : index
    %c0_11 = arith.constant 0 : index
    %27 = vector.load %arg5[%c0_10, %c0_11] : memref<32x64xbf16, #tpu.memory_space<vmem>>, vector<32x64xbf16>
    %cst_12 = arith.constant dense<0.000000e+00> : vector<8x64xf32>
    %28 = tpu.matmul %26, %27, %cst_12 {dimension_numbers = #tpu.dot_dimension_numbers<[1], [0], [0], [1], [0, 0, 1, 1], [], []>} : vector<8x32xbf16>, vector<32x64xbf16>, vector<8x64xf32> -> vector<8x64xf32>
    %c0_13 = arith.constant 0 : index
    %c0_14 = arith.constant 0 : index
    %29 = vector.load %arg6[%c0_13, %c0_14] : memref<1x64xf32, #tpu.memory_space<vmem>>, vector<1x64xf32>
    %30 = vector.broadcast %29 : vector<1x64xf32> to vector<8x64xf32>
    %31 = arith.addf %28, %30 : vector<8x64xf32>
    %cst_15 = arith.constant 0.000000e+00 : f32
    %32 = vector.broadcast %cst_15 : f32 to vector<8x64xf32>
    %33 = arith.maximumf %31, %32 : vector<8x64xf32>
    %34 = arith.truncf %33 : vector<8x64xf32> to vector<8x64xbf16>
    %c0_16 = arith.constant 0 : index
    %c0_17 = arith.constant 0 : index
    %35 = vector.load %arg7[%c0_16, %c0_17] : memref<64x32xbf16, #tpu.memory_space<vmem>>, vector<64x32xbf16>
    %cst_18 = arith.constant dense<0.000000e+00> : vector<8x32xf32>
    %36 = tpu.matmul %34, %35, %cst_18 {dimension_numbers = #tpu.dot_dimension_numbers<[1], [0], [0], [1], [0, 0, 1, 1], [], []>} : vector<8x64xbf16>, vector<64x32xbf16>, vector<8x32xf32> -> vector<8x32xf32>
    %c0_19 = arith.constant 0 : index
    %c0_20 = arith.constant 0 : index
    %37 = vector.load %arg8[%c0_19, %c0_20] : memref<1x32xf32, #tpu.memory_space<vmem>>, vector<1x32xf32>
    %38 = vector.broadcast %37 : vector<1x32xf32> to vector<8x32xf32>
    %39 = arith.addf %36, %38 : vector<8x32xf32>
    %40 = arith.addf %1, %39 : vector<8x32xf32>
    %c0_21 = arith.constant 0 : index
    %c0_22 = arith.constant 0 : index
    %c0_23 = arith.constant 0 : index
    %41 = vector.load %arg9[%c0_21, %c0_22, %c0_23] : memref<1x8x32xf32, #tpu.memory_space<vmem>>, vector<1x8x32xf32>
    %42 = vector.shape_cast %41 : vector<1x8x32xf32> to vector<8x32xf32>
    %43 = vector.shape_cast %40 : vector<8x32xf32> to vector<1x8x32xf32>
    tpu.vector_store %arg9[%c0_21, %c0_22, %c0_23], %43 {strides = array<i32>} : memref<1x8x32xf32, #tpu.memory_space<vmem>>, vector<1x8x32xf32>,
    return
  }
  func.func @transform_0(%arg0: i32, %arg1: i32) -> (i32, i32, i32) {
    %c0_i32 = arith.constant 0 : i32
    %c0_i32_0 = arith.constant 0 : i32
    return %arg0, %arg1, %c0_i32 : i32, i32, i32
  }
  func.func @transform_1(%arg0: i32, %arg1: i32) -> (i32, i32) {
    %c0_i32 = arith.constant 0 : i32
    %c0_i32_0 = arith.constant 0 : i32
    %c0_i32_1 = arith.constant 0 : i32
    return %c0_i32, %c0_i32_0 : i32, i32
  }
  func.func @transform_2(%arg0: i32, %arg1: i32) -> (i32, i32) {
    %c0_i32 = arith.constant 0 : i32
    %c0_i32_0 = arith.constant 0 : i32
    %c0_i32_1 = arith.constant 0 : i32
    return %c0_i32, %c0_i32_0 : i32, i32
  }
  func.func @transform_3(%arg0: i32, %arg1: i32) -> (i32, i32) {
    %c0_i32 = arith.constant 0 : i32
    %c0_i32_0 = arith.constant 0 : i32
    %c0_i32_1 = arith.constant 0 : i32
    return %c0_i32, %c0_i32_0 : i32, i32
  }
  func.func @transform_4(%arg0: i32, %arg1: i32) -> (i32, i32) {
    %c0_i32 = arith.constant 0 : i32
    %c0_i32_0 = arith.constant 0 : i32
    %c0_i32_1 = arith.constant 0 : i32
    return %c0_i32, %c0_i32_0 : i32, i32
  }
  func.func @transform_5(%arg0: i32, %arg1: i32) -> (i32, i32) {
    %c0_i32 = arith.constant 0 : i32
    %c0_i32_0 = arith.constant 0 : i32
    %c0_i32_1 = arith.constant 0 : i32
    return %c0_i32, %c0_i32_0 : i32, i32
  }
  func.func @transform_6(%arg0: i32, %arg1: i32) -> (i32, i32) {
    %c0_i32 = arith.constant 0 : i32
    %c0_i32_0 = arith.constant 0 : i32
    %c0_i32_1 = arith.constant 0 : i32
    return %c0_i32, %c0_i32_0 : i32, i32
  }
  func.func @transform_7(%arg0: i32, %arg1: i32) -> (i32, i32, i32) {
    %c0_i32 = arith.constant 0 : i32
    %c0_i32_0 = arith.constant 0 : i32
    return %arg0, %arg1, %c0_i32 : i32, i32, i32
  }
}

module attributes {stable_mosaic.version = 11 : i64} {
  func.func @_ffn_kernel(%arg0: i32, %arg1: i32, %arg2: memref<1x8x32xf32, #tpu.memory_space<vmem>>, %arg3: memref<1x32xf32, #tpu.memory_space<vmem>>, %arg4: memref<1x32xf32, #tpu.memory_space<vmem>>, %arg5: memref<32x64xbf16, #tpu.memory_space<vmem>>, %arg6: memref<1x64xf32, #tpu.memory_space<vmem>>, %arg7: memref<64x32xbf16, #tpu.memory_space<vmem>>, %arg8: memref<1x32xf32, #tpu.memory_space<vmem>>, %arg9: memref<1x8x32xf32, #tpu.memory_space<vmem>>) attributes {dimension_semantics = [#tpu.dimension_semantics<parallel>, #tpu.dimension_semantics<parallel>], iteration_bounds = array<i64: 2, 1>, scalar_prefetch = 0 : i64, scratch_operands = 0 : i64, tpu.core_type = #tpu.core_type<tc>, window_params = [{transform_indices = @transform_0, window_bounds = array<i64: 1, 8, 32>}, {pipeline_mode = #tpu.pipeline_mode<synchronous>, transform_indices = @transform_1, window_bounds = array<i64: 1, 32>}, {pipeline_mode = #tpu.pipeline_mode<synchronous>, transform_indices = @transform_2, window_bounds = array<i64: 1, 32>}, {pipeline_mode = #tpu.pipeline_mode<synchronous>, transform_indices = @transform_3, window_bounds = array<i64: 32, 64>}, {pipeline_mode = #tpu.pipeline_mode<synchronous>, transform_indices = @transform_4, window_bounds = array<i64: 1, 64>}, {pipeline_mode = #tpu.pipeline_mode<synchronous>, transform_indices = @transform_5, window_bounds = array<i64: 64, 32>}, {pipeline_mode = #tpu.pipeline_mode<synchronous>, transform_indices = @transform_6, window_bounds = array<i64: 1, 32>}, {transform_indices = @transform_7, window_bounds = array<i64: 1, 8, 32>}]} {
    %c0 = arith.constant 0 : index
    %c0_0 = arith.constant 0 : index
    %c0_1 = arith.constant 0 : index
    %0 = vector.load %arg2[%c0, %c0_0, %c0_1] : memref<1x8x32xf32, #tpu.memory_space<vmem>>, vector<1x8x32xf32>
    %1 = vector.shape_cast %0 : vector<1x8x32xf32> to vector<8x32xf32>
    %c0_2 = arith.constant 0 : index
    %c0_3 = arith.constant 0 : index
    %2 = vector.load %arg3[%c0_2, %c0_3] : memref<1x32xf32, #tpu.memory_space<vmem>>, vector<1x32xf32>
    %c0_4 = arith.constant 0 : index
    %c0_5 = arith.constant 0 : index
    %3 = vector.load %arg4[%c0_4, %c0_5] : memref<1x32xf32, #tpu.memory_space<vmem>>, vector<1x32xf32>
    %cst = arith.constant dense<0.000000e+00> : vector<8xf32>
    %4 = vector.multi_reduction <add>, %1, %cst [1] : vector<8x32xf32> to vector<8xf32>
    %5 = vector.shape_cast %4 : vector<8xf32> to vector<8x1xf32>
    %cst_6 = arith.constant 3.200000e+01 : f32
    %6 = vector.broadcast %cst_6 : f32 to vector<8x1xf32>
    %7 = arith.divf %5, %6 : vector<8x1xf32>
    %8 = vector.broadcast %7 : vector<8x1xf32> to vector<8x32xf32>
    %9 = arith.subf %1, %8 : vector<8x32xf32>
    %10 = arith.mulf %9, %9 : vector<8x32xf32>
    %cst_7 = arith.constant dense<0.000000e+00> : vector<8xf32>
    %11 = vector.multi_reduction <add>, %10, %cst_7 [1] : vector<8x32xf32> to vector<8xf32>
    %12 = vector.shape_cast %11 : vector<8xf32> to vector<8x1xf32>
    %cst_8 = arith.constant 3.200000e+01 : f32
    %13 = vector.broadcast %cst_8 : f32 to vector<8x1xf32>
    %14 = arith.divf %12, %13 : vector<8x1xf32>
    %15 = vector.broadcast %7 : vector<8x1xf32> to vector<8x32xf32>
    %16 = arith.subf %1, %15 : vector<8x32xf32>
    %cst_9 = arith.constant 9.99999974E-6 : f32
    %17 = vector.broadcast %cst_9 : f32 to vector<8x1xf32>
    %18 = arith.addf %14, %17 : vector<8x1xf32>
    %19 = math.rsqrt %18 : vector<8x1xf32>
    %20 = vector.broadcast %19 : vector<8x1xf32> to vector<8x32xf32>
    %21 = arith.mulf %16, %20 : vector<8x32xf32>
    %22 = vector.broadcast %2 : vector<1x32xf32> to vector<8x32xf32>
    %23 = arith.mulf %21, %22 : vector<8x32xf32>
    %24 = vector.broadcast %3 : vector<1x32xf32> to vector<8x32xf32>
    %25 = arith.addf %23, %24 : vector<8x32xf32>
    %26 = arith.truncf %25 : vector<8x32xf32> to vector<8x32xbf16>
    %c0_10 = arith.constant 0 : index
    %c0_11 = arith.constant 0 : index
    %27 = vector.load %arg5[%c0_10, %c0_11] : memref<32x64xbf16, #tpu.memory_space<vmem>>, vector<32x64xbf16>
    %cst_12 = arith.constant dense<0.000000e+00> : vector<8x64xf32>
    %28 = tpu.matmul %26, %27, %cst_12 {dimension_numbers = #tpu.dot_dimension_numbers<[1], [0], [0], [1], [0, 0, 1, 1], [], []>} : vector<8x32xbf16>, vector<32x64xbf16>, vector<8x64xf32> -> vector<8x64xf32>
    %c0_13 = arith.constant 0 : index
    %c0_14 = arith.constant 0 : index
    %29 = vector.load %arg6[%c0_13, %c0_14] : memref<1x64xf32, #tpu.memory_space<vmem>>, vector<1x64xf32>
    %30 = vector.broadcast %29 : vector<1x64xf32> to vector<8x64xf32>
    %31 = arith.addf %28, %30 : vector<8x64xf32>
    %cst_15 = arith.constant 0.000000e+00 : f32
    %32 = vector.broadcast %cst_15 : f32 to vector<8x64xf32>
    %33 = arith.maximumf %31, %32 : vector<8x64xf32>
    %34 = arith.truncf %33 : vector<8x64xf32> to vector<8x64xbf16>
    %c0_16 = arith.constant 0 : index
    %c0_17 = arith.constant 0 : index
    %35 = vector.load %arg7[%c0_16, %c0_17] : memref<64x32xbf16, #tpu.memory_space<vmem>>, vector<64x32xbf16>
    %cst_18 = arith.constant dense<0.000000e+00> : vector<8x32xf32>
    %36 = tpu.matmul %34, %35, %cst_18 {dimension_numbers = #tpu.dot_dimension_numbers<[1], [0], [0], [1], [0, 0, 1, 1], [], []>} : vector<8x64xbf16>, vector<64x32xbf16>, vector<8x32xf32> -> vector<8x32xf32>
    %c0_19 = arith.constant 0 : index
    %c0_20 = arith.constant 0 : index
    %37 = vector.load %arg8[%c0_19, %c0_20] : memref<1x32xf32, #tpu.memory_space<vmem>>, vector<1x32xf32>
    %38 = vector.broadcast %37 : vector<1x32xf32> to vector<8x32xf32>
    %39 = arith.addf %36, %38 : vector<8x32xf32>
    %40 = arith.addf %1, %39 : vector<8x32xf32>
    %c0_21 = arith.constant 0 : index
    %c0_22 = arith.constant 0 : index
    %c0_23 = arith.constant 0 : index
    %41 = vector.load %arg9[%c0_21, %c0_22, %c0_23] : memref<1x8x32xf32, #tpu.memory_space<vmem>>, vector<1x8x32xf32>
    %42 = vector.shape_cast %41 : vector<1x8x32xf32> to vector<8x32xf32>
    %43 = vector.shape_cast %40 : vector<8x32xf32> to vector<1x8x32xf32>
    tpu.vector_store %arg9[%c0_21, %c0_22, %c0_23], %43 {strides = array<i32>} : memref<1x8x32xf32, #tpu.memory_space<vmem>>, vector<1x8x32xf32>,
    return
  }
  func.func @transform_0(%arg0: i32, %arg1: i32) -> (i32, i32, i32) {
    %c0_i32 = arith.constant 0 : i32
    %c0_i32_0 = arith.constant 0 : i32
    return %arg0, %arg1, %c0_i32 : i32, i32, i32
  }
  func.func @transform_1(%arg0: i32, %arg1: i32) -> (i32, i32) {
    %c0_i32 = arith.constant 0 : i32
    %c0_i32_0 = arith.constant 0 : i32
    %c0_i32_1 = arith.constant 0 : i32
    return %c0_i32, %c0_i32_0 : i32, i32
  }
  func.func @transform_2(%arg0: i32, %arg1: i32) -> (i32, i32) {
    %c0_i32 = arith.constant 0 : i32
    %c0_i32_0 = arith.constant 0 : i32
    %c0_i32_1 = arith.constant 0 : i32
    return %c0_i32, %c0_i32_0 : i32, i32
  }
  func.func @transform_3(%arg0: i32, %arg1: i32) -> (i32, i32) {
    %c0_i32 = arith.constant 0 : i32
    %c0_i32_0 = arith.constant 0 : i32
    %c0_i32_1 = arith.constant 0 : i32
    return %c0_i32, %c0_i32_0 : i32, i32
  }
  func.func @transform_4(%arg0: i32, %arg1: i32) -> (i32, i32) {
    %c0_i32 = arith.constant 0 : i32
    %c0_i32_0 = arith.constant 0 : i32
    %c0_i32_1 = arith.constant 0 : i32
    return %c0_i32, %c0_i32_0 : i32, i32
  }
  func.func @transform_5(%arg0: i32, %arg1: i32) -> (i32, i32) {
    %c0_i32 = arith.constant 0 : i32
    %c0_i32_0 = arith.constant 0 : i32
    %c0_i32_1 = arith.constant 0 : i32
    return %c0_i32, %c0_i32_0 : i32, i32
  }
  func.func @transform_6(%arg0: i32, %arg1: i32) -> (i32, i32) {
    %c0_i32 = arith.constant 0 : i32
    %c0_i32_0 = arith.constant 0 : i32
    %c0_i32_1 = arith.constant 0 : i32
    return %c0_i32, %c0_i32_0 : i32, i32
  }
  func.func @transform_7(%arg0: i32, %arg1: i32) -> (i32, i32, i32) {
    %c0_i32 = arith.constant 0 : i32
    %c0_i32_0 = arith.constant 0 : i32
    return %arg0, %arg1, %c0_i32 : i32, i32, i32
  }
}

</mosaic_0001>

<llo_original>
// kernel: decoder_forward.7
$region0: #{decoder_forward.7}
  #allocation0 [shape = 'u32[]', space=smem, size = 0x4, offset = 0x4, fixed_abs, tag = 'smem constant byte address 0x4 - core index']
  #allocation1 [shape = 'u32[144,128]{1,0:T(1,128)}', space=vmem, size = 0x12000, scoped, tag = 'internal scratch']
  %s0 = inlined_call_operand.vmem [shape: f32[2,8,32], index: 0, kind: input, shape index: {}, may-alias: {0,2}]
  %s1 = inlined_call_operand.vmem [shape: f32[1,8,32], index: 1, kind: input, shape index: {}]
  %s2 = inlined_call_operand.vmem [shape: f32[2,8,32], index: 2, kind: output, shape index: {}, may-alias: {0,2}]
  %s3 = sld [smem:[#allocation0]]
  $region41: #{decoder_forward.7} parent=0
    _
  %s5 = ssub.s32 1, %s3
  %s6 = scalar_select 0, %s5, %s3
  loop: start=0, step=1, limit=4
  $region2: #{decoder_forward.7} parent=0 // loop_pre_header
    _
  $region3: #{decoder_forward.7} parent=0 // loop_header
    %s8 = sphi 0, %s12
    %p9 = scmp.ge.s32.totalorder %s8, 4
    %s18 = sphi 0, %s20
    %s21 = sphi 0, %s18
    %s22 = sphi 0, %s21
    %s38 = sphi 0, %s22
    %s42 = sphi 0, %s42
    %s44 = sphi 0, %s42
    %s45 = sphi 0, %s44
    %s59 = sphi 0, %s45
    %s65 = sphi 0, %s67
    %s68 = sphi 0, %s65
    %s69 = sphi 0, %s68
    %s85 = sphi 0, %s69
  $region4: #{decoder_forward.7} parent=0 // loop_header_branch
    %11 = sbr.rel (%p9) target = $region8
  $region5: #{decoder_forward.7} parent=0 // loop_body
    %s13 = ssub.s32 %s8, 1
    %s14 = ssub.s32 %s8, 2
    %s15 = sadd.s32 %s8, 1
    %s16 = ssub.s32 %s8, %s15
    %p17 = scmp.eq.s32.totalorder %s16, 0
    %s19 = sadd.s32 %s18, 1
    %s20 = scalar_select %p17, %s18, %s19
    %p23 = pneg %p17
    %p24 = scmp.eq.s32.totalorder %s8, 1
    %p25 = por %p23, %p24
    %p26 = scmp.ne.s32.totalorder %s18, %s21
    %p27 = scmp.eq.s32.totalorder %s8, 0
    %p28 = por %p26, %p27
    %p29 = scmp.ne.s32.totalorder %s18, %s21
    %p30 = scmp.eq.s32.totalorder %s13, 1
    %p31 = por %p29, %p30
    %p32 = scmp.ne.s32.totalorder %s21, %s22
    %p33 = scmp.eq.s32.totalorder %s13, 0
    %p34 = por %p32, %p33
    %p35 = scmp.ne.s32.totalorder %s21, %s22
    %p36 = scmp.eq.s32.totalorder %s14, 1
    %p37 = por %p35, %p36
    %p39 = scmp.ne.s32.totalorder %s22, %s38
    %p40 = scmp.eq.s32.totalorder %s14, 0
    %p41 = por %p39, %p40
    %s43 = sadd.s32 %s42, 1
    %p46 = scmp.eq.s32.totalorder %s8, 1
    %p47 = scmp.ne.s32.totalorder %s42, %s44
    %p48 = scmp.eq.s32.totalorder %s8, 0
    %p49 = por %p47, %p48
    %p50 = scmp.ne.s32.totalorder %s42, %s44
    %p51 = scmp.eq.s32.totalorder %s13, 1
    %p52 = por %p50, %p51
    %p53 = scmp.ne.s32.totalorder %s44, %s45
    %p54 = scmp.eq.s32.totalorder %s13, 0
    %p55 = por %p53, %p54
    %p56 = scmp.ne.s32.totalorder %s44, %s45
    %p57 = scmp.eq.s32.totalorder %s14, 1
    %p58 = por %p56, %p57
    %p60 = scmp.ne.s32.totalorder %s45, %s59
    %p61 = scmp.eq.s32.totalorder %s14, 0
    %p62 = por %p60, %p61
    %s63 = ssub.s32 %s8, %s15
    %p64 = scmp.eq.s32.totalorder %s63, 0
    %s66 = sadd.s32 %s65, 1
    %s67 = scalar_select %p64, %s65, %s66
    %p70 = pneg %p64
    %p71 = scmp.eq.s32.totalorder %s8, 1
    %p72 = por %p70, %p71
    %p73 = scmp.ne.s32.totalorder %s65, %s68
    %p74 = scmp.eq.s32.totalorder %s8, 0
    %p75 = por %p73, %p74
    %p76 = scmp.ne.s32.totalorder %s65, %s68
    %p77 = scmp.eq.s32.totalorder %s13, 1
    %p78 = por %p76, %p77
    %p79 = scmp.ne.s32.totalorder %s68, %s69
    %p80 = scmp.eq.s32.totalorder %s13, 0
    %p81 = por %p79, %p80
    %p82 = scmp.ne.s32.totalorder %s68, %s69
    %p83 = scmp.eq.s32.totalorder %s14, 1
    %p84 = por %p82, %p83
    %p86 = scmp.ne.s32.totalorder %s69, %s85
    %p87 = scmp.eq.s32.totalorder %s14, 0
    %p88 = por %p86, %p87
    %p89 = scmp.le.s32.totalorder 1, %s8
    %p90 = scmp.lt.s32.totalorder %s8, 3
    %p91 = pnand %p89, %p90
    %p92 = pneg %p91
    // Predicated region
    $region9: #{decoder_forward.7} parent=5 // pred_check
      _
    $region10: #{decoder_forward.7} parent=5 // pred_check_branch
      %94 = sbr.rel (%p91) target = $region12
    $region11: #{decoder_forward.7} parent=5 // pred_region
      %s95 = ssub.s32 %s8, 1
      // Predicated region
      $region13: #{decoder_forward.7} parent=11 // pred_check
        %p96 = pneg %p55
      $region14: #{decoder_forward.7} parent=11 // pred_check_branch
        %98 = sbr.rel (%p96) target = $region16
      $region15: #{decoder_forward.7} parent=11 // pred_region
        _
      $region16: #{decoder_forward.7} parent=11 // pred_fallthru
        _
    $region12: #{decoder_forward.7} parent=5 // pred_fallthru
      _
    %p99 = scmp.lt.s32.totalorder %s8, 2
    // Predicated region
    $region17: #{decoder_forward.7} parent=5 // pred_check
      %p100 = pneg %p99
    $region18: #{decoder_forward.7} parent=5 // pred_check_branch
      %102 = sbr.rel (%p100) target = $region20
    $region19: #{decoder_forward.7} parent=5 // pred_region
      // Predicated region
      $region21: #{decoder_forward.7} parent=19 // pred_check
        %p103 = pneg %p28
      $region22: #{decoder_forward.7} parent=19 // pred_check_branch
        %105 = sbr.rel (%p103) target = $region24
      $region23: #{decoder_forward.7} parent=19 // pred_region
        %p106 = scmp.lt.s32.totalorder %s8, 1
        %s107 = scalar_select %p106, %s8, 1
        %s108 = smul.addr %s107, 8
        %s109 = scalar_lea.vmem %s0, %s108
      $region24: #{decoder_forward.7} parent=19 // pred_fallthru
        _
    $region20: #{decoder_forward.7} parent=5 // pred_fallthru
      _
    %p110 = scmp.le.s32.totalorder 1, %s8
    %p111 = scmp.lt.s32.totalorder %s8, 3
    %p112 = pnand %p110, %p111
    %p113 = pneg %p112
    // Predicated region
    $region25: #{decoder_forward.7} parent=5 // pred_check
      _
    $region26: #{decoder_forward.7} parent=5 // pred_check_branch
      %115 = sbr.rel (%p112) target = $region28
    $region27: #{decoder_forward.7} parent=5 // pred_region
      %s116 = ssub.s32 %s8, 1
      %p117 = scmp.lt.s32.totalorder %s13, 1
      %s118 = scalar_select %p117, %s13, 1
      %s119 = smul.addr %s118, 8
      %s120 = scalar_lea.vmem %s0, %s119
      %p121 = pneg %p34
      %p122 = pneg %p31
      %p123 = pneg %p55
      %p124 = pneg %p52
      %p125 = pneg %p81
      %p126 = pneg %p78
      %p127 = scmp.lt.s32.totalorder %s13, 1
      %s128 = scalar_select %p127, %s13, 1
      %s129 = smul.addr %s128, 8
      %s130 = scalar_lea.vmem %s2, %s129
      %p131 = scmp.lt.s32.totalorder %s13, 1
      %s132 = scalar_select %p131, %s13, 1
      %s133 = smul.addr %s132, 8
      %s134 = scalar_lea.vmem %s0, %s133
      %p135 = scmp.lt.s32.totalorder %s13, 1
      %s136 = scalar_select %p135, %s13, 1
      %s137 = smul.addr %s136, 8
      %s138 = scalar_lea.vmem %s2, %s137
      %v139 = vld [vmem:[%s134] sm:$0xff]
      %v140 = vmul.f32 %v139, 5.656854
      %v141 = vld [vmem:[%s1] sm:$0xff]
      %v142 = vadd.f32 %v140, %v141
      %vm143 = vcmask 261120
      %144 = vst.msk [vmem:[%s138] sm:$0xff] %vm143, %v142
      %p145 = scmp.lt.s32.totalorder %s13, 1
      %s146 = scalar_select %p145, %s13, 1
      %s147 = smul.addr %s146, 8
      %s148 = scalar_lea.vmem %s2, %s147
      // Predicated region
      $region29: #{decoder_forward.7} parent=27 // pred_check
        %p149 = pneg %p78
      $region30: #{decoder_forward.7} parent=27 // pred_check_branch
        %151 = sbr.rel (%p149) target = $region32
      $region31: #{decoder_forward.7} parent=27 // pred_region
        _
      $region32: #{decoder_forward.7} parent=27 // pred_fallthru
        _
    $region28: #{decoder_forward.7} parent=5 // pred_fallthru
      _
    %p152 = scmp.le.s32.totalorder 2, %s8
    // Predicated region
    $region33: #{decoder_forward.7} parent=5 // pred_check
      %p153 = pneg %p152
    $region34: #{decoder_forward.7} parent=5 // pred_check_branch
      %155 = sbr.rel (%p153) target = $region36
    $region35: #{decoder_forward.7} parent=5 // pred_region
      %s156 = ssub.s32 %s8, 2
      // Predicated region
      $region37: #{decoder_forward.7} parent=35 // pred_check
        %p157 = pneg %p84
      $region38: #{decoder_forward.7} parent=35 // pred_check_branch
        %159 = sbr.rel (%p157) target = $region40
      $region39: #{decoder_forward.7} parent=35 // pred_region
        %p160 = scmp.lt.s32.totalorder %s14, 1
        %s161 = scalar_select %p160, %s14, 1
        %s162 = smul.addr %s161, 8
        %s163 = scalar_lea.vmem %s2, %s162
      $region40: #{decoder_forward.7} parent=35 // pred_fallthru
        _
    $region36: #{decoder_forward.7} parent=5 // pred_fallthru
      _
  $region6: #{decoder_forward.7} parent=0 // loop_footer
    %s12 = sadd.s32 1, %s8
  $region7: #{decoder_forward.7} parent=0 // loop_footer_branch
    %7 = sbr.rel target = $region3
  $region8: #{decoder_forward.7} parent=0 // loop_exit
    _

// kernel: decoder_forward.8
$region0: #{decoder_forward.8}
  #allocation0 [shape = 'u32[]', space=smem, size = 0x4, offset = 0x4, fixed_abs, tag = 'smem constant byte address 0x4 - core index']
  #allocation1 [shape = 'u32[144,128]{1,0:T(1,128)}', space=vmem, size = 0x12000, scoped, tag = 'internal scratch']
  %s0 = inlined_call_operand.vmem [shape: f32[2,8,32], index: 0, kind: input, shape index: {}, may-alias: {0,12}]
  %s1 = inlined_call_operand.vmem [shape: f32[1,8,8], index: 1, kind: input, shape index: {}]
  %s2 = inlined_call_operand.vmem [shape: f32[1,32], index: 2, kind: input, shape index: {}]
  %s3 = inlined_call_operand.vmem [shape: f32[1,32], index: 3, kind: input, shape index: {}]
  %s4 = inlined_call_operand.vmem [shape: bf16[2,32,16], index: 4, kind: input, shape index: {}]
  %s5 = inlined_call_operand.vmem [shape: f32[2,1,16], index: 5, kind: input, shape index: {}]
  %s6 = inlined_call_operand.vmem [shape: bf16[2,32,16], index: 6, kind: input, shape index: {}]
  %s7 = inlined_call_operand.vmem [shape: f32[2,1,16], index: 7, kind: input, shape index: {}]
  %s8 = inlined_call_operand.vmem [shape: bf16[2,32,16], index: 8, kind: input, shape index: {}]
  %s9 = inlined_call_operand.vmem [shape: f32[2,1,16], index: 9, kind: input, shape index: {}]
  %s10 = inlined_call_operand.vmem [shape: bf16[2,16,32], index: 10, kind: input, shape index: {}]
  %s11 = inlined_call_operand.vmem [shape: f32[1,32], index: 11, kind: input, shape index: {}]
  %s12 = inlined_call_operand.vmem [shape: f32[2,8,32], index: 12, kind: output, shape index: {}, may-alias: {0,12}]
  %s13 = sld [smem:[#allocation0]]
  $region81: #{decoder_forward.8} parent=0
    _
  %s15 = ssub.s32 1, %s13
  %s16 = scalar_select 0, %s15, %s13
  loop: start=0, step=1, limit=4
  $region2: #{decoder_forward.8} parent=0 // loop_pre_header
    _
  $region3: #{decoder_forward.8} parent=0 // loop_header
    %s18 = sphi 0, %s22
    %p19 = scmp.ge.s32.totalorder %s18, 4
    %s28 = sphi 0, %s30
    %s31 = sphi 0, %s28
    %s32 = sphi 0, %s31
    %s48 = sphi 0, %s32
    %s52 = sphi 0, %s52
    %s54 = sphi 0, %s52
    %s55 = sphi 0, %s54
    %s69 = sphi 0, %s55
    %s73 = sphi 0, %s73
    %s75 = sphi 0, %s73
    %s76 = sphi 0, %s75
    %s90 = sphi 0, %s76
    %s94 = sphi 0, %s94
    %s96 = sphi 0, %s94
    %s97 = sphi 0, %s96
    %s111 = sphi 0, %s97
    %s115 = sphi 0, %s115
    %s117 = sphi 0, %s115
    %s118 = sphi 0, %s117
    %s132 = sphi 0, %s118
    %s136 = sphi 0, %s136
    %s138 = sphi 0, %s136
    %s139 = sphi 0, %s138
    %s153 = sphi 0, %s139
    %s157 = sphi 0, %s157
    %s159 = sphi 0, %s157
    %s160 = sphi 0, %s159
    %s174 = sphi 0, %s160
    %s178 = sphi 0, %s178
    %s180 = sphi 0, %s178
    %s181 = sphi 0, %s180
    %s195 = sphi 0, %s181
    %s199 = sphi 0, %s199
    %s201 = sphi 0, %s199
    %s202 = sphi 0, %s201
    %s216 = sphi 0, %s202
    %s220 = sphi 0, %s220
    %s222 = sphi 0, %s220
    %s223 = sphi 0, %s222
    %s237 = sphi 0, %s223
    %s241 = sphi 0, %s241
    %s243 = sphi 0, %s241
    %s244 = sphi 0, %s243
    %s258 = sphi 0, %s244
    %s262 = sphi 0, %s262
    %s264 = sphi 0, %s262
    %s265 = sphi 0, %s264
    %s279 = sphi 0, %s265
    %s285 = sphi 0, %s287
    %s288 = sphi 0, %s285
    %s289 = sphi 0, %s288
    %s305 = sphi 0, %s289
  $region4: #{decoder_forward.8} parent=0 // loop_header_branch
    %21 = sbr.rel (%p19) target = $region8
  $region5: #{decoder_forward.8} parent=0 // loop_body
    %s23 = ssub.s32 %s18, 1
    %s24 = ssub.s32 %s18, 2
    %s25 = sadd.s32 %s18, 1
    %s26 = ssub.s32 %s18, %s25
    %p27 = scmp.eq.s32.totalorder %s26, 0
    %s29 = sadd.s32 %s28, 1
    %s30 = scalar_select %p27, %s28, %s29
    %p33 = pneg %p27
    %p34 = scmp.eq.s32.totalorder %s18, 1
    %p35 = por %p33, %p34
    %p36 = scmp.ne.s32.totalorder %s28, %s31
    %p37 = scmp.eq.s32.totalorder %s18, 0
    %p38 = por %p36, %p37
    %p39 = scmp.ne.s32.totalorder %s28, %s31
    %p40 = scmp.eq.s32.totalorder %s23, 1
    %p41 = por %p39, %p40
    %p42 = scmp.ne.s32.totalorder %s31, %s32
    %p43 = scmp.eq.s32.totalorder %s23, 0
    %p44 = por %p42, %p43
    %p45 = scmp.ne.s32.totalorder %s31, %s32
    %p46 = scmp.eq.s32.totalorder %s24, 1
    %p47 = por %p45, %p46
    %p49 = scmp.ne.s32.totalorder %s32, %s48
    %p50 = scmp.eq.s32.totalorder %s24, 0
    %p51 = por %p49, %p50
    %s53 = sadd.s32 %s52, 1
    %p56 = scmp.eq.s32.totalorder %s18, 1
    %p57 = scmp.ne.s32.totalorder %s52, %s54
    %p58 = scmp.eq.s32.totalorder %s18, 0
    %p59 = por %p57, %p58
    %p60 = scmp.ne.s32.totalorder %s52, %s54
    %p61 = scmp.eq.s32.totalorder %s23, 1
    %p62 = por %p60, %p61
    %p63 = scmp.ne.s32.totalorder %s54, %s55
    %p64 = scmp.eq.s32.totalorder %s23, 0
    %p65 = por %p63, %p64
    %p66 = scmp.ne.s32.totalorder %s54, %s55
    %p67 = scmp.eq.s32.totalorder %s24, 1
    %p68 = por %p66, %p67
    %p70 = scmp.ne.s32.totalorder %s55, %s69
    %p71 = scmp.eq.s32.totalorder %s24, 0
    %p72 = por %p70, %p71
    %s74 = sadd.s32 %s73, 1
    %p77 = scmp.eq.s32.totalorder %s18, 1
    %p78 = scmp.ne.s32.totalorder %s73, %s75
    %p79 = scmp.eq.s32.totalorder %s18, 0
    %p80 = por %p78, %p79
    %p81 = scmp.ne.s32.totalorder %s73, %s75
    %p82 = scmp.eq.s32.totalorder %s23, 1
    %p83 = por %p81, %p82
    %p84 = scmp.ne.s32.totalorder %s75, %s76
    %p85 = scmp.eq.s32.totalorder %s23, 0
    %p86 = por %p84, %p85
    %p87 = scmp.ne.s32.totalorder %s75, %s76
    %p88 = scmp.eq.s32.totalorder %s24, 1
    %p89 = por %p87, %p88
    %p91 = scmp.ne.s32.totalorder %s76, %s90
    %p92 = scmp.eq.s32.totalorder %s24, 0
    %p93 = por %p91, %p92
    %s95 = sadd.s32 %s94, 1
    %p98 = scmp.eq.s32.totalorder %s18, 1
    %p99 = scmp.ne.s32.totalorder %s94, %s96
    %p100 = scmp.eq.s32.totalorder %s18, 0
    %p101 = por %p99, %p100
    %p102 = scmp.ne.s32.totalorder %s94, %s96
    %p103 = scmp.eq.s32.totalorder %s23, 1
    %p104 = por %p102, %p103
    %p105 = scmp.ne.s32.totalorder %s96, %s97
    %p106 = scmp.eq.s32.totalorder %s23, 0
    %p107 = por %p105, %p106
    %p108 = scmp.ne.s32.totalorder %s96, %s97
    %p109 = scmp.eq.s32.totalorder %s24, 1
    %p110 = por %p108, %p109
    %p112 = scmp.ne.s32.totalorder %s97, %s111
    %p113 = scmp.eq.s32.totalorder %s24, 0
    %p114 = por %p112, %p113
    %s116 = sadd.s32 %s115, 1
    %p119 = scmp.eq.s32.totalorder %s18, 1
    %p120 = scmp.ne.s32.totalorder %s115, %s117
    %p121 = scmp.eq.s32.totalorder %s18, 0
    %p122 = por %p120, %p121
    %p123 = scmp.ne.s32.totalorder %s115, %s117
    %p124 = scmp.eq.s32.totalorder %s23, 1
    %p125 = por %p123, %p124
    %p126 = scmp.ne.s32.totalorder %s117, %s118
    %p127 = scmp.eq.s32.totalorder %s23, 0
    %p128 = por %p126, %p127
    %p129 = scmp.ne.s32.totalorder %s117, %s118
    %p130 = scmp.eq.s32.totalorder %s24, 1
    %p131 = por %p129, %p130
    %p133 = scmp.ne.s32.totalorder %s118, %s132
    %p134 = scmp.eq.s32.totalorder %s24, 0
    %p135 = por %p133, %p134
    %s137 = sadd.s32 %s136, 1
    %p140 = scmp.eq.s32.totalorder %s18, 1
    %p141 = scmp.ne.s32.totalorder %s136, %s138
    %p142 = scmp.eq.s32.totalorder %s18, 0
    %p143 = por %p141, %p142
    %p144 = scmp.ne.s32.totalorder %s136, %s138
    %p145 = scmp.eq.s32.totalorder %s23, 1
    %p146 = por %p144, %p145
    %p147 = scmp.ne.s32.totalorder %s138, %s139
    %p148 = scmp.eq.s32.totalorder %s23, 0
    %p149 = por %p147, %p148
    %p150 = scmp.ne.s32.totalorder %s138, %s139
    %p151 = scmp.eq.s32.totalorder %s24, 1
    %p152 = por %p150, %p151
    %p154 = scmp.ne.s32.totalorder %s139, %s153
    %p155 = scmp.eq.s32.totalorder %s24, 0
    %p156 = por %p154, %p155
    %s158 = sadd.s32 %s157, 1
    %p161 = scmp.eq.s32.totalorder %s18, 1
    %p162 = scmp.ne.s32.totalorder %s157, %s159
    %p163 = scmp.eq.s32.totalorder %s18, 0
    %p164 = por %p162, %p163
    %p165 = scmp.ne.s32.totalorder %s157, %s159
    %p166 = scmp.eq.s32.totalorder %s23, 1
    %p167 = por %p165, %p166
    %p168 = scmp.ne.s32.totalorder %s159, %s160
    %p169 = scmp.eq.s32.totalorder %s23, 0
    %p170 = por %p168, %p169
    %p171 = scmp.ne.s32.totalorder %s159, %s160
    %p172 = scmp.eq.s32.totalorder %s24, 1
    %p173 = por %p171, %p172
    %p175 = scmp.ne.s32.totalorder %s160, %s174
    %p176 = scmp.eq.s32.totalorder %s24, 0
    %p177 = por %p175, %p176
    %s179 = sadd.s32 %s178, 1
    %p182 = scmp.eq.s32.totalorder %s18, 1
    %p183 = scmp.ne.s32.totalorder %s178, %s180
    %p184 = scmp.eq.s32.totalorder %s18, 0
    %p185 = por %p183, %p184
    %p186 = scmp.ne.s32.totalorder %s178, %s180
    %p187 = scmp.eq.s32.totalorder %s23, 1
    %p188 = por %p186, %p187
    %p189 = scmp.ne.s32.totalorder %s180, %s181
    %p190 = scmp.eq.s32.totalorder %s23, 0
    %p191 = por %p189, %p190
    %p192 = scmp.ne.s32.totalorder %s180, %s181
    %p193 = scmp.eq.s32.totalorder %s24, 1
    %p194 = por %p192, %p193
    %p196 = scmp.ne.s32.totalorder %s181, %s195
    %p197 = scmp.eq.s32.totalorder %s24, 0
    %p198 = por %p196, %p197
    %s200 = sadd.s32 %s199, 1
    %p203 = scmp.eq.s32.totalorder %s18, 1
    %p204 = scmp.ne.s32.totalorder %s199, %s201
    %p205 = scmp.eq.s32.totalorder %s18, 0
    %p206 = por %p204, %p205
    %p207 = scmp.ne.s32.totalorder %s199, %s201
    %p208 = scmp.eq.s32.totalorder %s23, 1
    %p209 = por %p207, %p208
    %p210 = scmp.ne.s32.totalorder %s201, %s202
    %p211 = scmp.eq.s32.totalorder %s23, 0
    %p212 = por %p210, %p211
    %p213 = scmp.ne.s32.totalorder %s201, %s202
    %p214 = scmp.eq.s32.totalorder %s24, 1
    %p215 = por %p213, %p214
    %p217 = scmp.ne.s32.totalorder %s202, %s216
    %p218 = scmp.eq.s32.totalorder %s24, 0
    %p219 = por %p217, %p218
    %s221 = sadd.s32 %s220, 1
    %p224 = scmp.eq.s32.totalorder %s18, 1
    %p225 = scmp.ne.s32.totalorder %s220, %s222
    %p226 = scmp.eq.s32.totalorder %s18, 0
    %p227 = por %p225, %p226
    %p228 = scmp.ne.s32.totalorder %s220, %s222
    %p229 = scmp.eq.s32.totalorder %s23, 1
    %p230 = por %p228, %p229
    %p231 = scmp.ne.s32.totalorder %s222, %s223
    %p232 = scmp.eq.s32.totalorder %s23, 0
    %p233 = por %p231, %p232
    %p234 = scmp.ne.s32.totalorder %s222, %s223
    %p235 = scmp.eq.s32.totalorder %s24, 1
    %p236 = por %p234, %p235
    %p238 = scmp.ne.s32.totalorder %s223, %s237
    %p239 = scmp.eq.s32.totalorder %s24, 0
    %p240 = por %p238, %p239
    %s242 = sadd.s32 %s241, 1
    %p245 = scmp.eq.s32.totalorder %s18, 1
    %p246 = scmp.ne.s32.totalorder %s241, %s243
    %p247 = scmp.eq.s32.totalorder %s18, 0
    %p248 = por %p246, %p247
    %p249 = scmp.ne.s32.totalorder %s241, %s243
    %p250 = scmp.eq.s32.totalorder %s23, 1
    %p251 = por %p249, %p250
    %p252 = scmp.ne.s32.totalorder %s243, %s244
    %p253 = scmp.eq.s32.totalorder %s23, 0
    %p254 = por %p252, %p253
    %p255 = scmp.ne.s32.totalorder %s243, %s244
    %p256 = scmp.eq.s32.totalorder %s24, 1
    %p257 = por %p255, %p256
    %p259 = scmp.ne.s32.totalorder %s244, %s258
    %p260 = scmp.eq.s32.totalorder %s24, 0
    %p261 = por %p259, %p260
    %s263 = sadd.s32 %s262, 1
    %p266 = scmp.eq.s32.totalorder %s18, 1
    %p267 = scmp.ne.s32.totalorder %s262, %s264
    %p268 = scmp.eq.s32.totalorder %s18, 0
    %p269 = por %p267, %p268
    %p270 = scmp.ne.s32.totalorder %s262, %s264
    %p271 = scmp.eq.s32.totalorder %s23, 1
    %p272 = por %p270, %p271
    %p273 = scmp.ne.s32.totalorder %s264, %s265
    %p274 = scmp.eq.s32.totalorder %s23, 0
    %p275 = por %p273, %p274
    %p276 = scmp.ne.s32.totalorder %s264, %s265
    %p277 = scmp.eq.s32.totalorder %s24, 1
    %p278 = por %p276, %p277
    %p280 = scmp.ne.s32.totalorder %s265, %s279
    %p281 = scmp.eq.s32.totalorder %s24, 0
    %p282 = por %p280, %p281
    %s283 = ssub.s32 %s18, %s25
    %p284 = scmp.eq.s32.totalorder %s283, 0
    %s286 = sadd.s32 %s285, 1
    %s287 = scalar_select %p284, %s285, %s286
    %p290 = pneg %p284
    %p291 = scmp.eq.s32.totalorder %s18, 1
    %p292 = por %p290, %p291
    %p293 = scmp.ne.s32.totalorder %s285, %s288
    %p294 = scmp.eq.s32.totalorder %s18, 0
    %p295 = por %p293, %p294
    %p296 = scmp.ne.s32.totalorder %s285, %s288
    %p297 = scmp.eq.s32.totalorder %s23, 1
    %p298 = por %p296, %p297
    %p299 = scmp.ne.s32.totalorder %s288, %s289
    %p300 = scmp.eq.s32.totalorder %s23, 0
    %p301 = por %p299, %p300
    %p302 = scmp.ne.s32.totalorder %s288, %s289
    %p303 = scmp.eq.s32.totalorder %s24, 1
    %p304 = por %p302, %p303
    %p306 = scmp.ne.s32.totalorder %s289, %s305
    %p307 = scmp.eq.s32.totalorder %s24, 0
    %p308 = por %p306, %p307
    %p309 = scmp.le.s32.totalorder 1, %s18
    %p310 = scmp.lt.s32.totalorder %s18, 3
    %p311 = pnand %p309, %p310
    %p312 = pneg %p311
    // Predicated region
    $region9: #{decoder_forward.8} parent=5 // pred_check
      _
    $region10: #{decoder_forward.8} parent=5 // pred_check_branch
      %314 = sbr.rel (%p311) target = $region12
    $region11: #{decoder_forward.8} parent=5 // pred_region
      %s315 = ssub.s32 %s18, 1
      // Predicated region
      $region13: #{decoder_forward.8} parent=11 // pred_check
        %p316 = pneg %p65
      $region14: #{decoder_forward.8} parent=11 // pred_check_branch
        %318 = sbr.rel (%p316) target = $region16
      $region15: #{decoder_forward.8} parent=11 // pred_region
        _
      $region16: #{decoder_forward.8} parent=11 // pred_fallthru
        _
      // Predicated region
      $region17: #{decoder_forward.8} parent=11 // pred_check
        %p319 = pneg %p86
      $region18: #{decoder_forward.8} parent=11 // pred_check_branch
        %321 = sbr.rel (%p319) target = $region20
      $region19: #{decoder_forward.8} parent=11 // pred_region
        _
      $region20: #{decoder_forward.8} parent=11 // pred_fallthru
        _
      // Predicated region
      $region21: #{decoder_forward.8} parent=11 // pred_check
        %p322 = pneg %p107
      $region22: #{decoder_forward.8} parent=11 // pred_check_branch
        %324 = sbr.rel (%p322) target = $region24
      $region23: #{decoder_forward.8} parent=11 // pred_region
        _
      $region24: #{decoder_forward.8} parent=11 // pred_fallthru
        _
      // Predicated region
      $region25: #{decoder_forward.8} parent=11 // pred_check
        %p325 = pneg %p128
      $region26: #{decoder_forward.8} parent=11 // pred_check_branch
        %327 = sbr.rel (%p325) target = $region28
      $region27: #{decoder_forward.8} parent=11 // pred_region
        _
      $region28: #{decoder_forward.8} parent=11 // pred_fallthru
        _
      // Predicated region
      $region29: #{decoder_forward.8} parent=11 // pred_check
        %p328 = pneg %p149
      $region30: #{decoder_forward.8} parent=11 // pred_check_branch
        %330 = sbr.rel (%p328) target = $region32
      $region31: #{decoder_forward.8} parent=11 // pred_region
        _
      $region32: #{decoder_forward.8} parent=11 // pred_fallthru
        _
      // Predicated region
      $region33: #{decoder_forward.8} parent=11 // pred_check
        %p331 = pneg %p170
      $region34: #{decoder_forward.8} parent=11 // pred_check_branch
        %333 = sbr.rel (%p331) target = $region36
      $region35: #{decoder_forward.8} parent=11 // pred_region
        _
      $region36: #{decoder_forward.8} parent=11 // pred_fallthru
        _
      // Predicated region
      $region37: #{decoder_forward.8} parent=11 // pred_check
        %p334 = pneg %p191
      $region38: #{decoder_forward.8} parent=11 // pred_check_branch
        %336 = sbr.rel (%p334) target = $region40
      $region39: #{decoder_forward.8} parent=11 // pred_region
        _
      $region40: #{decoder_forward.8} parent=11 // pred_fallthru
        _
      // Predicated region
      $region41: #{decoder_forward.8} parent=11 // pred_check
        %p337 = pneg %p212
      $region42: #{decoder_forward.8} parent=11 // pred_check_branch
        %339 = sbr.rel (%p337) target = $region44
      $region43: #{decoder_forward.8} parent=11 // pred_region
        _
      $region44: #{decoder_forward.8} parent=11 // pred_fallthru
        _
      // Predicated region
      $region45: #{decoder_forward.8} parent=11 // pred_check
        %p340 = pneg %p233
      $region46: #{decoder_forward.8} parent=11 // pred_check_branch
        %342 = sbr.rel (%p340) target = $region48
      $region47: #{decoder_forward.8} parent=11 // pred_region
        _
      $region48: #{decoder_forward.8} parent=11 // pred_fallthru
        _
      // Predicated region
      $region49: #{decoder_forward.8} parent=11 // pred_check
        %p343 = pneg %p254
      $region50: #{decoder_forward.8} parent=11 // pred_check_branch
        %345 = sbr.rel (%p343) target = $region52
      $region51: #{decoder_forward.8} parent=11 // pred_region
        _
      $region52: #{decoder_forward.8} parent=11 // pred_fallthru
        _
      // Predicated region
      $region53: #{decoder_forward.8} parent=11 // pred_check
        %p346 = pneg %p275
      $region54: #{decoder_forward.8} parent=11 // pred_check_branch
        %348 = sbr.rel (%p346) target = $region56
      $region55: #{decoder_forward.8} parent=11 // pred_region
        _
      $region56: #{decoder_forward.8} parent=11 // pred_fallthru
        _
    $region12: #{decoder_forward.8} parent=5 // pred_fallthru
      _
    %p349 = scmp.lt.s32.totalorder %s18, 2
    // Predicated region
    $region57: #{decoder_forward.8} parent=5 // pred_check
      %p350 = pneg %p349
    $region58: #{decoder_forward.8} parent=5 // pred_check_branch
      %352 = sbr.rel (%p350) target = $region60
    $region59: #{decoder_forward.8} parent=5 // pred_region
      // Predicated region
      $region61: #{decoder_forward.8} parent=59 // pred_check
        %p353 = pneg %p38
      $region62: #{decoder_forward.8} parent=59 // pred_check_branch
        %355 = sbr.rel (%p353) target = $region64
      $region63: #{decoder_forward.8} parent=59 // pred_region
        %p356 = scmp.lt.s32.totalorder %s18, 1
        %s357 = scalar_select %p356, %s18, 1
        %s358 = smul.addr %s357, 8
        %s359 = scalar_lea.vmem %s0, %s358
      $region64: #{decoder_forward.8} parent=59 // pred_fallthru
        _
    $region60: #{decoder_forward.8} parent=5 // pred_fallthru
      _
    %p360 = scmp.le.s32.totalorder 1, %s18
    %p361 = scmp.lt.s32.totalorder %s18, 3
    %p362 = pnand %p360, %p361
    %p363 = pneg %p362
    // Predicated region
    $region65: #{decoder_forward.8} parent=5 // pred_check
      _
    $region66: #{decoder_forward.8} parent=5 // pred_check_branch
      %365 = sbr.rel (%p362) target = $region68
    $region67: #{decoder_forward.8} parent=5 // pred_region
      %s366 = ssub.s32 %s18, 1
      %p367 = scmp.lt.s32.totalorder %s23, 1
      %s368 = scalar_select %p367, %s23, 1
      %s369 = smul.addr %s368, 8
      %s370 = scalar_lea.vmem %s0, %s369
      %p371 = pneg %p44
      %p372 = pneg %p41
      %p373 = pneg %p65
      %p374 = pneg %p62
      %p375 = pneg %p86
      %p376 = pneg %p83
      %p377 = pneg %p107
      %p378 = pneg %p104
      %p379 = pneg %p128
      %p380 = pneg %p125
      %p381 = pneg %p149
      %p382 = pneg %p146
      %p383 = pneg %p170
      %p384 = pneg %p167
      %p385 = pneg %p191
      %p386 = pneg %p188
      %p387 = pneg %p212
      %p388 = pneg %p209
      %p389 = pneg %p233
      %p390 = pneg %p230
      %p391 = pneg %p254
      %p392 = pneg %p251
      %p393 = pneg %p275
      %p394 = pneg %p272
      %p395 = pneg %p301
      %p396 = pneg %p298
      %p397 = scmp.lt.s32.totalorder %s23, 1
      %s398 = scalar_select %p397, %s23, 1
      %s399 = smul.addr %s398, 8
      %s400 = scalar_lea.vmem %s12, %s399
      %p401 = scmp.lt.s32.totalorder %s23, 1
      %s402 = scalar_select %p401, %s23, 1
      %s403 = smul.addr %s402, 8
      %s404 = scalar_lea.vmem %s0, %s403
      %p405 = scmp.lt.s32.totalorder %s23, 1
      %s406 = scalar_select %p405, %s23, 1
      %s407 = smul.addr %s406, 8
      %s408 = scalar_lea.vmem %s12, %s407
      %v410 = vld [vmem:[%s404] sm:$0xff]
      %v411 = vld [vmem:[%s2] sm:$0x1]
      %v412 = vld [vmem:[%s3] sm:$0x1]
      %vm413 = vcmask 261120
      %v414 = vsel %vm413, %v410, 0.0
      %415 = vadd.xlane.f32.xlu0 %v414
      %v416 = vpop.xlane.xlu0 %415
      %v417 = vrcp.pop 32.0
      %v418 = vmul.f32 %v416, %v417
      %v419 = vsub.f32 %v410, %v418
      %v420 = vmul.f32 %v419, %v419
      %v421 = vsel %vm413, %v420, 0.0
      %422 = vadd.xlane.f32.xlu0 %v421
      %v423 = vpop.xlane.xlu0 %422
      %v424 = vmul.f32 %v423, %v417
      %v425 = vadd.f32 %v424, 1e-05
      %v426 = vrsqrt.pop %v425
      %v427 = vmul.f32 %v419, %v426
      %v429 = vlaneseq
      %v430 = vshrl.u32 %v429, 7
      %v431 = vsub.s32 0, %v430
      %v432 = vrot.slane %v411, %v431
      %v434 = vmul.f32 %v427, %v432
      %v436 = vlaneseq
      %v437 = vshrl.u32 %v436, 7
      %v438 = vsub.s32 0, %v437
      %v439 = vrot.slane %v412, %v438
      %v441 = vadd.f32 %v434, %v439
      %v442 = vld [vmem:[%s1] sm:$0xff]
      %v443 = vpack.c.bf16 %v441, %v441
      %v444 = vld [vmem:[%s11] sm:$0x1]
      %v446 = vlaneseq
      %v447 = vshrl.u32 %v446, 7
      %v448 = vsub.s32 0, %v447
      %v449 = vrot.slane %v444, %v448
      %v451 = vadd.f32 %v410, %v449
      %v452 = vld [vmem:[%s4] sm:$0xf]
      %v453 = vld [vmem:[%s4 + $0x4] sm:$0xf]
      %v454 = vld [vmem:[%s4 + $0x8] sm:$0xf]
      %v455 = vld [vmem:[%s4 + $0xc] sm:$0xf]
      %v456 = vld [vmem:[%s5] sm:$0x1]
      %v458 = vlaneseq
      %v459 = vshrl.u32 %v458, 7
      %v460 = vsub.s32 0, %v459
      %v461 = vrot.slane %v456, %v460
      %v467 = vunpack.c.l.b16 %v452
      %v468 = vunpack.c.l.b16 %v453
      %v469 = vunpack.c.l.b16 %v454
      %v470 = vunpack.c.l.b16 %v455
      %v471 = vpack.c.b16 %v468, %v467
      %v472 = vpack.c.b16 %v470, %v469
      %v476 = vsel %vm413, %v443, 0
      %478 = vmatprep.subr.bf16.mxu0 0
      %479 = vmatpush1.bf16.msra.mxu0 %v471
      %480 = vmatprep.subr.bf16.mxu0 0
      %481 = vmatpush1.bf16.msra.mxu0 %v472
      %482 = vmatprep.subr.bf16.mxu0 0
      %483 = vmatpush1.bf16.msra.mxu0 0
      %484 = vmatprep.subr.bf16.mxu0 0
      %485 = vmatpush1.bf16.msra.mxu0 0
      %486 = vmatprep.subr.bf16.mxu0 0
      %487 = vmatpush1.bf16.msra.mxu0 0
      %488 = vmatprep.subr.bf16.mxu0 0
      %489 = vmatpush1.bf16.msra.mxu0 0
      %490 = vmatprep.subr.bf16.mxu0 0
      %491 = vmatpush1.bf16.msra.mxu0 0
      %492 = vmatprep.subr.bf16.mxu0 0
      %493 = vmatpush1.bf16.msra.mxu0 0
      %494 = vmatprep.subr.bf16.mxu0 0
      %495 = vmatpush1.bf16.msra.mxu0 0
      %496 = vmatprep.subr.bf16.mxu0 0
      %497 = vmatpush1.bf16.msra.mxu0 0
      %498 = vmatprep.subr.bf16.mxu0 0
      %499 = vmatpush1.bf16.msra.mxu0 0
      %500 = vmatprep.subr.bf16.mxu0 0
      %501 = vmatpush1.bf16.msra.mxu0 0
      %502 = vmatprep.subr.bf16.mxu0 0
      %503 = vmatpush1.bf16.msra.mxu0 0
      %504 = vmatprep.subr.bf16.mxu0 0
      %505 = vmatpush1.bf16.msra.mxu0 0
      %506 = vmatprep.subr.bf16.mxu0 0
      %507 = vmatpush1.bf16.msra.mxu0 0
      %508 = vmatprep.subr.bf16.mxu0 0
      %509 = vmatpush1.bf16.msra.mxu0 0
      %510 = vmatprep.mubr.bf16.mxu0 0
      %511 = vmatmul.mubr.bf16.gmra.mrb[0].mxu0 %v476
      %v512 = vpop.f32.mrb[0].mxu0
      %v513 = vadd.f32 %v461, %v512
      %v514 = vpop.f32.mrb[0].mxu0
      %v515 = vpop.f32.mrb[0].mxu0
      %v516 = vpop.f32.mrb[0].mxu0
      %517 = vdwg.mxu0
      %v518 = vld [vmem:[%s6] sm:$0xf]
      %v519 = vld [vmem:[%s6 + $0x4] sm:$0xf]
      %v520 = vld [vmem:[%s6 + $0x8] sm:$0xf]
      %v521 = vld [vmem:[%s6 + $0xc] sm:$0xf]
      %v522 = vld [vmem:[%s7] sm:$0x1]
      %v524 = vlaneseq
      %v525 = vshrl.u32 %v524, 7
      %v526 = vsub.s32 0, %v525
      %v527 = vrot.slane %v522, %v526
      %v533 = vunpack.c.l.b16 %v518
      %v534 = vunpack.c.l.b16 %v519
      %v535 = vunpack.c.l.b16 %v520
      %v536 = vunpack.c.l.b16 %v521
      %v537 = vpack.c.b16 %v534, %v533
      %v538 = vpack.c.b16 %v536, %v535
      %541 = vmatprep.subr.bf16.mxu0 0
      %542 = vmatpush1.bf16.msra.mxu0 %v537
      %543 = vmatprep.subr.bf16.mxu0 0
      %544 = vmatpush1.bf16.msra.mxu0 %v538
      %545 = vmatprep.subr.bf16.mxu0 0
      %546 = vmatpush1.bf16.msra.mxu0 0
      %547 = vmatprep.subr.bf16.mxu0 0
      %548 = vmatpush1.bf16.msra.mxu0 0
      %549 = vmatprep.subr.bf16.mxu0 0
      %550 = vmatpush1.bf16.msra.mxu0 0
      %551 = vmatprep.subr.bf16.mxu0 0
      %552 = vmatpush1.bf16.msra.mxu0 0
      %553 = vmatprep.subr.bf16.mxu0 0
      %554 = vmatpush1.bf16.msra.mxu0 0
      %555 = vmatprep.subr.bf16.mxu0 0
      %556 = vmatpush1.bf16.msra.mxu0 0
      %557 = vmatprep.subr.bf16.mxu0 0
      %558 = vmatpush1.bf16.msra.mxu0 0
      %559 = vmatprep.subr.bf16.mxu0 0
      %560 = vmatpush1.bf16.msra.mxu0 0
      %561 = vmatprep.subr.bf16.mxu0 0
      %562 = vmatpush1.bf16.msra.mxu0 0
      %563 = vmatprep.subr.bf16.mxu0 0
      %564 = vmatpush1.bf16.msra.mxu0 0
      %565 = vmatprep.subr.bf16.mxu0 0
      %566 = vmatpush1.bf16.msra.mxu0 0
      %567 = vmatprep.subr.bf16.mxu0 0
      %568 = vmatpush1.bf16.msra.mxu0 0
      %569 = vmatprep.subr.bf16.mxu0 0
      %570 = vmatpush1.bf16.msra.mxu0 0
      %571 = vmatprep.subr.bf16.mxu0 0
      %572 = vmatpush1.bf16.msra.mxu0 0
      %573 = vmatprep.mubr.bf16.mxu0 0
      %574 = vmatmul.mubr.bf16.gmra.mrb[0].mxu0 %v476
      %v575 = vpop.f32.mrb[0].mxu0
      %v576 = vadd.f32 %v527, %v575
      %v577 = vpop.f32.mrb[0].mxu0
      %v578 = vpop.f32.mrb[0].mxu0
      %v579 = vpop.f32.mrb[0].mxu0
      %580 = vdwg.mxu0
      %v581 = vld [vmem:[%s8] sm:$0xf]
      %v582 = vld [vmem:[%s8 + $0x4] sm:$0xf]
      %v583 = vld [vmem:[%s8 + $0x8] sm:$0xf]
      %v584 = vld [vmem:[%s8 + $0xc] sm:$0xf]
      %v585 = vld [vmem:[%s9] sm:$0x1]
      %v587 = vlaneseq
      %v588 = vshrl.u32 %v587, 7
      %v589 = vsub.s32 0, %v588
      %v590 = vrot.slane %v585, %v589
      %v596 = vunpack.c.l.b16 %v581
      %v597 = vunpack.c.l.b16 %v582
      %v598 = vunpack.c.l.b16 %v583
      %v599 = vunpack.c.l.b16 %v584
      %v600 = vpack.c.b16 %v597, %v596
      %v601 = vpack.c.b16 %v599, %v598
      %604 = vmatprep.subr.bf16.mxu0 0
      %605 = vmatpush1.bf16.msra.mxu0 %v600
      %606 = vmatprep.subr.bf16.mxu0 0
      %607 = vmatpush1.bf16.msra.mxu0 %v601
      %608 = vmatprep.subr.bf16.mxu0 0
      %609 = vmatpush1.bf16.msra.mxu0 0
      %610 = vmatprep.subr.bf16.mxu0 0
      %611 = vmatpush1.bf16.msra.mxu0 0
      %612 = vmatprep.subr.bf16.mxu0 0
      %613 = vmatpush1.bf16.msra.mxu0 0
      %614 = vmatprep.subr.bf16.mxu0 0
      %615 = vmatpush1.bf16.msra.mxu0 0
      %616 = vmatprep.subr.bf16.mxu0 0
      %617 = vmatpush1.bf16.msra.mxu0 0
      %618 = vmatprep.subr.bf16.mxu0 0
      %619 = vmatpush1.bf16.msra.mxu0 0
      %620 = vmatprep.subr.bf16.mxu0 0
      %621 = vmatpush1.bf16.msra.mxu0 0
      %622 = vmatprep.subr.bf16.mxu0 0
      %623 = vmatpush1.bf16.msra.mxu0 0
      %624 = vmatprep.subr.bf16.mxu0 0
      %625 = vmatpush1.bf16.msra.mxu0 0
      %626 = vmatprep.subr.bf16.mxu0 0
      %627 = vmatpush1.bf16.msra.mxu0 0
      %628 = vmatprep.subr.bf16.mxu0 0
      %629 = vmatpush1.bf16.msra.mxu0 0
      %630 = vmatprep.subr.bf16.mxu0 0
      %631 = vmatpush1.bf16.msra.mxu0 0
      %632 = vmatprep.subr.bf16.mxu0 0
      %633 = vmatpush1.bf16.msra.mxu0 0
      %634 = vmatprep.subr.bf16.mxu0 0
      %635 = vmatpush1.bf16.msra.mxu0 0
      %636 = vmatprep.mubr.bf16.mxu0 0
      %637 = vmatmul.mubr.bf16.gmra.mrb[0].mxu0 %v476
      %v638 = vpop.f32.mrb[0].mxu0
      %v639 = vadd.f32 %v590, %v638
      %v640 = vpop.f32.mrb[0].mxu0
      %v641 = vpop.f32.mrb[0].mxu0
      %v642 = vpop.f32.mrb[0].mxu0
      %643 = vdwg.mxu0
      %v644 = vpack.c.bf16 %v513, %v513
      %v645 = vpack.c.bf16 %v576, %v576
      %vm646 = vcmask 130048
      %v648 = vsel %vm646, %v644, 0
      %v651 = vsel %vm646, %v645, 0
      %653 = vmatprep.subr.bf16.mxu0 0
      %654 = vmatpush1.bf16.xpose.msra.mxu0 %v651
      %655 = vmatprep.subr.bf16.mxu0 0
      %656 = vmatpush1.bf16.xpose.msra.mxu0 0
      %657 = vmatprep.subr.bf16.mxu0 0
      %658 = vmatpush1.bf16.xpose.msra.mxu0 0
      %659 = vmatprep.subr.bf16.mxu0 0
      %660 = vmatpush1.bf16.xpose.msra.mxu0 0
      %661 = vmatprep.subr.bf16.mxu0 0
      %662 = vmatpush1.bf16.xpose.msra.mxu0 0
      %663 = vmatprep.subr.bf16.mxu0 0
      %664 = vmatpush1.bf16.xpose.msra.mxu0 0
      %665 = vmatprep.subr.bf16.mxu0 0
      %666 = vmatpush1.bf16.xpose.msra.mxu0 0
      %667 = vmatprep.subr.bf16.mxu0 0
      %668 = vmatpush1.bf16.xpose.msra.mxu0 0
      %669 = vmatprep.subr.bf16.mxu0 0
      %670 = vmatpush1.bf16.xpose.msra.mxu0 0
      %671 = vmatprep.subr.bf16.mxu0 0
      %672 = vmatpush1.bf16.xpose.msra.mxu0 0
      %673 = vmatprep.subr.bf16.mxu0 0
      %674 = vmatpush1.bf16.xpose.msra.mxu0 0
      %675 = vmatprep.subr.bf16.mxu0 0
      %676 = vmatpush1.bf16.xpose.msra.mxu0 0
      %677 = vmatprep.subr.bf16.mxu0 0
      %678 = vmatpush1.bf16.xpose.msra.mxu0 0
      %679 = vmatprep.subr.bf16.mxu0 0
      %680 = vmatpush1.bf16.xpose.msra.mxu0 0
      %681 = vmatprep.subr.bf16.mxu0 0
      %682 = vmatpush1.bf16.xpose.msra.mxu0 0
      %683 = vmatprep.subr.bf16.mxu0 0
      %684 = vmatpush1.bf16.xpose.msra.mxu0 0
      %685 = vmatprep.mubr.bf16.mxu0 0
      %686 = vmatmul.mubr.bf16.gmra.mrb[0].mxu0 %v648
      %v687 = vpop.f32.mrb[0].mxu0
      %v688 = vadd.f32 0.0, %v687
      %v689 = vpop.f32.mrb[0].mxu0
      %v690 = vpop.f32.mrb[0].mxu0
      %v691 = vpop.f32.mrb[0].mxu0
      %692 = vdwg.mxu0
      %v693 = vmul.f32 %v688, 0.25
      %vm694 = vcmp.eq.f32.partialorder %v442, 0.0
      %v695 = vsel %vm694, -1e+09, %v693
      %vm696 = vcmask 64512
      %v697 = vsel %vm696, %v695, -inf
      %698 = vmax.xlane.f32.xlu0 %v697
      %v699 = vpop.xlane.xlu0 %698
      %v700 = vsub.f32 %v695, %v699
      %v701 = vmul.f32 %v700, 1.442695
      %v702 = vpow.pop %v701
      %v703 = vsel %vm696, %v702, 0.0
      %704 = vadd.xlane.f32.xlu0 %v703
      %v705 = vpop.xlane.xlu0 %704
      %v706 = vrcp.pop %v705
      %v707 = vmul.f32 %v702, %v706
      %v708 = vpack.c.bf16 %v707, %v707
      %v709 = vpack.c.bf16 %v639, %v639
      %v711 = vsel %vm696, %v708, 0
      %vm713 = vcmask 1043456
      %v715 = vsel %vm713, %v709, 0
      %717 = vmatprep.subr.bf16.mxu0 0
      %718 = vmatpush1.bf16.msra.mxu0 %v715
      %719 = vmatprep.subr.bf16.mxu0 0
      %720 = vmatpush1.bf16.msra.mxu0 0
      %721 = vmatprep.subr.bf16.mxu0 0
      %722 = vmatpush1.bf16.msra.mxu0 0
      %723 = vmatprep.subr.bf16.mxu0 0
      %724 = vmatpush1.bf16.msra.mxu0 0
      %725 = vmatprep.subr.bf16.mxu0 0
      %726 = vmatpush1.bf16.msra.mxu0 0
      %727 = vmatprep.subr.bf16.mxu0 0
      %728 = vmatpush1.bf16.msra.mxu0 0
      %729 = vmatprep.subr.bf16.mxu0 0
      %730 = vmatpush1.bf16.msra.mxu0 0
      %731 = vmatprep.subr.bf16.mxu0 0
      %732 = vmatpush1.bf16.msra.mxu0 0
      %733 = vmatprep.subr.bf16.mxu0 0
      %734 = vmatpush1.bf16.msra.mxu0 0
      %735 = vmatprep.subr.bf16.mxu0 0
      %736 = vmatpush1.bf16.msra.mxu0 0
      %737 = vmatprep.subr.bf16.mxu0 0
      %738 = vmatpush1.bf16.msra.mxu0 0
      %739 = vmatprep.subr.bf16.mxu0 0
      %740 = vmatpush1.bf16.msra.mxu0 0
      %741 = vmatprep.subr.bf16.mxu0 0
      %742 = vmatpush1.bf16.msra.mxu0 0
      %743 = vmatprep.subr.bf16.mxu0 0
      %744 = vmatpush1.bf16.msra.mxu0 0
      %745 = vmatprep.subr.bf16.mxu0 0
      %746 = vmatpush1.bf16.msra.mxu0 0
      %747 = vmatprep.subr.bf16.mxu0 0
      %748 = vmatpush1.bf16.msra.mxu0 0
      %749 = vmatprep.mubr.bf16.mxu0 0
      %750 = vmatmul.mubr.bf16.gmra.mrb[0].mxu0 %v711
      %v751 = vpop.f32.mrb[0].mxu0
      %v752 = vadd.f32 0.0, %v751
      %v753 = vpop.f32.mrb[0].mxu0
      %v754 = vpop.f32.mrb[0].mxu0
      %v755 = vpop.f32.mrb[0].mxu0
      %756 = vdwg.mxu0
      %v757 = vpack.c.bf16 %v752, %v752
      %v758 = vld [vmem:[%s10] sm:$0xf]
      %v759 = vld [vmem:[%s10 + $0x4] sm:$0xf]
      %v762 = vunpack.c.l.b16 %v758
      %v763 = vunpack.c.l.b16 %v759
      %v764 = vpack.c.b16 %v763, %v762
      %v767 = vsel %vm646, %v757, 0
      %769 = vmatprep.subr.bf16.mxu0 0
      %770 = vmatpush1.bf16.msra.mxu0 %v764
      %771 = vmatprep.subr.bf16.mxu0 0
      %772 = vmatpush1.bf16.msra.mxu0 0
      %773 = vmatprep.subr.bf16.mxu0 0
      %774 = vmatpush1.bf16.msra.mxu0 0
      %775 = vmatprep.subr.bf16.mxu0 0
      %776 = vmatpush1.bf16.msra.mxu0 0
      %777 = vmatprep.subr.bf16.mxu0 0
      %778 = vmatpush1.bf16.msra.mxu0 0
      %779 = vmatprep.subr.bf16.mxu0 0
      %780 = vmatpush1.bf16.msra.mxu0 0
      %781 = vmatprep.subr.bf16.mxu0 0
      %782 = vmatpush1.bf16.msra.mxu0 0
      %783 = vmatprep.subr.bf16.mxu0 0
      %784 = vmatpush1.bf16.msra.mxu0 0
      %785 = vmatprep.subr.bf16.mxu0 0
      %786 = vmatpush1.bf16.msra.mxu0 0
      %787 = vmatprep.subr.bf16.mxu0 0
      %788 = vmatpush1.bf16.msra.mxu0 0
      %789 = vmatprep.subr.bf16.mxu0 0
      %790 = vmatpush1.bf16.msra.mxu0 0
      %791 = vmatprep.subr.bf16.mxu0 0
      %792 = vmatpush1.bf16.msra.mxu0 0
      %793 = vmatprep.subr.bf16.mxu0 0
      %794 = vmatpush1.bf16.msra.mxu0 0
      %795 = vmatprep.subr.bf16.mxu0 0
      %796 = vmatpush1.bf16.msra.mxu0 0
      %797 = vmatprep.subr.bf16.mxu0 0
      %798 = vmatpush1.bf16.msra.mxu0 0
      %799 = vmatprep.subr.bf16.mxu0 0
      %800 = vmatpush1.bf16.msra.mxu0 0
      %801 = vmatprep.mubr.bf16.mxu0 0
      %802 = vmatmul.mubr.bf16.gmra.mrb[0].mxu0 %v767
      %v803 = vpop.f32.mrb[0].mxu0
      %v804 = vadd.f32 0.0, %v803
      %v805 = vpop.f32.mrb[0].mxu0
      %v806 = vpop.f32.mrb[0].mxu0
      %v807 = vpop.f32.mrb[0].mxu0
      %808 = vdwg.mxu0
      %v809 = vadd.f32 %v451, %v804
      %s810 = scalar_lea.vmem %s4, 16
      %v811 = vld [vmem:[%s810] sm:$0xf]
      %v812 = vld [vmem:[%s810 + $0x4] sm:$0xf]
      %v813 = vld [vmem:[%s810 + $0x8] sm:$0xf]
      %v814 = vld [vmem:[%s810 + $0xc] sm:$0xf]
      %s815 = scalar_lea.vmem %s5, 1
      %v816 = vld [vmem:[%s815] sm:$0x1]
      %v818 = vlaneseq
      %v819 = vshrl.u32 %v818, 7
      %v820 = vsub.s32 0, %v819
      %v821 = vrot.slane %v816, %v820
      %v827 = vunpack.c.l.b16 %v811
      %v828 = vunpack.c.l.b16 %v812
      %v829 = vunpack.c.l.b16 %v813
      %v830 = vunpack.c.l.b16 %v814
      %v831 = vpack.c.b16 %v828, %v827
      %v832 = vpack.c.b16 %v830, %v829
      %835 = vmatprep.subr.bf16.mxu0 0
      %836 = vmatpush1.bf16.msra.mxu0 %v831
      %837 = vmatprep.subr.bf16.mxu0 0
      %838 = vmatpush1.bf16.msra.mxu0 %v832
      %839 = vmatprep.subr.bf16.mxu0 0
      %840 = vmatpush1.bf16.msra.mxu0 0
      %841 = vmatprep.subr.bf16.mxu0 0
      %842 = vmatpush1.bf16.msra.mxu0 0
      %843 = vmatprep.subr.bf16.mxu0 0
      %844 = vmatpush1.bf16.msra.mxu0 0
      %845 = vmatprep.subr.bf16.mxu0 0
      %846 = vmatpush1.bf16.msra.mxu0 0
      %847 = vmatprep.subr.bf16.mxu0 0
      %848 = vmatpush1.bf16.msra.mxu0 0
      %849 = vmatprep.subr.bf16.mxu0 0
      %850 = vmatpush1.bf16.msra.mxu0 0
      %851 = vmatprep.subr.bf16.mxu0 0
      %852 = vmatpush1.bf16.msra.mxu0 0
      %853 = vmatprep.subr.bf16.mxu0 0
      %854 = vmatpush1.bf16.msra.mxu0 0
      %855 = vmatprep.subr.bf16.mxu0 0
      %856 = vmatpush1.bf16.msra.mxu0 0
      %857 = vmatprep.subr.bf16.mxu0 0
      %858 = vmatpush1.bf16.msra.mxu0 0
      %859 = vmatprep.subr.bf16.mxu0 0
      %860 = vmatpush1.bf16.msra.mxu0 0
      %861 = vmatprep.subr.bf16.mxu0 0
      %862 = vmatpush1.bf16.msra.mxu0 0
      %863 = vmatprep.subr.bf16.mxu0 0
      %864 = vmatpush1.bf16.msra.mxu0 0
      %865 = vmatprep.subr.bf16.mxu0 0
      %866 = vmatpush1.bf16.msra.mxu0 0
      %867 = vmatprep.mubr.bf16.mxu0 0
      %868 = vmatmul.mubr.bf16.gmra.mrb[0].mxu0 %v476
      %v869 = vpop.f32.mrb[0].mxu0
      %v870 = vadd.f32 %v821, %v869
      %v871 = vpop.f32.mrb[0].mxu0
      %v872 = vpop.f32.mrb[0].mxu0
      %v873 = vpop.f32.mrb[0].mxu0
      %874 = vdwg.mxu0
      %s875 = scalar_lea.vmem %s6, 16
      %v876 = vld [vmem:[%s875] sm:$0xf]
      %v877 = vld [vmem:[%s875 + $0x4] sm:$0xf]
      %v878 = vld [vmem:[%s875 + $0x8] sm:$0xf]
      %v879 = vld [vmem:[%s875 + $0xc] sm:$0xf]
      %s880 = scalar_lea.vmem %s7, 1
      %v881 = vld [vmem:[%s880] sm:$0x1]
      %v883 = vlaneseq
      %v884 = vshrl.u32 %v883, 7
      %v885 = vsub.s32 0, %v884
      %v886 = vrot.slane %v881, %v885
      %v892 = vunpack.c.l.b16 %v876
      %v893 = vunpack.c.l.b16 %v877
      %v894 = vunpack.c.l.b16 %v878
      %v895 = vunpack.c.l.b16 %v879
      %v896 = vpack.c.b16 %v893, %v892
      %v897 = vpack.c.b16 %v895, %v894
      %900 = vmatprep.subr.bf16.mxu0 0
      %901 = vmatpush1.bf16.msra.mxu0 %v896
      %902 = vmatprep.subr.bf16.mxu0 0
      %903 = vmatpush1.bf16.msra.mxu0 %v897
      %904 = vmatprep.subr.bf16.mxu0 0
      %905 = vmatpush1.bf16.msra.mxu0 0
      %906 = vmatprep.subr.bf16.mxu0 0
      %907 = vmatpush1.bf16.msra.mxu0 0
      %908 = vmatprep.subr.bf16.mxu0 0
      %909 = vmatpush1.bf16.msra.mxu0 0
      %910 = vmatprep.subr.bf16.mxu0 0
      %911 = vmatpush1.bf16.msra.mxu0 0
      %912 = vmatprep.subr.bf16.mxu0 0
      %913 = vmatpush1.bf16.msra.mxu0 0
      %914 = vmatprep.subr.bf16.mxu0 0
      %915 = vmatpush1.bf16.msra.mxu0 0
      %916 = vmatprep.subr.bf16.mxu0 0
      %917 = vmatpush1.bf16.msra.mxu0 0
      %918 = vmatprep.subr.bf16.mxu0 0
      %919 = vmatpush1.bf16.msra.mxu0 0
      %920 = vmatprep.subr.bf16.mxu0 0
      %921 = vmatpush1.bf16.msra.mxu0 0
      %922 = vmatprep.subr.bf16.mxu0 0
      %923 = vmatpush1.bf16.msra.mxu0 0
      %924 = vmatprep.subr.bf16.mxu0 0
      %925 = vmatpush1.bf16.msra.mxu0 0
      %926 = vmatprep.subr.bf16.mxu0 0
      %927 = vmatpush1.bf16.msra.mxu0 0
      %928 = vmatprep.subr.bf16.mxu0 0
      %929 = vmatpush1.bf16.msra.mxu0 0
      %930 = vmatprep.subr.bf16.mxu0 0
      %931 = vmatpush1.bf16.msra.mxu0 0
      %932 = vmatprep.mubr.bf16.mxu0 0
      %933 = vmatmul.mubr.bf16.gmra.mrb[0].mxu0 %v476
      %v934 = vpop.f32.mrb[0].mxu0
      %v935 = vadd.f32 %v886, %v934
      %v936 = vpop.f32.mrb[0].mxu0
      %v937 = vpop.f32.mrb[0].mxu0
      %v938 = vpop.f32.mrb[0].mxu0
      %939 = vdwg.mxu0
      %s940 = scalar_lea.vmem %s8, 16
      %v941 = vld [vmem:[%s940] sm:$0xf]
      %v942 = vld [vmem:[%s940 + $0x4] sm:$0xf]
      %v943 = vld [vmem:[%s940 + $0x8] sm:$0xf]
      %v944 = vld [vmem:[%s940 + $0xc] sm:$0xf]
      %s945 = scalar_lea.vmem %s9, 1
      %v946 = vld [vmem:[%s945] sm:$0x1]
      %v948 = vlaneseq
      %v949 = vshrl.u32 %v948, 7
      %v950 = vsub.s32 0, %v949
      %v951 = vrot.slane %v946, %v950
      %v957 = vunpack.c.l.b16 %v941
      %v958 = vunpack.c.l.b16 %v942
      %v959 = vunpack.c.l.b16 %v943
      %v960 = vunpack.c.l.b16 %v944
      %v961 = vpack.c.b16 %v958, %v957
      %v962 = vpack.c.b16 %v960, %v959
      %965 = vmatprep.subr.bf16.mxu0 0
      %966 = vmatpush1.bf16.msra.mxu0 %v961
      %967 = vmatprep.subr.bf16.mxu0 0
      %968 = vmatpush1.bf16.msra.mxu0 %v962
      %969 = vmatprep.subr.bf16.mxu0 0
      %970 = vmatpush1.bf16.msra.mxu0 0
      %971 = vmatprep.subr.bf16.mxu0 0
      %972 = vmatpush1.bf16.msra.mxu0 0
      %973 = vmatprep.subr.bf16.mxu0 0
      %974 = vmatpush1.bf16.msra.mxu0 0
      %975 = vmatprep.subr.bf16.mxu0 0
      %976 = vmatpush1.bf16.msra.mxu0 0
      %977 = vmatprep.subr.bf16.mxu0 0
      %978 = vmatpush1.bf16.msra.mxu0 0
      %979 = vmatprep.subr.bf16.mxu0 0
      %980 = vmatpush1.bf16.msra.mxu0 0
      %981 = vmatprep.subr.bf16.mxu0 0
      %982 = vmatpush1.bf16.msra.mxu0 0
      %983 = vmatprep.subr.bf16.mxu0 0
      %984 = vmatpush1.bf16.msra.mxu0 0
      %985 = vmatprep.subr.bf16.mxu0 0
      %986 = vmatpush1.bf16.msra.mxu0 0
      %987 = vmatprep.subr.bf16.mxu0 0
      %988 = vmatpush1.bf16.msra.mxu0 0
      %989 = vmatprep.subr.bf16.mxu0 0
      %990 = vmatpush1.bf16.msra.mxu0 0
      %991 = vmatprep.subr.bf16.mxu0 0
      %992 = vmatpush1.bf16.msra.mxu0 0
      %993 = vmatprep.subr.bf16.mxu0 0
      %994 = vmatpush1.bf16.msra.mxu0 0
      %995 = vmatprep.subr.bf16.mxu0 0
      %996 = vmatpush1.bf16.msra.mxu0 0
      %997 = vmatprep.mubr.bf16.mxu0 0
      %998 = vmatmul.mubr.bf16.gmra.mrb[0].mxu0 %v476
      %v999 = vpop.f32.mrb[0].mxu0
      %v1000 = vadd.f32 %v951, %v999
      %v1001 = vpop.f32.mrb[0].mxu0
      %v1002 = vpop.f32.mrb[0].mxu0
      %v1003 = vpop.f32.mrb[0].mxu0
      %1004 = vdwg.mxu0
      %v1005 = vpack.c.bf16 %v870, %v870
      %v1006 = vpack.c.bf16 %v935, %v935
      %v1008 = vsel %vm646, %v1005, 0
      %v1011 = vsel %vm646, %v1006, 0
      %1013 = vmatprep.subr.bf16.mxu0 0
      %1014 = vmatpush1.bf16.xpose.msra.mxu0 %v1011
      %1015 = vmatprep.subr.bf16.mxu0 0
      %1016 = vmatpush1.bf16.xpose.msra.mxu0 0
      %1017 = vmatprep.subr.bf16.mxu0 0
      %1018 = vmatpush1.bf16.xpose.msra.mxu0 0
      %1019 = vmatprep.subr.bf16.mxu0 0
      %1020 = vmatpush1.bf16.xpose.msra.mxu0 0
      %1021 = vmatprep.subr.bf16.mxu0 0
      %1022 = vmatpush1.bf16.xpose.msra.mxu0 0
      %1023 = vmatprep.subr.bf16.mxu0 0
      %1024 = vmatpush1.bf16.xpose.msra.mxu0 0
      %1025 = vmatprep.subr.bf16.mxu0 0
      %1026 = vmatpush1.bf16.xpose.msra.mxu0 0
      %1027 = vmatprep.subr.bf16.mxu0 0
      %1028 = vmatpush1.bf16.xpose.msra.mxu0 0
      %1029 = vmatprep.subr.bf16.mxu0 0
      %1030 = vmatpush1.bf16.xpose.msra.mxu0 0
      %1031 = vmatprep.subr.bf16.mxu0 0
      %1032 = vmatpush1.bf16.xpose.msra.mxu0 0
      %1033 = vmatprep.subr.bf16.mxu0 0
      %1034 = vmatpush1.bf16.xpose.msra.mxu0 0
      %1035 = vmatprep.subr.bf16.mxu0 0
      %1036 = vmatpush1.bf16.xpose.msra.mxu0 0
      %1037 = vmatprep.subr.bf16.mxu0 0
      %1038 = vmatpush1.bf16.xpose.msra.mxu0 0
      %1039 = vmatprep.subr.bf16.mxu0 0
      %1040 = vmatpush1.bf16.xpose.msra.mxu0 0
      %1041 = vmatprep.subr.bf16.mxu0 0
      %1042 = vmatpush1.bf16.xpose.msra.mxu0 0
      %1043 = vmatprep.subr.bf16.mxu0 0
      %1044 = vmatpush1.bf16.xpose.msra.mxu0 0
      %1045 = vmatprep.mubr.bf16.mxu0 0
      %1046 = vmatmul.mubr.bf16.gmra.mrb[0].mxu0 %v1008
      %v1047 = vpop.f32.mrb[0].mxu0
      %v1048 = vadd.f32 0.0, %v1047
      %v1049 = vpop.f32.mrb[0].mxu0
      %v1050 = vpop.f32.mrb[0].mxu0
      %v1051 = vpop.f32.mrb[0].mxu0
      %1052 = vdwg.mxu0
      %v1053 = vmul.f32 %v1048, 0.25
      %v1054 = vsel %vm694, -1e+09, %v1053
      %v1055 = vsel %vm696, %v1054, -inf
      %1056 = vmax.xlane.f32.xlu0 %v1055
      %v1057 = vpop.xlane.xlu0 %1056
      %v1058 = vsub.f32 %v1054, %v1057
      %v1059 = vmul.f32 %v1058, 1.442695
      %v1060 = vpow.pop %v1059
      %v1061 = vsel %vm696, %v1060, 0.0
      %1062 = vadd.xlane.f32.xlu0 %v1061
      %v1063 = vpop.xlane.xlu0 %1062
      %v1064 = vrcp.pop %v1063
      %v1065 = vmul.f32 %v1060, %v1064
      %v1066 = vpack.c.bf16 %v1065, %v1065
      %v1067 = vpack.c.bf16 %v1000, %v1000
      %v1069 = vsel %vm696, %v1066, 0
      %v1072 = vsel %vm713, %v1067, 0
      %1074 = vmatprep.subr.bf16.mxu0 0
      %1075 = vmatpush1.bf16.msra.mxu0 %v1072
      %1076 = vmatprep.subr.bf16.mxu0 0
      %1077 = vmatpush1.bf16.msra.mxu0 0
      %1078 = vmatprep.subr.bf16.mxu0 0
      %1079 = vmatpush1.bf16.msra.mxu0 0
      %1080 = vmatprep.subr.bf16.mxu0 0
      %1081 = vmatpush1.bf16.msra.mxu0 0
      %1082 = vmatprep.subr.bf16.mxu0 0
      %1083 = vmatpush1.bf16.msra.mxu0 0
      %1084 = vmatprep.subr.bf16.mxu0 0
      %1085 = vmatpush1.bf16.msra.mxu0 0
      %1086 = vmatprep.subr.bf16.mxu0 0
      %1087 = vmatpush1.bf16.msra.mxu0 0
      %1088 = vmatprep.subr.bf16.mxu0 0
      %1089 = vmatpush1.bf16.msra.mxu0 0
      %1090 = vmatprep.subr.bf16.mxu0 0
      %1091 = vmatpush1.bf16.msra.mxu0 0
      %1092 = vmatprep.subr.bf16.mxu0 0
      %1093 = vmatpush1.bf16.msra.mxu0 0
      %1094 = vmatprep.subr.bf16.mxu0 0
      %1095 = vmatpush1.bf16.msra.mxu0 0
      %1096 = vmatprep.subr.bf16.mxu0 0
      %1097 = vmatpush1.bf16.msra.mxu0 0
      %1098 = vmatprep.subr.bf16.mxu0 0
      %1099 = vmatpush1.bf16.msra.mxu0 0
      %1100 = vmatprep.subr.bf16.mxu0 0
      %1101 = vmatpush1.bf16.msra.mxu0 0
      %1102 = vmatprep.subr.bf16.mxu0 0
      %1103 = vmatpush1.bf16.msra.mxu0 0
      %1104 = vmatprep.subr.bf16.mxu0 0
      %1105 = vmatpush1.bf16.msra.mxu0 0
      %1106 = vmatprep.mubr.bf16.mxu0 0
      %1107 = vmatmul.mubr.bf16.gmra.mrb[0].mxu0 %v1069
      %v1108 = vpop.f32.mrb[0].mxu0
      %v1109 = vadd.f32 0.0, %v1108
      %v1110 = vpop.f32.mrb[0].mxu0
      %v1111 = vpop.f32.mrb[0].mxu0
      %v1112 = vpop.f32.mrb[0].mxu0
      %1113 = vdwg.mxu0
      %v1114 = vpack.c.bf16 %v1109, %v1109
      %s1115 = scalar_lea.vmem %s10, 8
      %v1116 = vld [vmem:[%s1115] sm:$0xf]
      %v1117 = vld [vmem:[%s1115 + $0x4] sm:$0xf]
      %v1120 = vunpack.c.l.b16 %v1116
      %v1121 = vunpack.c.l.b16 %v1117
      %v1122 = vpack.c.b16 %v1121, %v1120
      %v1125 = vsel %vm646, %v1114, 0
      %1127 = vmatprep.subr.bf16.mxu0 0
      %1128 = vmatpush1.bf16.msra.mxu0 %v1122
      %1129 = vmatprep.subr.bf16.mxu0 0
      %1130 = vmatpush1.bf16.msra.mxu0 0
      %1131 = vmatprep.subr.bf16.mxu0 0
      %1132 = vmatpush1.bf16.msra.mxu0 0
      %1133 = vmatprep.subr.bf16.mxu0 0
      %1134 = vmatpush1.bf16.msra.mxu0 0
      %1135 = vmatprep.subr.bf16.mxu0 0
      %1136 = vmatpush1.bf16.msra.mxu0 0
      %1137 = vmatprep.subr.bf16.mxu0 0
      %1138 = vmatpush1.bf16.msra.mxu0 0
      %1139 = vmatprep.subr.bf16.mxu0 0
      %1140 = vmatpush1.bf16.msra.mxu0 0
      %1141 = vmatprep.subr.bf16.mxu0 0
      %1142 = vmatpush1.bf16.msra.mxu0 0
      %1143 = vmatprep.subr.bf16.mxu0 0
      %1144 = vmatpush1.bf16.msra.mxu0 0
      %1145 = vmatprep.subr.bf16.mxu0 0
      %1146 = vmatpush1.bf16.msra.mxu0 0
      %1147 = vmatprep.subr.bf16.mxu0 0
      %1148 = vmatpush1.bf16.msra.mxu0 0
      %1149 = vmatprep.subr.bf16.mxu0 0
      %1150 = vmatpush1.bf16.msra.mxu0 0
      %1151 = vmatprep.subr.bf16.mxu0 0
      %1152 = vmatpush1.bf16.msra.mxu0 0
      %1153 = vmatprep.subr.bf16.mxu0 0
      %1154 = vmatpush1.bf16.msra.mxu0 0
      %1155 = vmatprep.subr.bf16.mxu0 0
      %1156 = vmatpush1.bf16.msra.mxu0 0
      %1157 = vmatprep.subr.bf16.mxu0 0
      %1158 = vmatpush1.bf16.msra.mxu0 0
      %1159 = vmatprep.mubr.bf16.mxu0 0
      %1160 = vmatmul.mubr.bf16.gmra.mrb[0].mxu0 %v1125
      %v1161 = vpop.f32.mrb[0].mxu0
      %v1162 = vadd.f32 0.0, %v1161
      %v1163 = vpop.f32.mrb[0].mxu0
      %v1164 = vpop.f32.mrb[0].mxu0
      %v1165 = vpop.f32.mrb[0].mxu0
      %1166 = vdwg.mxu0
      %v1167 = vadd.f32 %v809, %v1162
      %1168 = vst.msk [vmem:[%s408] sm:$0xff] %vm413, %v1167
      %p1169 = scmp.lt.s32.totalorder %s23, 1
      %s1170 = scalar_select %p1169, %s23, 1
      %s1171 = smul.addr %s1170, 8
      %s1172 = scalar_lea.vmem %s12, %s1171
      // Predicated region
      $region69: #{decoder_forward.8} parent=67 // pred_check
        %p1173 = pneg %p298
      $region70: #{decoder_forward.8} parent=67 // pred_check_branch
        %1175 = sbr.rel (%p1173) target = $region72
      $region71: #{decoder_forward.8} parent=67 // pred_region
        _
      $region72: #{decoder_forward.8} parent=67 // pred_fallthru
        _
    $region68: #{decoder_forward.8} parent=5 // pred_fallthru
      _
    %p1176 = scmp.le.s32.totalorder 2, %s18
    // Predicated region
    $region73: #{decoder_forward.8} parent=5 // pred_check
      %p1177 = pneg %p1176
    $region74: #{decoder_forward.8} parent=5 // pred_check_branch
      %1179 = sbr.rel (%p1177) target = $region76
    $region75: #{decoder_forward.8} parent=5 // pred_region
      %s1180 = ssub.s32 %s18, 2
      // Predicated region
      $region77: #{decoder_forward.8} parent=75 // pred_check
        %p1181 = pneg %p304
      $region78: #{decoder_forward.8} parent=75 // pred_check_branch
        %1183 = sbr.rel (%p1181) target = $region80
      $region79: #{decoder_forward.8} parent=75 // pred_region
        %p1184 = scmp.lt.s32.totalorder %s24, 1
        %s1185 = scalar_select %p1184, %s24, 1
        %s1186 = smul.addr %s1185, 8
        %s1187 = scalar_lea.vmem %s12, %s1186
      $region80: #{decoder_forward.8} parent=75 // pred_fallthru
        _
    $region76: #{decoder_forward.8} parent=5 // pred_fallthru
      _
  $region6: #{decoder_forward.8} parent=0 // loop_footer
    %s22 = sadd.s32 1, %s18
  $region7: #{decoder_forward.8} parent=0 // loop_footer_branch
    %17 = sbr.rel target = $region3
  $region8: #{decoder_forward.8} parent=0 // loop_exit
    _

// kernel: decoder_forward.10
$region0: #{decoder_forward.10}
  #allocation0 [shape = 'u32[]', space=smem, size = 0x4, offset = 0x4, fixed_abs, tag = 'smem constant byte address 0x4 - core index']
  #allocation1 [shape = 'u32[144,128]{1,0:T(1,128)}', space=vmem, size = 0x12000, scoped, tag = 'internal scratch']
  %s0 = inlined_call_operand.vmem [shape: f32[2,8,32], index: 0, kind: input, shape index: {}, may-alias: {0,7}]
  %s1 = inlined_call_operand.vmem [shape: f32[1,32], index: 1, kind: input, shape index: {}]
  %s2 = inlined_call_operand.vmem [shape: f32[1,32], index: 2, kind: input, shape index: {}]
  %s3 = inlined_call_operand.vmem [shape: bf16[32,64], index: 3, kind: input, shape index: {}]
  %s4 = inlined_call_operand.vmem [shape: f32[1,64], index: 4, kind: input, shape index: {}]
  %s5 = inlined_call_operand.vmem [shape: bf16[64,32], index: 5, kind: input, shape index: {}]
  %s6 = inlined_call_operand.vmem [shape: f32[1,32], index: 6, kind: input, shape index: {}]
  %s7 = inlined_call_operand.vmem [shape: f32[2,8,32], index: 7, kind: output, shape index: {}, may-alias: {0,7}]
  %s8 = sld [smem:[#allocation0]]
  $region61: #{decoder_forward.10} parent=0
    _
  %s10 = ssub.s32 1, %s8
  %s11 = scalar_select 0, %s10, %s8
  loop: start=0, step=1, limit=4
  $region2: #{decoder_forward.10} parent=0 // loop_pre_header
    _
  $region3: #{decoder_forward.10} parent=0 // loop_header
    %s13 = sphi 0, %s17
    %p14 = scmp.ge.s32.totalorder %s13, 4
    %s20 = sphi 0, %s32
    %s21 = sphi 0, %s28
    %s22 = sphi 0, %s20
    %s23 = sphi 0, %s21
    %s24 = sphi 0, %s22
    %s25 = sphi 0, %s23
    %s37 = sphi 0, %s39
    %s40 = sphi 0, %s37
    %s41 = sphi 0, %s40
    %s57 = sphi 0, %s41
    %s61 = sphi 0, %s61
    %s63 = sphi 0, %s61
    %s64 = sphi 0, %s63
    %s78 = sphi 0, %s64
    %s82 = sphi 0, %s82
    %s84 = sphi 0, %s82
    %s85 = sphi 0, %s84
    %s99 = sphi 0, %s85
    %s103 = sphi 0, %s103
    %s105 = sphi 0, %s103
    %s106 = sphi 0, %s105
    %s120 = sphi 0, %s106
    %s124 = sphi 0, %s124
    %s126 = sphi 0, %s124
    %s127 = sphi 0, %s126
    %s141 = sphi 0, %s127
    %s145 = sphi 0, %s145
    %s147 = sphi 0, %s145
    %s148 = sphi 0, %s147
    %s162 = sphi 0, %s148
    %s166 = sphi 0, %s166
    %s168 = sphi 0, %s166
    %s169 = sphi 0, %s168
    %s183 = sphi 0, %s169
    %s191 = sphi 0, %s193
    %s194 = sphi 0, %s191
    %s195 = sphi 0, %s194
    %s211 = sphi 0, %s195
  $region4: #{decoder_forward.10} parent=0 // loop_header_branch
    %16 = sbr.rel (%p14) target = $region8
  $region5: #{decoder_forward.10} parent=0 // loop_body
    %s18 = ssub.s32 %s13, 1
    %s19 = ssub.s32 %s13, 2
    %s26 = sadd.s32 1, %s21
    %p27 = scmp.ge.s32.totalorder %s26, 1
    %s28 = scalar_select %p27, 0, %s26
    %s29 = sadd.s32 1, %s20
    %s30 = scalar_select %p27, %s29, %s20
    %p31 = scmp.ge.s32.totalorder %s30, 2
    %s32 = scalar_select %p31, 0, %s30
    %s33 = ssub.s32 %s20, %s32
    %s34 = ssub.s32 %s21, %s28
    %s35 = sor.u32 %s33, %s34
    %p36 = scmp.eq.s32.totalorder %s35, 0
    %s38 = sadd.s32 %s37, 1
    %s39 = scalar_select %p36, %s37, %s38
    %p42 = pneg %p36
    %p43 = scmp.eq.s32.totalorder %s13, 1
    %p44 = por %p42, %p43
    %p45 = scmp.ne.s32.totalorder %s37, %s40
    %p46 = scmp.eq.s32.totalorder %s13, 0
    %p47 = por %p45, %p46
    %p48 = scmp.ne.s32.totalorder %s37, %s40
    %p49 = scmp.eq.s32.totalorder %s18, 1
    %p50 = por %p48, %p49
    %p51 = scmp.ne.s32.totalorder %s40, %s41
    %p52 = scmp.eq.s32.totalorder %s18, 0
    %p53 = por %p51, %p52
    %p54 = scmp.ne.s32.totalorder %s40, %s41
    %p55 = scmp.eq.s32.totalorder %s19, 1
    %p56 = por %p54, %p55
    %p58 = scmp.ne.s32.totalorder %s41, %s57
    %p59 = scmp.eq.s32.totalorder %s19, 0
    %p60 = por %p58, %p59
    %s62 = sadd.s32 %s61, 1
    %p65 = scmp.eq.s32.totalorder %s13, 1
    %p66 = scmp.ne.s32.totalorder %s61, %s63
    %p67 = scmp.eq.s32.totalorder %s13, 0
    %p68 = por %p66, %p67
    %p69 = scmp.ne.s32.totalorder %s61, %s63
    %p70 = scmp.eq.s32.totalorder %s18, 1
    %p71 = por %p69, %p70
    %p72 = scmp.ne.s32.totalorder %s63, %s64
    %p73 = scmp.eq.s32.totalorder %s18, 0
    %p74 = por %p72, %p73
    %p75 = scmp.ne.s32.totalorder %s63, %s64
    %p76 = scmp.eq.s32.totalorder %s19, 1
    %p77 = por %p75, %p76
    %p79 = scmp.ne.s32.totalorder %s64, %s78
    %p80 = scmp.eq.s32.totalorder %s19, 0
    %p81 = por %p79, %p80
    %s83 = sadd.s32 %s82, 1
    %p86 = scmp.eq.s32.totalorder %s13, 1
    %p87 = scmp.ne.s32.totalorder %s82, %s84
    %p88 = scmp.eq.s32.totalorder %s13, 0
    %p89 = por %p87, %p88
    %p90 = scmp.ne.s32.totalorder %s82, %s84
    %p91 = scmp.eq.s32.totalorder %s18, 1
    %p92 = por %p90, %p91
    %p93 = scmp.ne.s32.totalorder %s84, %s85
    %p94 = scmp.eq.s32.totalorder %s18, 0
    %p95 = por %p93, %p94
    %p96 = scmp.ne.s32.totalorder %s84, %s85
    %p97 = scmp.eq.s32.totalorder %s19, 1
    %p98 = por %p96, %p97
    %p100 = scmp.ne.s32.totalorder %s85, %s99
    %p101 = scmp.eq.s32.totalorder %s19, 0
    %p102 = por %p100, %p101
    %s104 = sadd.s32 %s103, 1
    %p107 = scmp.eq.s32.totalorder %s13, 1
    %p108 = scmp.ne.s32.totalorder %s103, %s105
    %p109 = scmp.eq.s32.totalorder %s13, 0
    %p110 = por %p108, %p109
    %p111 = scmp.ne.s32.totalorder %s103, %s105
    %p112 = scmp.eq.s32.totalorder %s18, 1
    %p113 = por %p111, %p112
    %p114 = scmp.ne.s32.totalorder %s105, %s106
    %p115 = scmp.eq.s32.totalorder %s18, 0
    %p116 = por %p114, %p115
    %p117 = scmp.ne.s32.totalorder %s105, %s106
    %p118 = scmp.eq.s32.totalorder %s19, 1
    %p119 = por %p117, %p118
    %p121 = scmp.ne.s32.totalorder %s106, %s120
    %p122 = scmp.eq.s32.totalorder %s19, 0
    %p123 = por %p121, %p122
    %s125 = sadd.s32 %s124, 1
    %p128 = scmp.eq.s32.totalorder %s13, 1
    %p129 = scmp.ne.s32.totalorder %s124, %s126
    %p130 = scmp.eq.s32.totalorder %s13, 0
    %p131 = por %p129, %p130
    %p132 = scmp.ne.s32.totalorder %s124, %s126
    %p133 = scmp.eq.s32.totalorder %s18, 1
    %p134 = por %p132, %p133
    %p135 = scmp.ne.s32.totalorder %s126, %s127
    %p136 = scmp.eq.s32.totalorder %s18, 0
    %p137 = por %p135, %p136
    %p138 = scmp.ne.s32.totalorder %s126, %s127
    %p139 = scmp.eq.s32.totalorder %s19, 1
    %p140 = por %p138, %p139
    %p142 = scmp.ne.s32.totalorder %s127, %s141
    %p143 = scmp.eq.s32.totalorder %s19, 0
    %p144 = por %p142, %p143
    %s146 = sadd.s32 %s145, 1
    %p149 = scmp.eq.s32.totalorder %s13, 1
    %p150 = scmp.ne.s32.totalorder %s145, %s147
    %p151 = scmp.eq.s32.totalorder %s13, 0
    %p152 = por %p150, %p151
    %p153 = scmp.ne.s32.totalorder %s145, %s147
    %p154 = scmp.eq.s32.totalorder %s18, 1
    %p155 = por %p153, %p154
    %p156 = scmp.ne.s32.totalorder %s147, %s148
    %p157 = scmp.eq.s32.totalorder %s18, 0
    %p158 = por %p156, %p157
    %p159 = scmp.ne.s32.totalorder %s147, %s148
    %p160 = scmp.eq.s32.totalorder %s19, 1
    %p161 = por %p159, %p160
    %p163 = scmp.ne.s32.totalorder %s148, %s162
    %p164 = scmp.eq.s32.totalorder %s19, 0
    %p165 = por %p163, %p164
    %s167 = sadd.s32 %s166, 1
    %p170 = scmp.eq.s32.totalorder %s13, 1
    %p171 = scmp.ne.s32.totalorder %s166, %s168
    %p172 = scmp.eq.s32.totalorder %s13, 0
    %p173 = por %p171, %p172
    %p174 = scmp.ne.s32.totalorder %s166, %s168
    %p175 = scmp.eq.s32.totalorder %s18, 1
    %p176 = por %p174, %p175
    %p177 = scmp.ne.s32.totalorder %s168, %s169
    %p178 = scmp.eq.s32.totalorder %s18, 0
    %p179 = por %p177, %p178
    %p180 = scmp.ne.s32.totalorder %s168, %s169
    %p181 = scmp.eq.s32.totalorder %s19, 1
    %p182 = por %p180, %p181
    %p184 = scmp.ne.s32.totalorder %s169, %s183
    %p185 = scmp.eq.s32.totalorder %s19, 0
    %p186 = por %p184, %p185
    %s187 = ssub.s32 %s20, %s32
    %s188 = ssub.s32 %s21, %s28
    %s189 = sor.u32 %s187, %s188
    %p190 = scmp.eq.s32.totalorder %s189, 0
    %s192 = sadd.s32 %s191, 1
    %s193 = scalar_select %p190, %s191, %s192
    %p196 = pneg %p190
    %p197 = scmp.eq.s32.totalorder %s13, 1
    %p198 = por %p196, %p197
    %p199 = scmp.ne.s32.totalorder %s191, %s194
    %p200 = scmp.eq.s32.totalorder %s13, 0
    %p201 = por %p199, %p200
    %p202 = scmp.ne.s32.totalorder %s191, %s194
    %p203 = scmp.eq.s32.totalorder %s18, 1
    %p204 = por %p202, %p203
    %p205 = scmp.ne.s32.totalorder %s194, %s195
    %p206 = scmp.eq.s32.totalorder %s18, 0
    %p207 = por %p205, %p206
    %p208 = scmp.ne.s32.totalorder %s194, %s195
    %p209 = scmp.eq.s32.totalorder %s19, 1
    %p210 = por %p208, %p209
    %p212 = scmp.ne.s32.totalorder %s195, %s211
    %p213 = scmp.eq.s32.totalorder %s19, 0
    %p214 = por %p212, %p213
    %p215 = scmp.le.s32.totalorder 1, %s13
    %p216 = scmp.lt.s32.totalorder %s13, 3
    %p217 = pnand %p215, %p216
    %p218 = pneg %p217
    // Predicated region
    $region9: #{decoder_forward.10} parent=5 // pred_check
      _
    $region10: #{decoder_forward.10} parent=5 // pred_check_branch
      %220 = sbr.rel (%p217) target = $region12
    $region11: #{decoder_forward.10} parent=5 // pred_region
      %s221 = ssub.s32 %s13, 1
      // Predicated region
      $region13: #{decoder_forward.10} parent=11 // pred_check
        %p222 = pneg %p74
      $region14: #{decoder_forward.10} parent=11 // pred_check_branch
        %224 = sbr.rel (%p222) target = $region16
      $region15: #{decoder_forward.10} parent=11 // pred_region
        _
      $region16: #{decoder_forward.10} parent=11 // pred_fallthru
        _
      // Predicated region
      $region17: #{decoder_forward.10} parent=11 // pred_check
        %p225 = pneg %p95
      $region18: #{decoder_forward.10} parent=11 // pred_check_branch
        %227 = sbr.rel (%p225) target = $region20
      $region19: #{decoder_forward.10} parent=11 // pred_region
        _
      $region20: #{decoder_forward.10} parent=11 // pred_fallthru
        _
      // Predicated region
      $region21: #{decoder_forward.10} parent=11 // pred_check
        %p228 = pneg %p116
      $region22: #{decoder_forward.10} parent=11 // pred_check_branch
        %230 = sbr.rel (%p228) target = $region24
      $region23: #{decoder_forward.10} parent=11 // pred_region
        _
      $region24: #{decoder_forward.10} parent=11 // pred_fallthru
        _
      // Predicated region
      $region25: #{decoder_forward.10} parent=11 // pred_check
        %p231 = pneg %p137
      $region26: #{decoder_forward.10} parent=11 // pred_check_branch
        %233 = sbr.rel (%p231) target = $region28
      $region27: #{decoder_forward.10} parent=11 // pred_region
        _
      $region28: #{decoder_forward.10} parent=11 // pred_fallthru
        _
      // Predicated region
      $region29: #{decoder_forward.10} parent=11 // pred_check
        %p234 = pneg %p158
      $region30: #{decoder_forward.10} parent=11 // pred_check_branch
        %236 = sbr.rel (%p234) target = $region32
      $region31: #{decoder_forward.10} parent=11 // pred_region
        _
      $region32: #{decoder_forward.10} parent=11 // pred_fallthru
        _
      // Predicated region
      $region33: #{decoder_forward.10} parent=11 // pred_check
        %p237 = pneg %p179
      $region34: #{decoder_forward.10} parent=11 // pred_check_branch
        %239 = sbr.rel (%p237) target = $region36
      $region35: #{decoder_forward.10} parent=11 // pred_region
        _
      $region36: #{decoder_forward.10} parent=11 // pred_fallthru
        _
    $region12: #{decoder_forward.10} parent=5 // pred_fallthru
      _
    %p240 = scmp.lt.s32.totalorder %s13, 2
    // Predicated region
    $region37: #{decoder_forward.10} parent=5 // pred_check
      %p241 = pneg %p240
    $region38: #{decoder_forward.10} parent=5 // pred_check_branch
      %243 = sbr.rel (%p241) target = $region40
    $region39: #{decoder_forward.10} parent=5 // pred_region
      // Predicated region
      $region41: #{decoder_forward.10} parent=39 // pred_check
        %p244 = pneg %p47
      $region42: #{decoder_forward.10} parent=39 // pred_check_branch
        %246 = sbr.rel (%p244) target = $region44
      $region43: #{decoder_forward.10} parent=39 // pred_region
        %p247 = scmp.lt.s32.totalorder %s20, 1
        %s248 = scalar_select %p247, %s20, 1
        %p249 = scmp.lt.s32.totalorder %s21, 0
        %s250 = scalar_select %p249, %s21, 0
        %s251 = sadd.s32 %s250, %s248
        %s252 = smul.addr %s251, 8
        %s253 = scalar_lea.vmem %s0, %s252
      $region44: #{decoder_forward.10} parent=39 // pred_fallthru
        _
    $region40: #{decoder_forward.10} parent=5 // pred_fallthru
      _
    %p254 = scmp.le.s32.totalorder 1, %s13
    %p255 = scmp.lt.s32.totalorder %s13, 3
    %p256 = pnand %p254, %p255
    %p257 = pneg %p256
    // Predicated region
    $region45: #{decoder_forward.10} parent=5 // pred_check
      _
    $region46: #{decoder_forward.10} parent=5 // pred_check_branch
      %259 = sbr.rel (%p256) target = $region48
    $region47: #{decoder_forward.10} parent=5 // pred_region
      %s260 = ssub.s32 %s13, 1
      %p261 = scmp.lt.s32.totalorder %s22, 1
      %s262 = scalar_select %p261, %s22, 1
      %p263 = scmp.lt.s32.totalorder %s23, 0
      %s264 = scalar_select %p263, %s23, 0
      %s265 = sadd.s32 %s264, %s262
      %s266 = smul.addr %s265, 8
      %s267 = scalar_lea.vmem %s0, %s266
      %p268 = pneg %p53
      %p269 = pneg %p50
      %p270 = pneg %p74
      %p271 = pneg %p71
      %p272 = pneg %p95
      %p273 = pneg %p92
      %p274 = pneg %p116
      %p275 = pneg %p113
      %p276 = pneg %p137
      %p277 = pneg %p134
      %p278 = pneg %p158
      %p279 = pneg %p155
      %p280 = pneg %p179
      %p281 = pneg %p176
      %p282 = pneg %p207
      %p283 = pneg %p204
      %p284 = scmp.lt.s32.totalorder %s22, 1
      %s285 = scalar_select %p284, %s22, 1
      %p286 = scmp.lt.s32.totalorder %s23, 0
      %s287 = scalar_select %p286, %s23, 0
      %s288 = sadd.s32 %s287, %s285
      %s289 = smul.addr %s288, 8
      %s290 = scalar_lea.vmem %s7, %s289
      %p291 = scmp.lt.s32.totalorder %s22, 1
      %s292 = scalar_select %p291, %s22, 1
      %p293 = scmp.lt.s32.totalorder %s23, 0
      %s294 = scalar_select %p293, %s23, 0
      %s295 = sadd.s32 %s294, %s292
      %s296 = smul.addr %s295, 8
      %s297 = scalar_lea.vmem %s0, %s296
      %p298 = scmp.lt.s32.totalorder %s22, 1
      %s299 = scalar_select %p298, %s22, 1
      %p300 = scmp.lt.s32.totalorder %s23, 0
      %s301 = scalar_select %p300, %s23, 0
      %s302 = sadd.s32 %s301, %s299
      %s303 = smul.addr %s302, 8
      %s304 = scalar_lea.vmem %s7, %s303
      %v306 = vld [vmem:[%s297] sm:$0xff]
      %v307 = vld [vmem:[%s1] sm:$0x1]
      %v308 = vld [vmem:[%s2] sm:$0x1]
      %vm309 = vcmask 261120
      %v310 = vsel %vm309, %v306, 0.0
      %311 = vadd.xlane.f32.xlu0 %v310
      %v312 = vpop.xlane.xlu0 %311
      %v313 = vrcp.pop 32.0
      %v314 = vmul.f32 %v312, %v313
      %v315 = vsub.f32 %v306, %v314
      %v316 = vmul.f32 %v315, %v315
      %v317 = vsel %vm309, %v316, 0.0
      %318 = vadd.xlane.f32.xlu0 %v317
      %v319 = vpop.xlane.xlu0 %318
      %v320 = vmul.f32 %v319, %v313
      %v321 = vadd.f32 %v320, 1e-05
      %v322 = vrsqrt.pop %v321
      %v323 = vmul.f32 %v315, %v322
      %v325 = vlaneseq
      %v326 = vshrl.u32 %v325, 7
      %v327 = vsub.s32 0, %v326
      %v328 = vrot.slane %v307, %v327
      %v330 = vmul.f32 %v323, %v328
      %v332 = vlaneseq
      %v333 = vshrl.u32 %v332, 7
      %v334 = vsub.s32 0, %v333
      %v335 = vrot.slane %v308, %v334
      %v337 = vadd.f32 %v330, %v335
      %v338 = vpack.c.bf16 %v337, %v337
      %v339 = vld [vmem:[%s3] sm:$0xf]
      %v340 = vld [vmem:[%s3 + $0x4] sm:$0xf]
      %v341 = vld [vmem:[%s3 + $0x8] sm:$0xf]
      %v342 = vld [vmem:[%s3 + $0xc] sm:$0xf]
      %v343 = vld [vmem:[%s4] sm:$0x1]
      %v345 = vlaneseq
      %v346 = vshrl.u32 %v345, 7
      %v347 = vsub.s32 0, %v346
      %v348 = vrot.slane %v343, %v347
      %v354 = vunpack.c.l.b16 %v339
      %v355 = vunpack.c.l.b16 %v340
      %v356 = vunpack.c.l.b16 %v341
      %v357 = vunpack.c.l.b16 %v342
      %v358 = vpack.c.b16 %v355, %v354
      %v359 = vpack.c.b16 %v357, %v356
      %v363 = vsel %vm309, %v338, 0
      %365 = vmatprep.subr.bf16.mxu0 0
      %366 = vmatpush1.bf16.msra.mxu0 %v358
      %367 = vmatprep.subr.bf16.mxu0 0
      %368 = vmatpush1.bf16.msra.mxu0 %v359
      %369 = vmatprep.subr.bf16.mxu0 0
      %370 = vmatpush1.bf16.msra.mxu0 0
      %371 = vmatprep.subr.bf16.mxu0 0
      %372 = vmatpush1.bf16.msra.mxu0 0
      %373 = vmatprep.subr.bf16.mxu0 0
      %374 = vmatpush1.bf16.msra.mxu0 0
      %375 = vmatprep.subr.bf16.mxu0 0
      %376 = vmatpush1.bf16.msra.mxu0 0
      %377 = vmatprep.subr.bf16.mxu0 0
      %378 = vmatpush1.bf16.msra.mxu0 0
      %379 = vmatprep.subr.bf16.mxu0 0
      %380 = vmatpush1.bf16.msra.mxu0 0
      %381 = vmatprep.subr.bf16.mxu0 0
      %382 = vmatpush1.bf16.msra.mxu0 0
      %383 = vmatprep.subr.bf16.mxu0 0
      %384 = vmatpush1.bf16.msra.mxu0 0
      %385 = vmatprep.subr.bf16.mxu0 0
      %386 = vmatpush1.bf16.msra.mxu0 0
      %387 = vmatprep.subr.bf16.mxu0 0
      %388 = vmatpush1.bf16.msra.mxu0 0
      %389 = vmatprep.subr.bf16.mxu0 0
      %390 = vmatpush1.bf16.msra.mxu0 0
      %391 = vmatprep.subr.bf16.mxu0 0
      %392 = vmatpush1.bf16.msra.mxu0 0
      %393 = vmatprep.subr.bf16.mxu0 0
      %394 = vmatpush1.bf16.msra.mxu0 0
      %395 = vmatprep.subr.bf16.mxu0 0
      %396 = vmatpush1.bf16.msra.mxu0 0
      %397 = vmatprep.mubr.bf16.mxu0 0
      %398 = vmatmul.mubr.bf16.gmra.mrb[0].mxu0 %v363
      %v399 = vpop.f32.mrb[0].mxu0
      %v400 = vadd.f32 %v348, %v399
      %v401 = vpop.f32.mrb[0].mxu0
      %v402 = vpop.f32.mrb[0].mxu0
      %v403 = vpop.f32.mrb[0].mxu0
      %404 = vdwg.mxu0
      %v405 = vmax.f32 %v400, 0.0
      %v406 = vpack.c.bf16 %v405, %v405
      %v407 = vld [vmem:[%s5] sm:$0xf]
      %v408 = vld [vmem:[%s5 + $0x4] sm:$0xf]
      %v409 = vld [vmem:[%s5 + $0x8] sm:$0xf]
      %v410 = vld [vmem:[%s5 + $0xc] sm:$0xf]
      %v411 = vld [vmem:[%s5 + $0x10] sm:$0xf]
      %v412 = vld [vmem:[%s5 + $0x14] sm:$0xf]
      %v413 = vld [vmem:[%s5 + $0x18] sm:$0xf]
      %v414 = vld [vmem:[%s5 + $0x1c] sm:$0xf]
      %v415 = vld [vmem:[%s6] sm:$0x1]
      %v417 = vlaneseq
      %v418 = vshrl.u32 %v417, 7
      %v419 = vsub.s32 0, %v418
      %v420 = vrot.slane %v415, %v419
      %v430 = vunpack.c.l.b16 %v407
      %v431 = vunpack.c.l.b16 %v408
      %v432 = vunpack.c.l.b16 %v409
      %v433 = vunpack.c.l.b16 %v410
      %v434 = vunpack.c.l.b16 %v411
      %v435 = vunpack.c.l.b16 %v412
      %v436 = vunpack.c.l.b16 %v413
      %v437 = vunpack.c.l.b16 %v414
      %v438 = vpack.c.b16 %v431, %v430
      %v439 = vpack.c.b16 %v433, %v432
      %v440 = vpack.c.b16 %v435, %v434
      %v441 = vpack.c.b16 %v437, %v436
      %vm446 = vcmask 523264
      %v448 = vsel %vm446, %v406, 0
      %450 = vmatprep.subr.bf16.mxu0 0
      %451 = vmatpush1.bf16.msra.mxu0 %v438
      %452 = vmatprep.subr.bf16.mxu0 0
      %453 = vmatpush1.bf16.msra.mxu0 %v439
      %454 = vmatprep.subr.bf16.mxu0 0
      %455 = vmatpush1.bf16.msra.mxu0 %v440
      %456 = vmatprep.subr.bf16.mxu0 0
      %457 = vmatpush1.bf16.msra.mxu0 %v441
      %458 = vmatprep.subr.bf16.mxu0 0
      %459 = vmatpush1.bf16.msra.mxu0 0
      %460 = vmatprep.subr.bf16.mxu0 0
      %461 = vmatpush1.bf16.msra.mxu0 0
      %462 = vmatprep.subr.bf16.mxu0 0
      %463 = vmatpush1.bf16.msra.mxu0 0
      %464 = vmatprep.subr.bf16.mxu0 0
      %465 = vmatpush1.bf16.msra.mxu0 0
      %466 = vmatprep.subr.bf16.mxu0 0
      %467 = vmatpush1.bf16.msra.mxu0 0
      %468 = vmatprep.subr.bf16.mxu0 0
      %469 = vmatpush1.bf16.msra.mxu0 0
      %470 = vmatprep.subr.bf16.mxu0 0
      %471 = vmatpush1.bf16.msra.mxu0 0
      %472 = vmatprep.subr.bf16.mxu0 0
      %473 = vmatpush1.bf16.msra.mxu0 0
      %474 = vmatprep.subr.bf16.mxu0 0
      %475 = vmatpush1.bf16.msra.mxu0 0
      %476 = vmatprep.subr.bf16.mxu0 0
      %477 = vmatpush1.bf16.msra.mxu0 0
      %478 = vmatprep.subr.bf16.mxu0 0
      %479 = vmatpush1.bf16.msra.mxu0 0
      %480 = vmatprep.subr.bf16.mxu0 0
      %481 = vmatpush1.bf16.msra.mxu0 0
      %482 = vmatprep.mubr.bf16.mxu0 0
      %483 = vmatmul.mubr.bf16.gmra.mrb[0].mxu0 %v448
      %v484 = vpop.f32.mrb[0].mxu0
      %v485 = vadd.f32 %v420, %v484
      %v486 = vpop.f32.mrb[0].mxu0
      %v487 = vpop.f32.mrb[0].mxu0
      %v488 = vpop.f32.mrb[0].mxu0
      %489 = vdwg.mxu0
      %v490 = vadd.f32 %v306, %v485
      %491 = vst.msk [vmem:[%s304] sm:$0xff] %vm309, %v490
      %p492 = scmp.lt.s32.totalorder %s22, 1
      %s493 = scalar_select %p492, %s22, 1
      %p494 = scmp.lt.s32.totalorder %s23, 0
      %s495 = scalar_select %p494, %s23, 0
      %s496 = sadd.s32 %s495, %s493
      %s497 = smul.addr %s496, 8
      %s498 = scalar_lea.vmem %s7, %s497
      // Predicated region
      $region49: #{decoder_forward.10} parent=47 // pred_check
        %p499 = pneg %p204
      $region50: #{decoder_forward.10} parent=47 // pred_check_branch
        %501 = sbr.rel (%p499) target = $region52
      $region51: #{decoder_forward.10} parent=47 // pred_region
        _
      $region52: #{decoder_forward.10} parent=47 // pred_fallthru
        _
    $region48: #{decoder_forward.10} parent=5 // pred_fallthru
      _
    %p502 = scmp.le.s32.totalorder 2, %s13
    // Predicated region
    $region53: #{decoder_forward.10} parent=5 // pred_check
      %p503 = pneg %p502
    $region54: #{decoder_forward.10} parent=5 // pred_check_branch
      %505 = sbr.rel (%p503) target = $region56
    $region55: #{decoder_forward.10} parent=5 // pred_region
      %s506 = ssub.s32 %s13, 2
      // Predicated region
      $region57: #{decoder_forward.10} parent=55 // pred_check
        %p507 = pneg %p210
      $region58: #{decoder_forward.10} parent=55 // pred_check_branch
        %509 = sbr.rel (%p507) target = $region60
      $region59: #{decoder_forward.10} parent=55 // pred_region
        %p510 = scmp.lt.s32.totalorder %s24, 1
        %s511 = scalar_select %p510, %s24, 1
        %p512 = scmp.lt.s32.totalorder %s25, 0
        %s513 = scalar_select %p512, %s25, 0
        %s514 = sadd.s32 %s513, %s511
        %s515 = smul.addr %s514, 8
        %s516 = scalar_lea.vmem %s7, %s515
      $region60: #{decoder_forward.10} parent=55 // pred_fallthru
        _
    $region56: #{decoder_forward.10} parent=5 // pred_fallthru
      _
  $region6: #{decoder_forward.10} parent=0 // loop_footer
    %s17 = sadd.s32 1, %s13
  $region7: #{decoder_forward.10} parent=0 // loop_footer_branch
    %12 = sbr.rel target = $region3
  $region8: #{decoder_forward.10} parent=0 // loop_exit
    _

// kernel: decoder_forward.9
$region0: #{decoder_forward.9}
  #allocation0 [shape = 'u32[]', space=smem, size = 0x4, offset = 0x4, fixed_abs, tag = 'smem constant byte address 0x4 - core index']
  #allocation1 [shape = 'u32[144,128]{1,0:T(1,128)}', space=vmem, size = 0x12000, scoped, tag = 'internal scratch']
  %s0 = inlined_call_operand.vmem [shape: f32[2,8,32], index: 0, kind: input, shape index: {}, may-alias: {0,13}]
  %s1 = inlined_call_operand.vmem [shape: f32[2,8,32], index: 1, kind: input, shape index: {}]
  %s2 = inlined_call_operand.vmem [shape: f32[2,1,8], index: 2, kind: input, shape index: {}]
  %s3 = inlined_call_operand.vmem [shape: f32[1,32], index: 3, kind: input, shape index: {}]
  %s4 = inlined_call_operand.vmem [shape: f32[1,32], index: 4, kind: input, shape index: {}]
  %s5 = inlined_call_operand.vmem [shape: bf16[2,32,16], index: 5, kind: input, shape index: {}]
  %s6 = inlined_call_operand.vmem [shape: f32[2,1,16], index: 6, kind: input, shape index: {}]
  %s7 = inlined_call_operand.vmem [shape: bf16[2,32,16], index: 7, kind: input, shape index: {}]
  %s8 = inlined_call_operand.vmem [shape: f32[2,1,16], index: 8, kind: input, shape index: {}]
  %s9 = inlined_call_operand.vmem [shape: bf16[2,32,16], index: 9, kind: input, shape index: {}]
  %s10 = inlined_call_operand.vmem [shape: f32[2,1,16], index: 10, kind: input, shape index: {}]
  %s11 = inlined_call_operand.vmem [shape: bf16[2,16,32], index: 11, kind: input, shape index: {}]
  %s12 = inlined_call_operand.vmem [shape: f32[1,32], index: 12, kind: input, shape index: {}]
  %s13 = inlined_call_operand.vmem [shape: f32[2,8,32], index: 13, kind: output, shape index: {}, may-alias: {0,13}]
  %s14 = sld [smem:[#allocation0]]
  $region85: #{decoder_forward.9} parent=0
    _
  %s16 = ssub.s32 1, %s14
  %s17 = scalar_select 0, %s16, %s14
  loop: start=0, step=1, limit=4
  $region2: #{decoder_forward.9} parent=0 // loop_pre_header
    _
  $region3: #{decoder_forward.9} parent=0 // loop_header
    %s19 = sphi 0, %s23
    %p20 = scmp.ge.s32.totalorder %s19, 4
    %s29 = sphi 0, %s31
    %s32 = sphi 0, %s29
    %s33 = sphi 0, %s32
    %s49 = sphi 0, %s33
    %s55 = sphi 0, %s57
    %s58 = sphi 0, %s55
    %s59 = sphi 0, %s58
    %s75 = sphi 0, %s59
    %s81 = sphi 0, %s83
    %s84 = sphi 0, %s81
    %s85 = sphi 0, %s84
    %s101 = sphi 0, %s85
    %s105 = sphi 0, %s105
    %s107 = sphi 0, %s105
    %s108 = sphi 0, %s107
    %s122 = sphi 0, %s108
    %s126 = sphi 0, %s126
    %s128 = sphi 0, %s126
    %s129 = sphi 0, %s128
    %s143 = sphi 0, %s129
    %s147 = sphi 0, %s147
    %s149 = sphi 0, %s147
    %s150 = sphi 0, %s149
    %s164 = sphi 0, %s150
    %s168 = sphi 0, %s168
    %s170 = sphi 0, %s168
    %s171 = sphi 0, %s170
    %s185 = sphi 0, %s171
    %s189 = sphi 0, %s189
    %s191 = sphi 0, %s189
    %s192 = sphi 0, %s191
    %s206 = sphi 0, %s192
    %s210 = sphi 0, %s210
    %s212 = sphi 0, %s210
    %s213 = sphi 0, %s212
    %s227 = sphi 0, %s213
    %s231 = sphi 0, %s231
    %s233 = sphi 0, %s231
    %s234 = sphi 0, %s233
    %s248 = sphi 0, %s234
    %s252 = sphi 0, %s252
    %s254 = sphi 0, %s252
    %s255 = sphi 0, %s254
    %s269 = sphi 0, %s255
    %s273 = sphi 0, %s273
    %s275 = sphi 0, %s273
    %s276 = sphi 0, %s275
    %s290 = sphi 0, %s276
    %s294 = sphi 0, %s294
    %s296 = sphi 0, %s294
    %s297 = sphi 0, %s296
    %s311 = sphi 0, %s297
    %s317 = sphi 0, %s319
    %s320 = sphi 0, %s317
    %s321 = sphi 0, %s320
    %s337 = sphi 0, %s321
  $region4: #{decoder_forward.9} parent=0 // loop_header_branch
    %22 = sbr.rel (%p20) target = $region8
  $region5: #{decoder_forward.9} parent=0 // loop_body
    %s24 = ssub.s32 %s19, 1
    %s25 = ssub.s32 %s19, 2
    %s26 = sadd.s32 %s19, 1
    %s27 = ssub.s32 %s19, %s26
    %p28 = scmp.eq.s32.totalorder %s27, 0
    %s30 = sadd.s32 %s29, 1
    %s31 = scalar_select %p28, %s29, %s30
    %p34 = pneg %p28
    %p35 = scmp.eq.s32.totalorder %s19, 1
    %p36 = por %p34, %p35
    %p37 = scmp.ne.s32.totalorder %s29, %s32
    %p38 = scmp.eq.s32.totalorder %s19, 0
    %p39 = por %p37, %p38
    %p40 = scmp.ne.s32.totalorder %s29, %s32
    %p41 = scmp.eq.s32.totalorder %s24, 1
    %p42 = por %p40, %p41
    %p43 = scmp.ne.s32.totalorder %s32, %s33
    %p44 = scmp.eq.s32.totalorder %s24, 0
    %p45 = por %p43, %p44
    %p46 = scmp.ne.s32.totalorder %s32, %s33
    %p47 = scmp.eq.s32.totalorder %s25, 1
    %p48 = por %p46, %p47
    %p50 = scmp.ne.s32.totalorder %s33, %s49
    %p51 = scmp.eq.s32.totalorder %s25, 0
    %p52 = por %p50, %p51
    %s53 = ssub.s32 %s19, %s26
    %p54 = scmp.eq.s32.totalorder %s53, 0
    %s56 = sadd.s32 %s55, 1
    %s57 = scalar_select %p54, %s55, %s56
    %p60 = pneg %p54
    %p61 = scmp.eq.s32.totalorder %s19, 1
    %p62 = por %p60, %p61
    %p63 = scmp.ne.s32.totalorder %s55, %s58
    %p64 = scmp.eq.s32.totalorder %s19, 0
    %p65 = por %p63, %p64
    %p66 = scmp.ne.s32.totalorder %s55, %s58
    %p67 = scmp.eq.s32.totalorder %s24, 1
    %p68 = por %p66, %p67
    %p69 = scmp.ne.s32.totalorder %s58, %s59
    %p70 = scmp.eq.s32.totalorder %s24, 0
    %p71 = por %p69, %p70
    %p72 = scmp.ne.s32.totalorder %s58, %s59
    %p73 = scmp.eq.s32.totalorder %s25, 1
    %p74 = por %p72, %p73
    %p76 = scmp.ne.s32.totalorder %s59, %s75
    %p77 = scmp.eq.s32.totalorder %s25, 0
    %p78 = por %p76, %p77
    %s79 = ssub.s32 %s19, %s26
    %p80 = scmp.eq.s32.totalorder %s79, 0
    %s82 = sadd.s32 %s81, 1
    %s83 = scalar_select %p80, %s81, %s82
    %p86 = pneg %p80
    %p87 = scmp.eq.s32.totalorder %s19, 1
    %p88 = por %p86, %p87
    %p89 = scmp.ne.s32.totalorder %s81, %s84
    %p90 = scmp.eq.s32.totalorder %s19, 0
    %p91 = por %p89, %p90
    %p92 = scmp.ne.s32.totalorder %s81, %s84
    %p93 = scmp.eq.s32.totalorder %s24, 1
    %p94 = por %p92, %p93
    %p95 = scmp.ne.s32.totalorder %s84, %s85
    %p96 = scmp.eq.s32.totalorder %s24, 0
    %p97 = por %p95, %p96
    %p98 = scmp.ne.s32.totalorder %s84, %s85
    %p99 = scmp.eq.s32.totalorder %s25, 1
    %p100 = por %p98, %p99
    %p102 = scmp.ne.s32.totalorder %s85, %s101
    %p103 = scmp.eq.s32.totalorder %s25, 0
    %p104 = por %p102, %p103
    %s106 = sadd.s32 %s105, 1
    %p109 = scmp.eq.s32.totalorder %s19, 1
    %p110 = scmp.ne.s32.totalorder %s105, %s107
    %p111 = scmp.eq.s32.totalorder %s19, 0
    %p112 = por %p110, %p111
    %p113 = scmp.ne.s32.totalorder %s105, %s107
    %p114 = scmp.eq.s32.totalorder %s24, 1
    %p115 = por %p113, %p114
    %p116 = scmp.ne.s32.totalorder %s107, %s108
    %p117 = scmp.eq.s32.totalorder %s24, 0
    %p118 = por %p116, %p117
    %p119 = scmp.ne.s32.totalorder %s107, %s108
    %p120 = scmp.eq.s32.totalorder %s25, 1
    %p121 = por %p119, %p120
    %p123 = scmp.ne.s32.totalorder %s108, %s122
    %p124 = scmp.eq.s32.totalorder %s25, 0
    %p125 = por %p123, %p124
    %s127 = sadd.s32 %s126, 1
    %p130 = scmp.eq.s32.totalorder %s19, 1
    %p131 = scmp.ne.s32.totalorder %s126, %s128
    %p132 = scmp.eq.s32.totalorder %s19, 0
    %p133 = por %p131, %p132
    %p134 = scmp.ne.s32.totalorder %s126, %s128
    %p135 = scmp.eq.s32.totalorder %s24, 1
    %p136 = por %p134, %p135
    %p137 = scmp.ne.s32.totalorder %s128, %s129
    %p138 = scmp.eq.s32.totalorder %s24, 0
    %p139 = por %p137, %p138
    %p140 = scmp.ne.s32.totalorder %s128, %s129
    %p141 = scmp.eq.s32.totalorder %s25, 1
    %p142 = por %p140, %p141
    %p144 = scmp.ne.s32.totalorder %s129, %s143
    %p145 = scmp.eq.s32.totalorder %s25, 0
    %p146 = por %p144, %p145
    %s148 = sadd.s32 %s147, 1
    %p151 = scmp.eq.s32.totalorder %s19, 1
    %p152 = scmp.ne.s32.totalorder %s147, %s149
    %p153 = scmp.eq.s32.totalorder %s19, 0
    %p154 = por %p152, %p153
    %p155 = scmp.ne.s32.totalorder %s147, %s149
    %p156 = scmp.eq.s32.totalorder %s24, 1
    %p157 = por %p155, %p156
    %p158 = scmp.ne.s32.totalorder %s149, %s150
    %p159 = scmp.eq.s32.totalorder %s24, 0
    %p160 = por %p158, %p159
    %p161 = scmp.ne.s32.totalorder %s149, %s150
    %p162 = scmp.eq.s32.totalorder %s25, 1
    %p163 = por %p161, %p162
    %p165 = scmp.ne.s32.totalorder %s150, %s164
    %p166 = scmp.eq.s32.totalorder %s25, 0
    %p167 = por %p165, %p166
    %s169 = sadd.s32 %s168, 1
    %p172 = scmp.eq.s32.totalorder %s19, 1
    %p173 = scmp.ne.s32.totalorder %s168, %s170
    %p174 = scmp.eq.s32.totalorder %s19, 0
    %p175 = por %p173, %p174
    %p176 = scmp.ne.s32.totalorder %s168, %s170
    %p177 = scmp.eq.s32.totalorder %s24, 1
    %p178 = por %p176, %p177
    %p179 = scmp.ne.s32.totalorder %s170, %s171
    %p180 = scmp.eq.s32.totalorder %s24, 0
    %p181 = por %p179, %p180
    %p182 = scmp.ne.s32.totalorder %s170, %s171
    %p183 = scmp.eq.s32.totalorder %s25, 1
    %p184 = por %p182, %p183
    %p186 = scmp.ne.s32.totalorder %s171, %s185
    %p187 = scmp.eq.s32.totalorder %s25, 0
    %p188 = por %p186, %p187
    %s190 = sadd.s32 %s189, 1
    %p193 = scmp.eq.s32.totalorder %s19, 1
    %p194 = scmp.ne.s32.totalorder %s189, %s191
    %p195 = scmp.eq.s32.totalorder %s19, 0
    %p196 = por %p194, %p195
    %p197 = scmp.ne.s32.totalorder %s189, %s191
    %p198 = scmp.eq.s32.totalorder %s24, 1
    %p199 = por %p197, %p198
    %p200 = scmp.ne.s32.totalorder %s191, %s192
    %p201 = scmp.eq.s32.totalorder %s24, 0
    %p202 = por %p200, %p201
    %p203 = scmp.ne.s32.totalorder %s191, %s192
    %p204 = scmp.eq.s32.totalorder %s25, 1
    %p205 = por %p203, %p204
    %p207 = scmp.ne.s32.totalorder %s192, %s206
    %p208 = scmp.eq.s32.totalorder %s25, 0
    %p209 = por %p207, %p208
    %s211 = sadd.s32 %s210, 1
    %p214 = scmp.eq.s32.totalorder %s19, 1
    %p215 = scmp.ne.s32.totalorder %s210, %s212
    %p216 = scmp.eq.s32.totalorder %s19, 0
    %p217 = por %p215, %p216
    %p218 = scmp.ne.s32.totalorder %s210, %s212
    %p219 = scmp.eq.s32.totalorder %s24, 1
    %p220 = por %p218, %p219
    %p221 = scmp.ne.s32.totalorder %s212, %s213
    %p222 = scmp.eq.s32.totalorder %s24, 0
    %p223 = por %p221, %p222
    %p224 = scmp.ne.s32.totalorder %s212, %s213
    %p225 = scmp.eq.s32.totalorder %s25, 1
    %p226 = por %p224, %p225
    %p228 = scmp.ne.s32.totalorder %s213, %s227
    %p229 = scmp.eq.s32.totalorder %s25, 0
    %p230 = por %p228, %p229
    %s232 = sadd.s32 %s231, 1
    %p235 = scmp.eq.s32.totalorder %s19, 1
    %p236 = scmp.ne.s32.totalorder %s231, %s233
    %p237 = scmp.eq.s32.totalorder %s19, 0
    %p238 = por %p236, %p237
    %p239 = scmp.ne.s32.totalorder %s231, %s233
    %p240 = scmp.eq.s32.totalorder %s24, 1
    %p241 = por %p239, %p240
    %p242 = scmp.ne.s32.totalorder %s233, %s234
    %p243 = scmp.eq.s32.totalorder %s24, 0
    %p244 = por %p242, %p243
    %p245 = scmp.ne.s32.totalorder %s233, %s234
    %p246 = scmp.eq.s32.totalorder %s25, 1
    %p247 = por %p245, %p246
    %p249 = scmp.ne.s32.totalorder %s234, %s248
    %p250 = scmp.eq.s32.totalorder %s25, 0
    %p251 = por %p249, %p250
    %s253 = sadd.s32 %s252, 1
    %p256 = scmp.eq.s32.totalorder %s19, 1
    %p257 = scmp.ne.s32.totalorder %s252, %s254
    %p258 = scmp.eq.s32.totalorder %s19, 0
    %p259 = por %p257, %p258
    %p260 = scmp.ne.s32.totalorder %s252, %s254
    %p261 = scmp.eq.s32.totalorder %s24, 1
    %p262 = por %p260, %p261
    %p263 = scmp.ne.s32.totalorder %s254, %s255
    %p264 = scmp.eq.s32.totalorder %s24, 0
    %p265 = por %p263, %p264
    %p266 = scmp.ne.s32.totalorder %s254, %s255
    %p267 = scmp.eq.s32.totalorder %s25, 1
    %p268 = por %p266, %p267
    %p270 = scmp.ne.s32.totalorder %s255, %s269
    %p271 = scmp.eq.s32.totalorder %s25, 0
    %p272 = por %p270, %p271
    %s274 = sadd.s32 %s273, 1
    %p277 = scmp.eq.s32.totalorder %s19, 1
    %p278 = scmp.ne.s32.totalorder %s273, %s275
    %p279 = scmp.eq.s32.totalorder %s19, 0
    %p280 = por %p278, %p279
    %p281 = scmp.ne.s32.totalorder %s273, %s275
    %p282 = scmp.eq.s32.totalorder %s24, 1
    %p283 = por %p281, %p282
    %p284 = scmp.ne.s32.totalorder %s275, %s276
    %p285 = scmp.eq.s32.totalorder %s24, 0
    %p286 = por %p284, %p285
    %p287 = scmp.ne.s32.totalorder %s275, %s276
    %p288 = scmp.eq.s32.totalorder %s25, 1
    %p289 = por %p287, %p288
    %p291 = scmp.ne.s32.totalorder %s276, %s290
    %p292 = scmp.eq.s32.totalorder %s25, 0
    %p293 = por %p291, %p292
    %s295 = sadd.s32 %s294, 1
    %p298 = scmp.eq.s32.totalorder %s19, 1
    %p299 = scmp.ne.s32.totalorder %s294, %s296
    %p300 = scmp.eq.s32.totalorder %s19, 0
    %p301 = por %p299, %p300
    %p302 = scmp.ne.s32.totalorder %s294, %s296
    %p303 = scmp.eq.s32.totalorder %s24, 1
    %p304 = por %p302, %p303
    %p305 = scmp.ne.s32.totalorder %s296, %s297
    %p306 = scmp.eq.s32.totalorder %s24, 0
    %p307 = por %p305, %p306
    %p308 = scmp.ne.s32.totalorder %s296, %s297
    %p309 = scmp.eq.s32.totalorder %s25, 1
    %p310 = por %p308, %p309
    %p312 = scmp.ne.s32.totalorder %s297, %s311
    %p313 = scmp.eq.s32.totalorder %s25, 0
    %p314 = por %p312, %p313
    %s315 = ssub.s32 %s19, %s26
    %p316 = scmp.eq.s32.totalorder %s315, 0
    %s318 = sadd.s32 %s317, 1
    %s319 = scalar_select %p316, %s317, %s318
    %p322 = pneg %p316
    %p323 = scmp.eq.s32.totalorder %s19, 1
    %p324 = por %p322, %p323
    %p325 = scmp.ne.s32.totalorder %s317, %s320
    %p326 = scmp.eq.s32.totalorder %s19, 0
    %p327 = por %p325, %p326
    %p328 = scmp.ne.s32.totalorder %s317, %s320
    %p329 = scmp.eq.s32.totalorder %s24, 1
    %p330 = por %p328, %p329
    %p331 = scmp.ne.s32.totalorder %s320, %s321
    %p332 = scmp.eq.s32.totalorder %s24, 0
    %p333 = por %p331, %p332
    %p334 = scmp.ne.s32.totalorder %s320, %s321
    %p335 = scmp.eq.s32.totalorder %s25, 1
    %p336 = por %p334, %p335
    %p338 = scmp.ne.s32.totalorder %s321, %s337
    %p339 = scmp.eq.s32.totalorder %s25, 0
    %p340 = por %p338, %p339
    %p341 = scmp.le.s32.totalorder 1, %s19
    %p342 = scmp.lt.s32.totalorder %s19, 3
    %p343 = pnand %p341, %p342
    %p344 = pneg %p343
    // Predicated region
    $region9: #{decoder_forward.9} parent=5 // pred_check
      _
    $region10: #{decoder_forward.9} parent=5 // pred_check_branch
      %346 = sbr.rel (%p343) target = $region12
    $region11: #{decoder_forward.9} parent=5 // pred_region
      %s347 = ssub.s32 %s19, 1
      // Predicated region
      $region13: #{decoder_forward.9} parent=11 // pred_check
        %p348 = pneg %p118
      $region14: #{decoder_forward.9} parent=11 // pred_check_branch
        %350 = sbr.rel (%p348) target = $region16
      $region15: #{decoder_forward.9} parent=11 // pred_region
        _
      $region16: #{decoder_forward.9} parent=11 // pred_fallthru
        _
      // Predicated region
      $region17: #{decoder_forward.9} parent=11 // pred_check
        %p351 = pneg %p139
      $region18: #{decoder_forward.9} parent=11 // pred_check_branch
        %353 = sbr.rel (%p351) target = $region20
      $region19: #{decoder_forward.9} parent=11 // pred_region
        _
      $region20: #{decoder_forward.9} parent=11 // pred_fallthru
        _
      // Predicated region
      $region21: #{decoder_forward.9} parent=11 // pred_check
        %p354 = pneg %p160
      $region22: #{decoder_forward.9} parent=11 // pred_check_branch
        %356 = sbr.rel (%p354) target = $region24
      $region23: #{decoder_forward.9} parent=11 // pred_region
        _
      $region24: #{decoder_forward.9} parent=11 // pred_fallthru
        _
      // Predicated region
      $region25: #{decoder_forward.9} parent=11 // pred_check
        %p357 = pneg %p181
      $region26: #{decoder_forward.9} parent=11 // pred_check_branch
        %359 = sbr.rel (%p357) target = $region28
      $region27: #{decoder_forward.9} parent=11 // pred_region
        _
      $region28: #{decoder_forward.9} parent=11 // pred_fallthru
        _
      // Predicated region
      $region29: #{decoder_forward.9} parent=11 // pred_check
        %p360 = pneg %p202
      $region30: #{decoder_forward.9} parent=11 // pred_check_branch
        %362 = sbr.rel (%p360) target = $region32
      $region31: #{decoder_forward.9} parent=11 // pred_region
        _
      $region32: #{decoder_forward.9} parent=11 // pred_fallthru
        _
      // Predicated region
      $region33: #{decoder_forward.9} parent=11 // pred_check
        %p363 = pneg %p223
      $region34: #{decoder_forward.9} parent=11 // pred_check_branch
        %365 = sbr.rel (%p363) target = $region36
      $region35: #{decoder_forward.9} parent=11 // pred_region
        _
      $region36: #{decoder_forward.9} parent=11 // pred_fallthru
        _
      // Predicated region
      $region37: #{decoder_forward.9} parent=11 // pred_check
        %p366 = pneg %p244
      $region38: #{decoder_forward.9} parent=11 // pred_check_branch
        %368 = sbr.rel (%p366) target = $region40
      $region39: #{decoder_forward.9} parent=11 // pred_region
        _
      $region40: #{decoder_forward.9} parent=11 // pred_fallthru
        _
      // Predicated region
      $region41: #{decoder_forward.9} parent=11 // pred_check
        %p369 = pneg %p265
      $region42: #{decoder_forward.9} parent=11 // pred_check_branch
        %371 = sbr.rel (%p369) target = $region44
      $region43: #{decoder_forward.9} parent=11 // pred_region
        _
      $region44: #{decoder_forward.9} parent=11 // pred_fallthru
        _
      // Predicated region
      $region45: #{decoder_forward.9} parent=11 // pred_check
        %p372 = pneg %p286
      $region46: #{decoder_forward.9} parent=11 // pred_check_branch
        %374 = sbr.rel (%p372) target = $region48
      $region47: #{decoder_forward.9} parent=11 // pred_region
        _
      $region48: #{decoder_forward.9} parent=11 // pred_fallthru
        _
      // Predicated region
      $region49: #{decoder_forward.9} parent=11 // pred_check
        %p375 = pneg %p307
      $region50: #{decoder_forward.9} parent=11 // pred_check_branch
        %377 = sbr.rel (%p375) target = $region52
      $region51: #{decoder_forward.9} parent=11 // pred_region
        _
      $region52: #{decoder_forward.9} parent=11 // pred_fallthru
        _
    $region12: #{decoder_forward.9} parent=5 // pred_fallthru
      _
    %p378 = scmp.lt.s32.totalorder %s19, 2
    // Predicated region
    $region53: #{decoder_forward.9} parent=5 // pred_check
      %p379 = pneg %p378
    $region54: #{decoder_forward.9} parent=5 // pred_check_branch
      %381 = sbr.rel (%p379) target = $region56
    $region55: #{decoder_forward.9} parent=5 // pred_region
      // Predicated region
      $region57: #{decoder_forward.9} parent=55 // pred_check
        %p382 = pneg %p39
      $region58: #{decoder_forward.9} parent=55 // pred_check_branch
        %384 = sbr.rel (%p382) target = $region60
      $region59: #{decoder_forward.9} parent=55 // pred_region
        %p385 = scmp.lt.s32.totalorder %s19, 1
        %s386 = scalar_select %p385, %s19, 1
        %s387 = smul.addr %s386, 8
        %s388 = scalar_lea.vmem %s0, %s387
      $region60: #{decoder_forward.9} parent=55 // pred_fallthru
        _
      // Predicated region
      $region61: #{decoder_forward.9} parent=55 // pred_check
        %p389 = pneg %p65
      $region62: #{decoder_forward.9} parent=55 // pred_check_branch
        %391 = sbr.rel (%p389) target = $region64
      $region63: #{decoder_forward.9} parent=55 // pred_region
        %p392 = scmp.lt.s32.totalorder %s19, 1
        %s393 = scalar_select %p392, %s19, 1
        %s394 = smul.addr %s393, 8
        %s395 = scalar_lea.vmem %s1, %s394
      $region64: #{decoder_forward.9} parent=55 // pred_fallthru
        _
      // Predicated region
      $region65: #{decoder_forward.9} parent=55 // pred_check
        %p396 = pneg %p91
      $region66: #{decoder_forward.9} parent=55 // pred_check_branch
        %398 = sbr.rel (%p396) target = $region68
      $region67: #{decoder_forward.9} parent=55 // pred_region
        %p399 = scmp.lt.s32.totalorder %s19, 1
        %s400 = scalar_select %p399, %s19, 1
        %s401 = scalar_lea.vmem %s2, %s400
      $region68: #{decoder_forward.9} parent=55 // pred_fallthru
        _
    $region56: #{decoder_forward.9} parent=5 // pred_fallthru
      _
    %p402 = scmp.le.s32.totalorder 1, %s19
    %p403 = scmp.lt.s32.totalorder %s19, 3
    %p404 = pnand %p402, %p403
    %p405 = pneg %p404
    // Predicated region
    $region69: #{decoder_forward.9} parent=5 // pred_check
      _
    $region70: #{decoder_forward.9} parent=5 // pred_check_branch
      %407 = sbr.rel (%p404) target = $region72
    $region71: #{decoder_forward.9} parent=5 // pred_region
      %s408 = ssub.s32 %s19, 1
      %p409 = scmp.lt.s32.totalorder %s24, 1
      %s410 = scalar_select %p409, %s24, 1
      %s411 = smul.addr %s410, 8
      %s412 = scalar_lea.vmem %s0, %s411
      %p413 = pneg %p45
      %p414 = pneg %p42
      %p415 = scmp.lt.s32.totalorder %s24, 1
      %s416 = scalar_select %p415, %s24, 1
      %s417 = smul.addr %s416, 8
      %s418 = scalar_lea.vmem %s1, %s417
      %p419 = pneg %p71
      %p420 = pneg %p68
      %p421 = scmp.lt.s32.totalorder %s24, 1
      %s422 = scalar_select %p421, %s24, 1
      %s423 = scalar_lea.vmem %s2, %s422
      %p424 = pneg %p97
      %p425 = pneg %p94
      %p426 = pneg %p118
      %p427 = pneg %p115
      %p428 = pneg %p139
      %p429 = pneg %p136
      %p430 = pneg %p160
      %p431 = pneg %p157
      %p432 = pneg %p181
      %p433 = pneg %p178
      %p434 = pneg %p202
      %p435 = pneg %p199
      %p436 = pneg %p223
      %p437 = pneg %p220
      %p438 = pneg %p244
      %p439 = pneg %p241
      %p440 = pneg %p265
      %p441 = pneg %p262
      %p442 = pneg %p286
      %p443 = pneg %p283
      %p444 = pneg %p307
      %p445 = pneg %p304
      %p446 = pneg %p333
      %p447 = pneg %p330
      %p448 = scmp.lt.s32.totalorder %s24, 1
      %s449 = scalar_select %p448, %s24, 1
      %s450 = smul.addr %s449, 8
      %s451 = scalar_lea.vmem %s13, %s450
      %p452 = scmp.lt.s32.totalorder %s24, 1
      %s453 = scalar_select %p452, %s24, 1
      %s454 = smul.addr %s453, 8
      %s455 = scalar_lea.vmem %s0, %s454
      %p456 = scmp.lt.s32.totalorder %s24, 1
      %s457 = scalar_select %p456, %s24, 1
      %s458 = smul.addr %s457, 8
      %s459 = scalar_lea.vmem %s1, %s458
      %p460 = scmp.lt.s32.totalorder %s24, 1
      %s461 = scalar_select %p460, %s24, 1
      %s462 = scalar_lea.vmem %s2, %s461
      %p463 = scmp.lt.s32.totalorder %s24, 1
      %s464 = scalar_select %p463, %s24, 1
      %s465 = smul.addr %s464, 8
      %s466 = scalar_lea.vmem %s13, %s465
      %v468 = vld [vmem:[%s455] sm:$0xff]
      %v469 = vld [vmem:[%s3] sm:$0x1]
      %v470 = vld [vmem:[%s4] sm:$0x1]
      %vm471 = vcmask 261120
      %v472 = vsel %vm471, %v468, 0.0
      %473 = vadd.xlane.f32.xlu0 %v472
      %v474 = vpop.xlane.xlu0 %473
      %v475 = vrcp.pop 32.0
      %v476 = vmul.f32 %v474, %v475
      %v477 = vsub.f32 %v468, %v476
      %v478 = vmul.f32 %v477, %v477
      %v479 = vsel %vm471, %v478, 0.0
      %480 = vadd.xlane.f32.xlu0 %v479
      %v481 = vpop.xlane.xlu0 %480
      %v482 = vmul.f32 %v481, %v475
      %v483 = vadd.f32 %v482, 1e-05
      %v484 = vrsqrt.pop %v483
      %v485 = vmul.f32 %v477, %v484
      %v487 = vlaneseq
      %v488 = vshrl.u32 %v487, 7
      %v489 = vsub.s32 0, %v488
      %v490 = vrot.slane %v469, %v489
      %v492 = vmul.f32 %v485, %v490
      %v494 = vlaneseq
      %v495 = vshrl.u32 %v494, 7
      %v496 = vsub.s32 0, %v495
      %v497 = vrot.slane %v470, %v496
      %v499 = vadd.f32 %v492, %v497
      %v500 = vld [vmem:[%s459] sm:$0xff]
      %v501 = vld [vmem:[%s462] sm:$0x1]
      %v502 = vpack.c.bf16 %v499, %v499
      %v503 = vpack.c.bf16 %v500, %v500
      %v504 = vld [vmem:[%s12] sm:$0x1]
      %v506 = vlaneseq
      %v507 = vshrl.u32 %v506, 7
      %v508 = vsub.s32 0, %v507
      %v509 = vrot.slane %v504, %v508
      %v511 = vadd.f32 %v468, %v509
      %v512 = vld [vmem:[%s5] sm:$0xf]
      %v513 = vld [vmem:[%s5 + $0x4] sm:$0xf]
      %v514 = vld [vmem:[%s5 + $0x8] sm:$0xf]
      %v515 = vld [vmem:[%s5 + $0xc] sm:$0xf]
      %v516 = vld [vmem:[%s6] sm:$0x1]
      %v518 = vlaneseq
      %v519 = vshrl.u32 %v518, 7
      %v520 = vsub.s32 0, %v519
      %v521 = vrot.slane %v516, %v520
      %v527 = vunpack.c.l.b16 %v512
      %v528 = vunpack.c.l.b16 %v513
      %v529 = vunpack.c.l.b16 %v514
      %v530 = vunpack.c.l.b16 %v515
      %v531 = vpack.c.b16 %v528, %v527
      %v532 = vpack.c.b16 %v530, %v529
      %v536 = vsel %vm471, %v502, 0
      %538 = vmatprep.subr.bf16.mxu0 0
      %539 = vmatpush1.bf16.msra.mxu0 %v531
      %540 = vmatprep.subr.bf16.mxu0 0
      %541 = vmatpush1.bf16.msra.mxu0 %v532
      %542 = vmatprep.subr.bf16.mxu0 0
      %543 = vmatpush1.bf16.msra.mxu0 0
      %544 = vmatprep.subr.bf16.mxu0 0
      %545 = vmatpush1.bf16.msra.mxu0 0
      %546 = vmatprep.subr.bf16.mxu0 0
      %547 = vmatpush1.bf16.msra.mxu0 0
      %548 = vmatprep.subr.bf16.mxu0 0
      %549 = vmatpush1.bf16.msra.mxu0 0
      %550 = vmatprep.subr.bf16.mxu0 0
      %551 = vmatpush1.bf16.msra.mxu0 0
      %552 = vmatprep.subr.bf16.mxu0 0
      %553 = vmatpush1.bf16.msra.mxu0 0
      %554 = vmatprep.subr.bf16.mxu0 0
      %555 = vmatpush1.bf16.msra.mxu0 0
      %556 = vmatprep.subr.bf16.mxu0 0
      %557 = vmatpush1.bf16.msra.mxu0 0
      %558 = vmatprep.subr.bf16.mxu0 0
      %559 = vmatpush1.bf16.msra.mxu0 0
      %560 = vmatprep.subr.bf16.mxu0 0
      %561 = vmatpush1.bf16.msra.mxu0 0
      %562 = vmatprep.subr.bf16.mxu0 0
      %563 = vmatpush1.bf16.msra.mxu0 0
      %564 = vmatprep.subr.bf16.mxu0 0
      %565 = vmatpush1.bf16.msra.mxu0 0
      %566 = vmatprep.subr.bf16.mxu0 0
      %567 = vmatpush1.bf16.msra.mxu0 0
      %568 = vmatprep.subr.bf16.mxu0 0
      %569 = vmatpush1.bf16.msra.mxu0 0
      %570 = vmatprep.mubr.bf16.mxu0 0
      %571 = vmatmul.mubr.bf16.gmra.mrb[0].mxu0 %v536
      %v572 = vpop.f32.mrb[0].mxu0
      %v573 = vadd.f32 %v521, %v572
      %v574 = vpop.f32.mrb[0].mxu0
      %v575 = vpop.f32.mrb[0].mxu0
      %v576 = vpop.f32.mrb[0].mxu0
      %577 = vdwg.mxu0
      %v578 = vld [vmem:[%s7] sm:$0xf]
      %v579 = vld [vmem:[%s7 + $0x4] sm:$0xf]
      %v580 = vld [vmem:[%s7 + $0x8] sm:$0xf]
      %v581 = vld [vmem:[%s7 + $0xc] sm:$0xf]
      %v582 = vld [vmem:[%s8] sm:$0x1]
      %v584 = vlaneseq
      %v585 = vshrl.u32 %v584, 7
      %v586 = vsub.s32 0, %v585
      %v587 = vrot.slane %v582, %v586
      %v593 = vunpack.c.l.b16 %v578
      %v594 = vunpack.c.l.b16 %v579
      %v595 = vunpack.c.l.b16 %v580
      %v596 = vunpack.c.l.b16 %v581
      %v597 = vpack.c.b16 %v594, %v593
      %v598 = vpack.c.b16 %v596, %v595
      %v602 = vsel %vm471, %v503, 0
      %604 = vmatprep.subr.bf16.mxu0 0
      %605 = vmatpush1.bf16.msra.mxu0 %v597
      %606 = vmatprep.subr.bf16.mxu0 0
      %607 = vmatpush1.bf16.msra.mxu0 %v598
      %608 = vmatprep.subr.bf16.mxu0 0
      %609 = vmatpush1.bf16.msra.mxu0 0
      %610 = vmatprep.subr.bf16.mxu0 0
      %611 = vmatpush1.bf16.msra.mxu0 0
      %612 = vmatprep.subr.bf16.mxu0 0
      %613 = vmatpush1.bf16.msra.mxu0 0
      %614 = vmatprep.subr.bf16.mxu0 0
      %615 = vmatpush1.bf16.msra.mxu0 0
      %616 = vmatprep.subr.bf16.mxu0 0
      %617 = vmatpush1.bf16.msra.mxu0 0
      %618 = vmatprep.subr.bf16.mxu0 0
      %619 = vmatpush1.bf16.msra.mxu0 0
      %620 = vmatprep.subr.bf16.mxu0 0
      %621 = vmatpush1.bf16.msra.mxu0 0
      %622 = vmatprep.subr.bf16.mxu0 0
      %623 = vmatpush1.bf16.msra.mxu0 0
      %624 = vmatprep.subr.bf16.mxu0 0
      %625 = vmatpush1.bf16.msra.mxu0 0
      %626 = vmatprep.subr.bf16.mxu0 0
      %627 = vmatpush1.bf16.msra.mxu0 0
      %628 = vmatprep.subr.bf16.mxu0 0
      %629 = vmatpush1.bf16.msra.mxu0 0
      %630 = vmatprep.subr.bf16.mxu0 0
      %631 = vmatpush1.bf16.msra.mxu0 0
      %632 = vmatprep.subr.bf16.mxu0 0
      %633 = vmatpush1.bf16.msra.mxu0 0
      %634 = vmatprep.subr.bf16.mxu0 0
      %635 = vmatpush1.bf16.msra.mxu0 0
      %636 = vmatprep.mubr.bf16.mxu0 0
      %637 = vmatmul.mubr.bf16.gmra.mrb[0].mxu0 %v602
      %v638 = vpop.f32.mrb[0].mxu0
      %v639 = vadd.f32 %v587, %v638
      %v640 = vpop.f32.mrb[0].mxu0
      %v641 = vpop.f32.mrb[0].mxu0
      %v642 = vpop.f32.mrb[0].mxu0
      %643 = vdwg.mxu0
      %v644 = vld [vmem:[%s9] sm:$0xf]
      %v645 = vld [vmem:[%s9 + $0x4] sm:$0xf]
      %v646 = vld [vmem:[%s9 + $0x8] sm:$0xf]
      %v647 = vld [vmem:[%s9 + $0xc] sm:$0xf]
      %v648 = vld [vmem:[%s10] sm:$0x1]
      %v650 = vlaneseq
      %v651 = vshrl.u32 %v650, 7
      %v652 = vsub.s32 0, %v651
      %v653 = vrot.slane %v648, %v652
      %v659 = vunpack.c.l.b16 %v644
      %v660 = vunpack.c.l.b16 %v645
      %v661 = vunpack.c.l.b16 %v646
      %v662 = vunpack.c.l.b16 %v647
      %v663 = vpack.c.b16 %v660, %v659
      %v664 = vpack.c.b16 %v662, %v661
      %667 = vmatprep.subr.bf16.mxu0 0
      %668 = vmatpush1.bf16.msra.mxu0 %v663
      %669 = vmatprep.subr.bf16.mxu0 0
      %670 = vmatpush1.bf16.msra.mxu0 %v664
      %671 = vmatprep.subr.bf16.mxu0 0
      %672 = vmatpush1.bf16.msra.mxu0 0
      %673 = vmatprep.subr.bf16.mxu0 0
      %674 = vmatpush1.bf16.msra.mxu0 0
      %675 = vmatprep.subr.bf16.mxu0 0
      %676 = vmatpush1.bf16.msra.mxu0 0
      %677 = vmatprep.subr.bf16.mxu0 0
      %678 = vmatpush1.bf16.msra.mxu0 0
      %679 = vmatprep.subr.bf16.mxu0 0
      %680 = vmatpush1.bf16.msra.mxu0 0
      %681 = vmatprep.subr.bf16.mxu0 0
      %682 = vmatpush1.bf16.msra.mxu0 0
      %683 = vmatprep.subr.bf16.mxu0 0
      %684 = vmatpush1.bf16.msra.mxu0 0
      %685 = vmatprep.subr.bf16.mxu0 0
      %686 = vmatpush1.bf16.msra.mxu0 0
      %687 = vmatprep.subr.bf16.mxu0 0
      %688 = vmatpush1.bf16.msra.mxu0 0
      %689 = vmatprep.subr.bf16.mxu0 0
      %690 = vmatpush1.bf16.msra.mxu0 0
      %691 = vmatprep.subr.bf16.mxu0 0
      %692 = vmatpush1.bf16.msra.mxu0 0
      %693 = vmatprep.subr.bf16.mxu0 0
      %694 = vmatpush1.bf16.msra.mxu0 0
      %695 = vmatprep.subr.bf16.mxu0 0
      %696 = vmatpush1.bf16.msra.mxu0 0
      %697 = vmatprep.subr.bf16.mxu0 0
      %698 = vmatpush1.bf16.msra.mxu0 0
      %699 = vmatprep.mubr.bf16.mxu0 0
      %700 = vmatmul.mubr.bf16.gmra.mrb[0].mxu0 %v602
      %v701 = vpop.f32.mrb[0].mxu0
      %v702 = vadd.f32 %v653, %v701
      %v703 = vpop.f32.mrb[0].mxu0
      %v704 = vpop.f32.mrb[0].mxu0
      %v705 = vpop.f32.mrb[0].mxu0
      %706 = vdwg.mxu0
      %v707 = vpack.c.bf16 %v573, %v573
      %v708 = vpack.c.bf16 %v639, %v639
      %vm709 = vcmask 130048
      %v711 = vsel %vm709, %v707, 0
      %v714 = vsel %vm709, %v708, 0
      %716 = vmatprep.subr.bf16.mxu0 0
      %717 = vmatpush1.bf16.xpose.msra.mxu0 %v714
      %718 = vmatprep.subr.bf16.mxu0 0
      %719 = vmatpush1.bf16.xpose.msra.mxu0 0
      %720 = vmatprep.subr.bf16.mxu0 0
      %721 = vmatpush1.bf16.xpose.msra.mxu0 0
      %722 = vmatprep.subr.bf16.mxu0 0
      %723 = vmatpush1.bf16.xpose.msra.mxu0 0
      %724 = vmatprep.subr.bf16.mxu0 0
      %725 = vmatpush1.bf16.xpose.msra.mxu0 0
      %726 = vmatprep.subr.bf16.mxu0 0
      %727 = vmatpush1.bf16.xpose.msra.mxu0 0
      %728 = vmatprep.subr.bf16.mxu0 0
      %729 = vmatpush1.bf16.xpose.msra.mxu0 0
      %730 = vmatprep.subr.bf16.mxu0 0
      %731 = vmatpush1.bf16.xpose.msra.mxu0 0
      %732 = vmatprep.subr.bf16.mxu0 0
      %733 = vmatpush1.bf16.xpose.msra.mxu0 0
      %734 = vmatprep.subr.bf16.mxu0 0
      %735 = vmatpush1.bf16.xpose.msra.mxu0 0
      %736 = vmatprep.subr.bf16.mxu0 0
      %737 = vmatpush1.bf16.xpose.msra.mxu0 0
      %738 = vmatprep.subr.bf16.mxu0 0
      %739 = vmatpush1.bf16.xpose.msra.mxu0 0
      %740 = vmatprep.subr.bf16.mxu0 0
      %741 = vmatpush1.bf16.xpose.msra.mxu0 0
      %742 = vmatprep.subr.bf16.mxu0 0
      %743 = vmatpush1.bf16.xpose.msra.mxu0 0
      %744 = vmatprep.subr.bf16.mxu0 0
      %745 = vmatpush1.bf16.xpose.msra.mxu0 0
      %746 = vmatprep.subr.bf16.mxu0 0
      %747 = vmatpush1.bf16.xpose.msra.mxu0 0
      %748 = vmatprep.mubr.bf16.mxu0 0
      %749 = vmatmul.mubr.bf16.gmra.mrb[0].mxu0 %v711
      %v750 = vpop.f32.mrb[0].mxu0
      %v751 = vadd.f32 0.0, %v750
      %v752 = vpop.f32.mrb[0].mxu0
      %v753 = vpop.f32.mrb[0].mxu0
      %v754 = vpop.f32.mrb[0].mxu0
      %755 = vdwg.mxu0
      %v756 = vmul.f32 %v751, 0.25
      %vm757 = vcmp.eq.f32.partialorder %v501, 0.0
      %v758 = vsel %vm757, 1, 0
      %v759 = vlaneseq
      %v760 = vshrl.u32 %v759, 7
      %v761 = vsub.s32 0, %v760
      %v762 = vrot.slane %v758, %v761
      %vm763 = vcmp.eq.s32.totalorder %v762, 1
      %v764 = vsel %vm763, -1e+09, %v756
      %vm765 = vcmask 64512
      %v766 = vsel %vm765, %v764, -inf
      %767 = vmax.xlane.f32.xlu0 %v766
      %v768 = vpop.xlane.xlu0 %767
      %v769 = vsub.f32 %v764, %v768
      %v770 = vmul.f32 %v769, 1.442695
      %v771 = vpow.pop %v770
      %v772 = vsel %vm765, %v771, 0.0
      %773 = vadd.xlane.f32.xlu0 %v772
      %v774 = vpop.xlane.xlu0 %773
      %v775 = vrcp.pop %v774
      %v776 = vmul.f32 %v771, %v775
      %v777 = vpack.c.bf16 %v776, %v776
      %v778 = vpack.c.bf16 %v702, %v702
      %v780 = vsel %vm765, %v777, 0
      %vm782 = vcmask 1043456
      %v784 = vsel %vm782, %v778, 0
      %786 = vmatprep.subr.bf16.mxu0 0
      %787 = vmatpush1.bf16.msra.mxu0 %v784
      %788 = vmatprep.subr.bf16.mxu0 0
      %789 = vmatpush1.bf16.msra.mxu0 0
      %790 = vmatprep.subr.bf16.mxu0 0
      %791 = vmatpush1.bf16.msra.mxu0 0
      %792 = vmatprep.subr.bf16.mxu0 0
      %793 = vmatpush1.bf16.msra.mxu0 0
      %794 = vmatprep.subr.bf16.mxu0 0
      %795 = vmatpush1.bf16.msra.mxu0 0
      %796 = vmatprep.subr.bf16.mxu0 0
      %797 = vmatpush1.bf16.msra.mxu0 0
      %798 = vmatprep.subr.bf16.mxu0 0
      %799 = vmatpush1.bf16.msra.mxu0 0
      %800 = vmatprep.subr.bf16.mxu0 0
      %801 = vmatpush1.bf16.msra.mxu0 0
      %802 = vmatprep.subr.bf16.mxu0 0
      %803 = vmatpush1.bf16.msra.mxu0 0
      %804 = vmatprep.subr.bf16.mxu0 0
      %805 = vmatpush1.bf16.msra.mxu0 0
      %806 = vmatprep.subr.bf16.mxu0 0
      %807 = vmatpush1.bf16.msra.mxu0 0
      %808 = vmatprep.subr.bf16.mxu0 0
      %809 = vmatpush1.bf16.msra.mxu0 0
      %810 = vmatprep.subr.bf16.mxu0 0
      %811 = vmatpush1.bf16.msra.mxu0 0
      %812 = vmatprep.subr.bf16.mxu0 0
      %813 = vmatpush1.bf16.msra.mxu0 0
      %814 = vmatprep.subr.bf16.mxu0 0
      %815 = vmatpush1.bf16.msra.mxu0 0
      %816 = vmatprep.subr.bf16.mxu0 0
      %817 = vmatpush1.bf16.msra.mxu0 0
      %818 = vmatprep.mubr.bf16.mxu0 0
      %819 = vmatmul.mubr.bf16.gmra.mrb[0].mxu0 %v780
      %v820 = vpop.f32.mrb[0].mxu0
      %v821 = vadd.f32 0.0, %v820
      %v822 = vpop.f32.mrb[0].mxu0
      %v823 = vpop.f32.mrb[0].mxu0
      %v824 = vpop.f32.mrb[0].mxu0
      %825 = vdwg.mxu0
      %v826 = vpack.c.bf16 %v821, %v821
      %v827 = vld [vmem:[%s11] sm:$0xf]
      %v828 = vld [vmem:[%s11 + $0x4] sm:$0xf]
      %v831 = vunpack.c.l.b16 %v827
      %v832 = vunpack.c.l.b16 %v828
      %v833 = vpack.c.b16 %v832, %v831
      %v836 = vsel %vm709, %v826, 0
      %838 = vmatprep.subr.bf16.mxu0 0
      %839 = vmatpush1.bf16.msra.mxu0 %v833
      %840 = vmatprep.subr.bf16.mxu0 0
      %841 = vmatpush1.bf16.msra.mxu0 0
      %842 = vmatprep.subr.bf16.mxu0 0
      %843 = vmatpush1.bf16.msra.mxu0 0
      %844 = vmatprep.subr.bf16.mxu0 0
      %845 = vmatpush1.bf16.msra.mxu0 0
      %846 = vmatprep.subr.bf16.mxu0 0
      %847 = vmatpush1.bf16.msra.mxu0 0
      %848 = vmatprep.subr.bf16.mxu0 0
      %849 = vmatpush1.bf16.msra.mxu0 0
      %850 = vmatprep.subr.bf16.mxu0 0
      %851 = vmatpush1.bf16.msra.mxu0 0
      %852 = vmatprep.subr.bf16.mxu0 0
      %853 = vmatpush1.bf16.msra.mxu0 0
      %854 = vmatprep.subr.bf16.mxu0 0
      %855 = vmatpush1.bf16.msra.mxu0 0
      %856 = vmatprep.subr.bf16.mxu0 0
      %857 = vmatpush1.bf16.msra.mxu0 0
      %858 = vmatprep.subr.bf16.mxu0 0
      %859 = vmatpush1.bf16.msra.mxu0 0
      %860 = vmatprep.subr.bf16.mxu0 0
      %861 = vmatpush1.bf16.msra.mxu0 0
      %862 = vmatprep.subr.bf16.mxu0 0
      %863 = vmatpush1.bf16.msra.mxu0 0
      %864 = vmatprep.subr.bf16.mxu0 0
      %865 = vmatpush1.bf16.msra.mxu0 0
      %866 = vmatprep.subr.bf16.mxu0 0
      %867 = vmatpush1.bf16.msra.mxu0 0
      %868 = vmatprep.subr.bf16.mxu0 0
      %869 = vmatpush1.bf16.msra.mxu0 0
      %870 = vmatprep.mubr.bf16.mxu0 0
      %871 = vmatmul.mubr.bf16.gmra.mrb[0].mxu0 %v836
      %v872 = vpop.f32.mrb[0].mxu0
      %v873 = vadd.f32 0.0, %v872
      %v874 = vpop.f32.mrb[0].mxu0
      %v875 = vpop.f32.mrb[0].mxu0
      %v876 = vpop.f32.mrb[0].mxu0
      %877 = vdwg.mxu0
      %v878 = vadd.f32 %v511, %v873
      %s879 = scalar_lea.vmem %s5, 16
      %v880 = vld [vmem:[%s879] sm:$0xf]
      %v881 = vld [vmem:[%s879 + $0x4] sm:$0xf]
      %v882 = vld [vmem:[%s879 + $0x8] sm:$0xf]
      %v883 = vld [vmem:[%s879 + $0xc] sm:$0xf]
      %s884 = scalar_lea.vmem %s6, 1
      %v885 = vld [vmem:[%s884] sm:$0x1]
      %v887 = vlaneseq
      %v888 = vshrl.u32 %v887, 7
      %v889 = vsub.s32 0, %v888
      %v890 = vrot.slane %v885, %v889
      %v896 = vunpack.c.l.b16 %v880
      %v897 = vunpack.c.l.b16 %v881
      %v898 = vunpack.c.l.b16 %v882
      %v899 = vunpack.c.l.b16 %v883
      %v900 = vpack.c.b16 %v897, %v896
      %v901 = vpack.c.b16 %v899, %v898
      %904 = vmatprep.subr.bf16.mxu0 0
      %905 = vmatpush1.bf16.msra.mxu0 %v900
      %906 = vmatprep.subr.bf16.mxu0 0
      %907 = vmatpush1.bf16.msra.mxu0 %v901
      %908 = vmatprep.subr.bf16.mxu0 0
      %909 = vmatpush1.bf16.msra.mxu0 0
      %910 = vmatprep.subr.bf16.mxu0 0
      %911 = vmatpush1.bf16.msra.mxu0 0
      %912 = vmatprep.subr.bf16.mxu0 0
      %913 = vmatpush1.bf16.msra.mxu0 0
      %914 = vmatprep.subr.bf16.mxu0 0
      %915 = vmatpush1.bf16.msra.mxu0 0
      %916 = vmatprep.subr.bf16.mxu0 0
      %917 = vmatpush1.bf16.msra.mxu0 0
      %918 = vmatprep.subr.bf16.mxu0 0
      %919 = vmatpush1.bf16.msra.mxu0 0
      %920 = vmatprep.subr.bf16.mxu0 0
      %921 = vmatpush1.bf16.msra.mxu0 0
      %922 = vmatprep.subr.bf16.mxu0 0
      %923 = vmatpush1.bf16.msra.mxu0 0
      %924 = vmatprep.subr.bf16.mxu0 0
      %925 = vmatpush1.bf16.msra.mxu0 0
      %926 = vmatprep.subr.bf16.mxu0 0
      %927 = vmatpush1.bf16.msra.mxu0 0
      %928 = vmatprep.subr.bf16.mxu0 0
      %929 = vmatpush1.bf16.msra.mxu0 0
      %930 = vmatprep.subr.bf16.mxu0 0
      %931 = vmatpush1.bf16.msra.mxu0 0
      %932 = vmatprep.subr.bf16.mxu0 0
      %933 = vmatpush1.bf16.msra.mxu0 0
      %934 = vmatprep.subr.bf16.mxu0 0
      %935 = vmatpush1.bf16.msra.mxu0 0
      %936 = vmatprep.mubr.bf16.mxu0 0
      %937 = vmatmul.mubr.bf16.gmra.mrb[0].mxu0 %v536
      %v938 = vpop.f32.mrb[0].mxu0
      %v939 = vadd.f32 %v890, %v938
      %v940 = vpop.f32.mrb[0].mxu0
      %v941 = vpop.f32.mrb[0].mxu0
      %v942 = vpop.f32.mrb[0].mxu0
      %943 = vdwg.mxu0
      %s944 = scalar_lea.vmem %s7, 16
      %v945 = vld [vmem:[%s944] sm:$0xf]
      %v946 = vld [vmem:[%s944 + $0x4] sm:$0xf]
      %v947 = vld [vmem:[%s944 + $0x8] sm:$0xf]
      %v948 = vld [vmem:[%s944 + $0xc] sm:$0xf]
      %s949 = scalar_lea.vmem %s8, 1
      %v950 = vld [vmem:[%s949] sm:$0x1]
      %v952 = vlaneseq
      %v953 = vshrl.u32 %v952, 7
      %v954 = vsub.s32 0, %v953
      %v955 = vrot.slane %v950, %v954
      %v961 = vunpack.c.l.b16 %v945
      %v962 = vunpack.c.l.b16 %v946
      %v963 = vunpack.c.l.b16 %v947
      %v964 = vunpack.c.l.b16 %v948
      %v965 = vpack.c.b16 %v962, %v961
      %v966 = vpack.c.b16 %v964, %v963
      %969 = vmatprep.subr.bf16.mxu0 0
      %970 = vmatpush1.bf16.msra.mxu0 %v965
      %971 = vmatprep.subr.bf16.mxu0 0
      %972 = vmatpush1.bf16.msra.mxu0 %v966
      %973 = vmatprep.subr.bf16.mxu0 0
      %974 = vmatpush1.bf16.msra.mxu0 0
      %975 = vmatprep.subr.bf16.mxu0 0
      %976 = vmatpush1.bf16.msra.mxu0 0
      %977 = vmatprep.subr.bf16.mxu0 0
      %978 = vmatpush1.bf16.msra.mxu0 0
      %979 = vmatprep.subr.bf16.mxu0 0
      %980 = vmatpush1.bf16.msra.mxu0 0
      %981 = vmatprep.subr.bf16.mxu0 0
      %982 = vmatpush1.bf16.msra.mxu0 0
      %983 = vmatprep.subr.bf16.mxu0 0
      %984 = vmatpush1.bf16.msra.mxu0 0
      %985 = vmatprep.subr.bf16.mxu0 0
      %986 = vmatpush1.bf16.msra.mxu0 0
      %987 = vmatprep.subr.bf16.mxu0 0
      %988 = vmatpush1.bf16.msra.mxu0 0
      %989 = vmatprep.subr.bf16.mxu0 0
      %990 = vmatpush1.bf16.msra.mxu0 0
      %991 = vmatprep.subr.bf16.mxu0 0
      %992 = vmatpush1.bf16.msra.mxu0 0
      %993 = vmatprep.subr.bf16.mxu0 0
      %994 = vmatpush1.bf16.msra.mxu0 0
      %995 = vmatprep.subr.bf16.mxu0 0
      %996 = vmatpush1.bf16.msra.mxu0 0
      %997 = vmatprep.subr.bf16.mxu0 0
      %998 = vmatpush1.bf16.msra.mxu0 0
      %999 = vmatprep.subr.bf16.mxu0 0
      %1000 = vmatpush1.bf16.msra.mxu0 0
      %1001 = vmatprep.mubr.bf16.mxu0 0
      %1002 = vmatmul.mubr.bf16.gmra.mrb[0].mxu0 %v602
      %v1003 = vpop.f32.mrb[0].mxu0
      %v1004 = vadd.f32 %v955, %v1003
      %v1005 = vpop.f32.mrb[0].mxu0
      %v1006 = vpop.f32.mrb[0].mxu0
      %v1007 = vpop.f32.mrb[0].mxu0
      %1008 = vdwg.mxu0
      %s1009 = scalar_lea.vmem %s9, 16
      %v1010 = vld [vmem:[%s1009] sm:$0xf]
      %v1011 = vld [vmem:[%s1009 + $0x4] sm:$0xf]
      %v1012 = vld [vmem:[%s1009 + $0x8] sm:$0xf]
      %v1013 = vld [vmem:[%s1009 + $0xc] sm:$0xf]
      %s1014 = scalar_lea.vmem %s10, 1
      %v1015 = vld [vmem:[%s1014] sm:$0x1]
      %v1017 = vlaneseq
      %v1018 = vshrl.u32 %v1017, 7
      %v1019 = vsub.s32 0, %v1018
      %v1020 = vrot.slane %v1015, %v1019
      %v1026 = vunpack.c.l.b16 %v1010
      %v1027 = vunpack.c.l.b16 %v1011
      %v1028 = vunpack.c.l.b16 %v1012
      %v1029 = vunpack.c.l.b16 %v1013
      %v1030 = vpack.c.b16 %v1027, %v1026
      %v1031 = vpack.c.b16 %v1029, %v1028
      %1034 = vmatprep.subr.bf16.mxu0 0
      %1035 = vmatpush1.bf16.msra.mxu0 %v1030
      %1036 = vmatprep.subr.bf16.mxu0 0
      %1037 = vmatpush1.bf16.msra.mxu0 %v1031
      %1038 = vmatprep.subr.bf16.mxu0 0
      %1039 = vmatpush1.bf16.msra.mxu0 0
      %1040 = vmatprep.subr.bf16.mxu0 0
      %1041 = vmatpush1.bf16.msra.mxu0 0
      %1042 = vmatprep.subr.bf16.mxu0 0
      %1043 = vmatpush1.bf16.msra.mxu0 0
      %1044 = vmatprep.subr.bf16.mxu0 0
      %1045 = vmatpush1.bf16.msra.mxu0 0
      %1046 = vmatprep.subr.bf16.mxu0 0
      %1047 = vmatpush1.bf16.msra.mxu0 0
      %1048 = vmatprep.subr.bf16.mxu0 0
      %1049 = vmatpush1.bf16.msra.mxu0 0
      %1050 = vmatprep.subr.bf16.mxu0 0
      %1051 = vmatpush1.bf16.msra.mxu0 0
      %1052 = vmatprep.subr.bf16.mxu0 0
      %1053 = vmatpush1.bf16.msra.mxu0 0
      %1054 = vmatprep.subr.bf16.mxu0 0
      %1055 = vmatpush1.bf16.msra.mxu0 0
      %1056 = vmatprep.subr.bf16.mxu0 0
      %1057 = vmatpush1.bf16.msra.mxu0 0
      %1058 = vmatprep.subr.bf16.mxu0 0
      %1059 = vmatpush1.bf16.msra.mxu0 0
      %1060 = vmatprep.subr.bf16.mxu0 0
      %1061 = vmatpush1.bf16.msra.mxu0 0
      %1062 = vmatprep.subr.bf16.mxu0 0
      %1063 = vmatpush1.bf16.msra.mxu0 0
      %1064 = vmatprep.subr.bf16.mxu0 0
      %1065 = vmatpush1.bf16.msra.mxu0 0
      %1066 = vmatprep.mubr.bf16.mxu0 0
      %1067 = vmatmul.mubr.bf16.gmra.mrb[0].mxu0 %v602
      %v1068 = vpop.f32.mrb[0].mxu0
      %v1069 = vadd.f32 %v1020, %v1068
      %v1070 = vpop.f32.mrb[0].mxu0
      %v1071 = vpop.f32.mrb[0].mxu0
      %v1072 = vpop.f32.mrb[0].mxu0
      %1073 = vdwg.mxu0
      %v1074 = vpack.c.bf16 %v939, %v939
      %v1075 = vpack.c.bf16 %v1004, %v1004
      %v1077 = vsel %vm709, %v1074, 0
      %v1080 = vsel %vm709, %v1075, 0
      %1082 = vmatprep.subr.bf16.mxu0 0
      %1083 = vmatpush1.bf16.xpose.msra.mxu0 %v1080
      %1084 = vmatprep.subr.bf16.mxu0 0
      %1085 = vmatpush1.bf16.xpose.msra.mxu0 0
      %1086 = vmatprep.subr.bf16.mxu0 0
      %1087 = vmatpush1.bf16.xpose.msra.mxu0 0
      %1088 = vmatprep.subr.bf16.mxu0 0
      %1089 = vmatpush1.bf16.xpose.msra.mxu0 0
      %1090 = vmatprep.subr.bf16.mxu0 0
      %1091 = vmatpush1.bf16.xpose.msra.mxu0 0
      %1092 = vmatprep.subr.bf16.mxu0 0
      %1093 = vmatpush1.bf16.xpose.msra.mxu0 0
      %1094 = vmatprep.subr.bf16.mxu0 0
      %1095 = vmatpush1.bf16.xpose.msra.mxu0 0
      %1096 = vmatprep.subr.bf16.mxu0 0
      %1097 = vmatpush1.bf16.xpose.msra.mxu0 0
      %1098 = vmatprep.subr.bf16.mxu0 0
      %1099 = vmatpush1.bf16.xpose.msra.mxu0 0
      %1100 = vmatprep.subr.bf16.mxu0 0
      %1101 = vmatpush1.bf16.xpose.msra.mxu0 0
      %1102 = vmatprep.subr.bf16.mxu0 0
      %1103 = vmatpush1.bf16.xpose.msra.mxu0 0
      %1104 = vmatprep.subr.bf16.mxu0 0
      %1105 = vmatpush1.bf16.xpose.msra.mxu0 0
      %1106 = vmatprep.subr.bf16.mxu0 0
      %1107 = vmatpush1.bf16.xpose.msra.mxu0 0
      %1108 = vmatprep.subr.bf16.mxu0 0
      %1109 = vmatpush1.bf16.xpose.msra.mxu0 0
      %1110 = vmatprep.subr.bf16.mxu0 0
      %1111 = vmatpush1.bf16.xpose.msra.mxu0 0
      %1112 = vmatprep.subr.bf16.mxu0 0
      %1113 = vmatpush1.bf16.xpose.msra.mxu0 0
      %1114 = vmatprep.mubr.bf16.mxu0 0
      %1115 = vmatmul.mubr.bf16.gmra.mrb[0].mxu0 %v1077
      %v1116 = vpop.f32.mrb[0].mxu0
      %v1117 = vadd.f32 0.0, %v1116
      %v1118 = vpop.f32.mrb[0].mxu0
      %v1119 = vpop.f32.mrb[0].mxu0
      %v1120 = vpop.f32.mrb[0].mxu0
      %1121 = vdwg.mxu0
      %v1122 = vmul.f32 %v1117, 0.25
      %v1123 = vsel %vm763, -1e+09, %v1122
      %v1124 = vsel %vm765, %v1123, -inf
      %1125 = vmax.xlane.f32.xlu0 %v1124
      %v1126 = vpop.xlane.xlu0 %1125
      %v1127 = vsub.f32 %v1123, %v1126
      %v1128 = vmul.f32 %v1127, 1.442695
      %v1129 = vpow.pop %v1128
      %v1130 = vsel %vm765, %v1129, 0.0
      %1131 = vadd.xlane.f32.xlu0 %v1130
      %v1132 = vpop.xlane.xlu0 %1131
      %v1133 = vrcp.pop %v1132
      %v1134 = vmul.f32 %v1129, %v1133
      %v1135 = vpack.c.bf16 %v1134, %v1134
      %v1136 = vpack.c.bf16 %v1069, %v1069
      %v1138 = vsel %vm765, %v1135, 0
      %v1141 = vsel %vm782, %v1136, 0
      %1143 = vmatprep.subr.bf16.mxu0 0
      %1144 = vmatpush1.bf16.msra.mxu0 %v1141
      %1145 = vmatprep.subr.bf16.mxu0 0
      %1146 = vmatpush1.bf16.msra.mxu0 0
      %1147 = vmatprep.subr.bf16.mxu0 0
      %1148 = vmatpush1.bf16.msra.mxu0 0
      %1149 = vmatprep.subr.bf16.mxu0 0
      %1150 = vmatpush1.bf16.msra.mxu0 0
      %1151 = vmatprep.subr.bf16.mxu0 0
      %1152 = vmatpush1.bf16.msra.mxu0 0
      %1153 = vmatprep.subr.bf16.mxu0 0
      %1154 = vmatpush1.bf16.msra.mxu0 0
      %1155 = vmatprep.subr.bf16.mxu0 0
      %1156 = vmatpush1.bf16.msra.mxu0 0
      %1157 = vmatprep.subr.bf16.mxu0 0
      %1158 = vmatpush1.bf16.msra.mxu0 0
      %1159 = vmatprep.subr.bf16.mxu0 0
      %1160 = vmatpush1.bf16.msra.mxu0 0
      %1161 = vmatprep.subr.bf16.mxu0 0
      %1162 = vmatpush1.bf16.msra.mxu0 0
      %1163 = vmatprep.subr.bf16.mxu0 0
      %1164 = vmatpush1.bf16.msra.mxu0 0
      %1165 = vmatprep.subr.bf16.mxu0 0
      %1166 = vmatpush1.bf16.msra.mxu0 0
      %1167 = vmatprep.subr.bf16.mxu0 0
      %1168 = vmatpush1.bf16.msra.mxu0 0
      %1169 = vmatprep.subr.bf16.mxu0 0
      %1170 = vmatpush1.bf16.msra.mxu0 0
      %1171 = vmatprep.subr.bf16.mxu0 0
      %1172 = vmatpush1.bf16.msra.mxu0 0
      %1173 = vmatprep.subr.bf16.mxu0 0
      %1174 = vmatpush1.bf16.msra.mxu0 0
      %1175 = vmatprep.mubr.bf16.mxu0 0
      %1176 = vmatmul.mubr.bf16.gmra.mrb[0].mxu0 %v1138
      %v1177 = vpop.f32.mrb[0].mxu0
      %v1178 = vadd.f32 0.0, %v1177
      %v1179 = vpop.f32.mrb[0].mxu0
      %v1180 = vpop.f32.mrb[0].mxu0
      %v1181 = vpop.f32.mrb[0].mxu0
      %1182 = vdwg.mxu0
      %v1183 = vpack.c.bf16 %v1178, %v1178
      %s1184 = scalar_lea.vmem %s11, 8
      %v1185 = vld [vmem:[%s1184] sm:$0xf]
      %v1186 = vld [vmem:[%s1184 + $0x4] sm:$0xf]
      %v1189 = vunpack.c.l.b16 %v1185
      %v1190 = vunpack.c.l.b16 %v1186
      %v1191 = vpack.c.b16 %v1190, %v1189
      %v1194 = vsel %vm709, %v1183, 0
      %1196 = vmatprep.subr.bf16.mxu0 0
      %1197 = vmatpush1.bf16.msra.mxu0 %v1191
      %1198 = vmatprep.subr.bf16.mxu0 0
      %1199 = vmatpush1.bf16.msra.mxu0 0
      %1200 = vmatprep.subr.bf16.mxu0 0
      %1201 = vmatpush1.bf16.msra.mxu0 0
      %1202 = vmatprep.subr.bf16.mxu0 0
      %1203 = vmatpush1.bf16.msra.mxu0 0
      %1204 = vmatprep.subr.bf16.mxu0 0
      %1205 = vmatpush1.bf16.msra.mxu0 0
      %1206 = vmatprep.subr.bf16.mxu0 0
      %1207 = vmatpush1.bf16.msra.mxu0 0
      %1208 = vmatprep.subr.bf16.mxu0 0
      %1209 = vmatpush1.bf16.msra.mxu0 0
      %1210 = vmatprep.subr.bf16.mxu0 0
      %1211 = vmatpush1.bf16.msra.mxu0 0
      %1212 = vmatprep.subr.bf16.mxu0 0
      %1213 = vmatpush1.bf16.msra.mxu0 0
      %1214 = vmatprep.subr.bf16.mxu0 0
      %1215 = vmatpush1.bf16.msra.mxu0 0
      %1216 = vmatprep.subr.bf16.mxu0 0
      %1217 = vmatpush1.bf16.msra.mxu0 0
      %1218 = vmatprep.subr.bf16.mxu0 0
      %1219 = vmatpush1.bf16.msra.mxu0 0
      %1220 = vmatprep.subr.bf16.mxu0 0
      %1221 = vmatpush1.bf16.msra.mxu0 0
      %1222 = vmatprep.subr.bf16.mxu0 0
      %1223 = vmatpush1.bf16.msra.mxu0 0
      %1224 = vmatprep.subr.bf16.mxu0 0
      %1225 = vmatpush1.bf16.msra.mxu0 0
      %1226 = vmatprep.subr.bf16.mxu0 0
      %1227 = vmatpush1.bf16.msra.mxu0 0
      %1228 = vmatprep.mubr.bf16.mxu0 0
      %1229 = vmatmul.mubr.bf16.gmra.mrb[0].mxu0 %v1194
      %v1230 = vpop.f32.mrb[0].mxu0
      %v1231 = vadd.f32 0.0, %v1230
      %v1232 = vpop.f32.mrb[0].mxu0
      %v1233 = vpop.f32.mrb[0].mxu0
      %v1234 = vpop.f32.mrb[0].mxu0
      %1235 = vdwg.mxu0
      %v1236 = vadd.f32 %v878, %v1231
      %1237 = vst.msk [vmem:[%s466] sm:$0xff] %vm471, %v1236
      %p1238 = scmp.lt.s32.totalorder %s24, 1
      %s1239 = scalar_select %p1238, %s24, 1
      %s1240 = smul.addr %s1239, 8
      %s1241 = scalar_lea.vmem %s13, %s1240
      // Predicated region
      $region73: #{decoder_forward.9} parent=71 // pred_check
        %p1242 = pneg %p330
      $region74: #{decoder_forward.9} parent=71 // pred_check_branch
        %1244 = sbr.rel (%p1242) target = $region76
      $region75: #{decoder_forward.9} parent=71 // pred_region
        _
      $region76: #{decoder_forward.9} parent=71 // pred_fallthru
        _
    $region72: #{decoder_forward.9} parent=5 // pred_fallthru
      _
    %p1245 = scmp.le.s32.totalorder 2, %s19
    // Predicated region
    $region77: #{decoder_forward.9} parent=5 // pred_check
      %p1246 = pneg %p1245
    $region78: #{decoder_forward.9} parent=5 // pred_check_branch
      %1248 = sbr.rel (%p1246) target = $region80
    $region79: #{decoder_forward.9} parent=5 // pred_region
      %s1249 = ssub.s32 %s19, 2
      // Predicated region
      $region81: #{decoder_forward.9} parent=79 // pred_check
        %p1250 = pneg %p336
      $region82: #{decoder_forward.9} parent=79 // pred_check_branch
        %1252 = sbr.rel (%p1250) target = $region84
      $region83: #{decoder_forward.9} parent=79 // pred_region
        %p1253 = scmp.lt.s32.totalorder %s25, 1
        %s1254 = scalar_select %p1253, %s25, 1
        %s1255 = smul.addr %s1254, 8
        %s1256 = scalar_lea.vmem %s13, %s1255
      $region84: #{decoder_forward.9} parent=79 // pred_fallthru
        _
    $region80: #{decoder_forward.9} parent=5 // pred_fallthru
      _
  $region6: #{decoder_forward.9} parent=0 // loop_footer
    %s23 = sadd.s32 1, %s19
  $region7: #{decoder_forward.9} parent=0 // loop_footer_branch
    %18 = sbr.rel target = $region3
  $region8: #{decoder_forward.9} parent=0 // loop_exit
    _

// kernel: decoder_forward.13
$region0: #{decoder_forward.13}
  #allocation0 [shape = 'u32[]', space=smem, size = 0x4, offset = 0x4, fixed_abs, tag = 'smem constant byte address 0x4 - core index']
  #allocation1 [shape = 'u32[144,128]{1,0:T(1,128)}', space=vmem, size = 0x12000, scoped, tag = 'internal scratch']
  %s0 = inlined_call_operand.hbm [shape: f32[2,8,32], index: 0, kind: input, shape index: {}, may-alias: {0,7}]
  %s1 = inlined_call_operand.vmem [shape: f32[1,32], index: 1, kind: input, shape index: {}]
  %s2 = inlined_call_operand.vmem [shape: f32[1,32], index: 2, kind: input, shape index: {}]
  %s3 = inlined_call_operand.vmem [shape: bf16[32,64], index: 3, kind: input, shape index: {}]
  %s4 = inlined_call_operand.vmem [shape: f32[1,64], index: 4, kind: input, shape index: {}]
  %s5 = inlined_call_operand.vmem [shape: bf16[64,32], index: 5, kind: input, shape index: {}]
  %s6 = inlined_call_operand.vmem [shape: f32[1,32], index: 6, kind: input, shape index: {}]
  %s7 = inlined_call_operand.hbm [shape: f32[2,8,32], index: 7, kind: output, shape index: {}, may-alias: {0,7}]
  %s8 = sld [smem:[#allocation0]]
  $region65: #{decoder_forward.13} parent=0
    _
  %s10 = ssub.s32 1, %s8
  %s11 = scalar_select 0, %s10, %s8
  $region1: #{decoder_forward.13} parent=0
    #allocation2 [shape = 'u8[8192]{0}', space=vmem, size = 0x2000, scoped, tag = 'input window, operand 0']
    #allocation3 [shape = 's32[2]{0}', space=sflag, size = 0x8, scoped, tag = 'scoped memory for decoder_forward.13']
    #allocation4 [shape = 's32[2]{0}', space=sflag, size = 0x8, scoped, tag = 'scoped memory for decoder_forward.13']
    #allocation5 [shape = 'u8[8192]{0}', space=vmem, size = 0x2000, scoped, tag = 'output window, operand 0']
    %12 = vsyncpa [#allocation3], 0
    %s13 = scalar_lea.sflag [#allocation3], 1
    %14 = vsyncpa %s13, 0
    %15 = vsyncpa [#allocation4], 0
    %s16 = scalar_lea.sflag [#allocation4], 1
    %17 = vsyncpa %s16, 0
    loop: start=0, step=1, limit=4
    $region2: #{decoder_forward.13} parent=1 // loop_pre_header
      _
    $region3: #{decoder_forward.13} parent=1 // loop_header
      %s19 = sphi 0, %s23
      %p20 = scmp.ge.s32.totalorder %s19, 4
      %s26 = sphi 0, %s38
      %s27 = sphi 0, %s34
      %s28 = sphi 0, %s26
      %s29 = sphi 0, %s27
      %s30 = sphi 0, %s28
      %s31 = sphi 0, %s29
      %s43 = sphi 0, %s45
      %s46 = sphi 0, %s43
      %s47 = sphi 0, %s46
      %s63 = sphi 0, %s47
      %s67 = sphi 0, %s67
      %s69 = sphi 0, %s67
      %s70 = sphi 0, %s69
      %s84 = sphi 0, %s70
      %s88 = sphi 0, %s88
      %s90 = sphi 0, %s88
      %s91 = sphi 0, %s90
      %s105 = sphi 0, %s91
      %s109 = sphi 0, %s109
      %s111 = sphi 0, %s109
      %s112 = sphi 0, %s111
      %s126 = sphi 0, %s112
      %s130 = sphi 0, %s130
      %s132 = sphi 0, %s130
      %s133 = sphi 0, %s132
      %s147 = sphi 0, %s133
      %s151 = sphi 0, %s151
      %s153 = sphi 0, %s151
      %s154 = sphi 0, %s153
      %s168 = sphi 0, %s154
      %s172 = sphi 0, %s172
      %s174 = sphi 0, %s172
      %s175 = sphi 0, %s174
      %s189 = sphi 0, %s175
      %s197 = sphi 0, %s199
      %s200 = sphi 0, %s197
      %s201 = sphi 0, %s200
      %s217 = sphi 0, %s201
    $region4: #{decoder_forward.13} parent=1 // loop_header_branch
      %22 = sbr.rel (%p20) target = $region8
    $region5: #{decoder_forward.13} parent=1 // loop_body
      %s24 = ssub.s32 %s19, 1
      %s25 = ssub.s32 %s19, 2
      %s32 = sadd.s32 1, %s27
      %p33 = scmp.ge.s32.totalorder %s32, 1
      %s34 = scalar_select %p33, 0, %s32
      %s35 = sadd.s32 1, %s26
      %s36 = scalar_select %p33, %s35, %s26
      %p37 = scmp.ge.s32.totalorder %s36, 2
      %s38 = scalar_select %p37, 0, %s36
      %s39 = ssub.s32 %s26, %s38
      %s40 = ssub.s32 %s27, %s34
      %s41 = sor.u32 %s39, %s40
      %p42 = scmp.eq.s32.totalorder %s41, 0
      %s44 = sadd.s32 %s43, 1
      %s45 = scalar_select %p42, %s43, %s44
      %p48 = pneg %p42
      %p49 = scmp.eq.s32.totalorder %s19, 1
      %p50 = por %p48, %p49
      %p51 = scmp.ne.s32.totalorder %s43, %s46
      %p52 = scmp.eq.s32.totalorder %s19, 0
      %p53 = por %p51, %p52
      %p54 = scmp.ne.s32.totalorder %s43, %s46
      %p55 = scmp.eq.s32.totalorder %s24, 1
      %p56 = por %p54, %p55
      %p57 = scmp.ne.s32.totalorder %s46, %s47
      %p58 = scmp.eq.s32.totalorder %s24, 0
      %p59 = por %p57, %p58
      %p60 = scmp.ne.s32.totalorder %s46, %s47
      %p61 = scmp.eq.s32.totalorder %s25, 1
      %p62 = por %p60, %p61
      %p64 = scmp.ne.s32.totalorder %s47, %s63
      %p65 = scmp.eq.s32.totalorder %s25, 0
      %p66 = por %p64, %p65
      %s68 = sadd.s32 %s67, 1
      %p71 = scmp.eq.s32.totalorder %s19, 1
      %p72 = scmp.ne.s32.totalorder %s67, %s69
      %p73 = scmp.eq.s32.totalorder %s19, 0
      %p74 = por %p72, %p73
      %p75 = scmp.ne.s32.totalorder %s67, %s69
      %p76 = scmp.eq.s32.totalorder %s24, 1
      %p77 = por %p75, %p76
      %p78 = scmp.ne.s32.totalorder %s69, %s70
      %p79 = scmp.eq.s32.totalorder %s24, 0
      %p80 = por %p78, %p79
      %p81 = scmp.ne.s32.totalorder %s69, %s70
      %p82 = scmp.eq.s32.totalorder %s25, 1
      %p83 = por %p81, %p82
      %p85 = scmp.ne.s32.totalorder %s70, %s84
      %p86 = scmp.eq.s32.totalorder %s25, 0
      %p87 = por %p85, %p86
      %s89 = sadd.s32 %s88, 1
      %p92 = scmp.eq.s32.totalorder %s19, 1
      %p93 = scmp.ne.s32.totalorder %s88, %s90
      %p94 = scmp.eq.s32.totalorder %s19, 0
      %p95 = por %p93, %p94
      %p96 = scmp.ne.s32.totalorder %s88, %s90
      %p97 = scmp.eq.s32.totalorder %s24, 1
      %p98 = por %p96, %p97
      %p99 = scmp.ne.s32.totalorder %s90, %s91
      %p100 = scmp.eq.s32.totalorder %s24, 0
      %p101 = por %p99, %p100
      %p102 = scmp.ne.s32.totalorder %s90, %s91
      %p103 = scmp.eq.s32.totalorder %s25, 1
      %p104 = por %p102, %p103
      %p106 = scmp.ne.s32.totalorder %s91, %s105
      %p107 = scmp.eq.s32.totalorder %s25, 0
      %p108 = por %p106, %p107
      %s110 = sadd.s32 %s109, 1
      %p113 = scmp.eq.s32.totalorder %s19, 1
      %p114 = scmp.ne.s32.totalorder %s109, %s111
      %p115 = scmp.eq.s32.totalorder %s19, 0
      %p116 = por %p114, %p115
      %p117 = scmp.ne.s32.totalorder %s109, %s111
      %p118 = scmp.eq.s32.totalorder %s24, 1
      %p119 = por %p117, %p118
      %p120 = scmp.ne.s32.totalorder %s111, %s112
      %p121 = scmp.eq.s32.totalorder %s24, 0
      %p122 = por %p120, %p121
      %p123 = scmp.ne.s32.totalorder %s111, %s112
      %p124 = scmp.eq.s32.totalorder %s25, 1
      %p125 = por %p123, %p124
      %p127 = scmp.ne.s32.totalorder %s112, %s126
      %p128 = scmp.eq.s32.totalorder %s25, 0
      %p129 = por %p127, %p128
      %s131 = sadd.s32 %s130, 1
      %p134 = scmp.eq.s32.totalorder %s19, 1
      %p135 = scmp.ne.s32.totalorder %s130, %s132
      %p136 = scmp.eq.s32.totalorder %s19, 0
      %p137 = por %p135, %p136
      %p138 = scmp.ne.s32.totalorder %s130, %s132
      %p139 = scmp.eq.s32.totalorder %s24, 1
      %p140 = por %p138, %p139
      %p141 = scmp.ne.s32.totalorder %s132, %s133
      %p142 = scmp.eq.s32.totalorder %s24, 0
      %p143 = por %p141, %p142
      %p144 = scmp.ne.s32.totalorder %s132, %s133
      %p145 = scmp.eq.s32.totalorder %s25, 1
      %p146 = por %p144, %p145
      %p148 = scmp.ne.s32.totalorder %s133, %s147
      %p149 = scmp.eq.s32.totalorder %s25, 0
      %p150 = por %p148, %p149
      %s152 = sadd.s32 %s151, 1
      %p155 = scmp.eq.s32.totalorder %s19, 1
      %p156 = scmp.ne.s32.totalorder %s151, %s153
      %p157 = scmp.eq.s32.totalorder %s19, 0
      %p158 = por %p156, %p157
      %p159 = scmp.ne.s32.totalorder %s151, %s153
      %p160 = scmp.eq.s32.totalorder %s24, 1
      %p161 = por %p159, %p160
      %p162 = scmp.ne.s32.totalorder %s153, %s154
      %p163 = scmp.eq.s32.totalorder %s24, 0
      %p164 = por %p162, %p163
      %p165 = scmp.ne.s32.totalorder %s153, %s154
      %p166 = scmp.eq.s32.totalorder %s25, 1
      %p167 = por %p165, %p166
      %p169 = scmp.ne.s32.totalorder %s154, %s168
      %p170 = scmp.eq.s32.totalorder %s25, 0
      %p171 = por %p169, %p170
      %s173 = sadd.s32 %s172, 1
      %p176 = scmp.eq.s32.totalorder %s19, 1
      %p177 = scmp.ne.s32.totalorder %s172, %s174
      %p178 = scmp.eq.s32.totalorder %s19, 0
      %p179 = por %p177, %p178
      %p180 = scmp.ne.s32.totalorder %s172, %s174
      %p181 = scmp.eq.s32.totalorder %s24, 1
      %p182 = por %p180, %p181
      %p183 = scmp.ne.s32.totalorder %s174, %s175
      %p184 = scmp.eq.s32.totalorder %s24, 0
      %p185 = por %p183, %p184
      %p186 = scmp.ne.s32.totalorder %s174, %s175
      %p187 = scmp.eq.s32.totalorder %s25, 1
      %p188 = por %p186, %p187
      %p190 = scmp.ne.s32.totalorder %s175, %s189
      %p191 = scmp.eq.s32.totalorder %s25, 0
      %p192 = por %p190, %p191
      %s193 = ssub.s32 %s26, %s38
      %s194 = ssub.s32 %s27, %s34
      %s195 = sor.u32 %s193, %s194
      %p196 = scmp.eq.s32.totalorder %s195, 0
      %s198 = sadd.s32 %s197, 1
      %s199 = scalar_select %p196, %s197, %s198
      %p202 = pneg %p196
      %p203 = scmp.eq.s32.totalorder %s19, 1
      %p204 = por %p202, %p203
      %p205 = scmp.ne.s32.totalorder %s197, %s200
      %p206 = scmp.eq.s32.totalorder %s19, 0
      %p207 = por %p205, %p206
      %p208 = scmp.ne.s32.totalorder %s197, %s200
      %p209 = scmp.eq.s32.totalorder %s24, 1
      %p210 = por %p208, %p209
      %p211 = scmp.ne.s32.totalorder %s200, %s201
      %p212 = scmp.eq.s32.totalorder %s24, 0
      %p213 = por %p211, %p212
      %p214 = scmp.ne.s32.totalorder %s200, %s201
      %p215 = scmp.eq.s32.totalorder %s25, 1
      %p216 = por %p214, %p215
      %p218 = scmp.ne.s32.totalorder %s201, %s217
      %p219 = scmp.eq.s32.totalorder %s25, 0
      %p220 = por %p218, %p219
      %p221 = scmp.le.s32.totalorder 1, %s19
      %p222 = scmp.lt.s32.totalorder %s19, 3
      %p223 = pnand %p221, %p222
      %p224 = pneg %p223
      // Predicated region
      $region9: #{decoder_forward.13} parent=5 // pred_check
        _
      $region10: #{decoder_forward.13} parent=5 // pred_check_branch
        %226 = sbr.rel (%p223) target = $region12
      $region11: #{decoder_forward.13} parent=5 // pred_region
        %s227 = ssub.s32 %s19, 1
        // Predicated region
        $region13: #{decoder_forward.13} parent=11 // pred_check
          %p228 = pneg %p80
        $region14: #{decoder_forward.13} parent=11 // pred_check_branch
          %230 = sbr.rel (%p228) target = $region16
        $region15: #{decoder_forward.13} parent=11 // pred_region
          _
        $region16: #{decoder_forward.13} parent=11 // pred_fallthru
          _
        // Predicated region
        $region17: #{decoder_forward.13} parent=11 // pred_check
          %p231 = pneg %p101
        $region18: #{decoder_forward.13} parent=11 // pred_check_branch
          %233 = sbr.rel (%p231) target = $region20
        $region19: #{decoder_forward.13} parent=11 // pred_region
          _
        $region20: #{decoder_forward.13} parent=11 // pred_fallthru
          _
        // Predicated region
        $region21: #{decoder_forward.13} parent=11 // pred_check
          %p234 = pneg %p122
        $region22: #{decoder_forward.13} parent=11 // pred_check_branch
          %236 = sbr.rel (%p234) target = $region24
        $region23: #{decoder_forward.13} parent=11 // pred_region
          _
        $region24: #{decoder_forward.13} parent=11 // pred_fallthru
          _
        // Predicated region
        $region25: #{decoder_forward.13} parent=11 // pred_check
          %p237 = pneg %p143
        $region26: #{decoder_forward.13} parent=11 // pred_check_branch
          %239 = sbr.rel (%p237) target = $region28
        $region27: #{decoder_forward.13} parent=11 // pred_region
          _
        $region28: #{decoder_forward.13} parent=11 // pred_fallthru
          _
        // Predicated region
        $region29: #{decoder_forward.13} parent=11 // pred_check
          %p240 = pneg %p164
        $region30: #{decoder_forward.13} parent=11 // pred_check_branch
          %242 = sbr.rel (%p240) target = $region32
        $region31: #{decoder_forward.13} parent=11 // pred_region
          _
        $region32: #{decoder_forward.13} parent=11 // pred_fallthru
          _
        // Predicated region
        $region33: #{decoder_forward.13} parent=11 // pred_check
          %p243 = pneg %p185
        $region34: #{decoder_forward.13} parent=11 // pred_check_branch
          %245 = sbr.rel (%p243) target = $region36
        $region35: #{decoder_forward.13} parent=11 // pred_region
          _
        $region36: #{decoder_forward.13} parent=11 // pred_fallthru
          _
      $region12: #{decoder_forward.13} parent=5 // pred_fallthru
        _
      %p246 = scmp.lt.s32.totalorder %s19, 2
      // Predicated region
      $region37: #{decoder_forward.13} parent=5 // pred_check
        %p247 = pneg %p246
      $region38: #{decoder_forward.13} parent=5 // pred_check_branch
        %249 = sbr.rel (%p247) target = $region40
      $region39: #{decoder_forward.13} parent=5 // pred_region
        // Predicated region
        $region41: #{decoder_forward.13} parent=39 // pred_check
          %p250 = pneg %p53
        $region42: #{decoder_forward.13} parent=39 // pred_check_branch
          %252 = sbr.rel (%p250) target = $region44
        $region43: #{decoder_forward.13} parent=39 // pred_region
          %s253 = sand.u32 %s43, 1
          %s254 = scalar_lea.sflag [#allocation3], %s253
          %s255 = sand.u32 %s43, 1
          %s256 = smul.addr %s255, 8
          %s257 = scalar_lea.vmem [#allocation2], %s256
          %s259 = ssub.s32 128, 128
          %260 = vsyncadd %s254, %s259
          %s261 = sadd.s32 %s27, %s26
          %s262 = smul.addr %s261, 128
          %s263 = scalar_lea.hbm %s0, %s262
          %s265 = sshll.u32 %s257, 4
          %s266 = int_to_ptr.vmem [resolvable:$true] %s265
          %268 = dma.hbm_to_vmem [thread:$0]  %s263, 128, %s266, %s254
        $region44: #{decoder_forward.13} parent=39 // pred_fallthru
          _
      $region40: #{decoder_forward.13} parent=5 // pred_fallthru
        _
      %p269 = scmp.le.s32.totalorder 1, %s19
      %p270 = scmp.lt.s32.totalorder %s19, 3
      %p271 = pnand %p269, %p270
      %p272 = pneg %p271
      // Predicated region
      $region45: #{decoder_forward.13} parent=5 // pred_check
        _
      $region46: #{decoder_forward.13} parent=5 // pred_check_branch
        %274 = sbr.rel (%p271) target = $region48
      $region47: #{decoder_forward.13} parent=5 // pred_region
        %s275 = ssub.s32 %s19, 1
        %s276 = sand.u32 %s46, 1
        %s277 = scalar_lea.sflag [#allocation3], %s276
        %s278 = sand.u32 %s46, 1
        %s279 = smul.addr %s278, 8
        %s280 = scalar_lea.vmem [#allocation2], %s279
        // Predicated region
        $region49: #{decoder_forward.13} parent=47 // pred_check
          %p281 = pneg %p59
        $region50: #{decoder_forward.13} parent=47 // pred_check_branch
          %283 = sbr.rel (%p281) target = $region52
        $region51: #{decoder_forward.13} parent=47 // pred_region
          %284 = dma.done %s277, 128
        $region52: #{decoder_forward.13} parent=47 // pred_fallthru
          _
        %s285 = sand.u32 %s46, 1
        %s286 = scalar_lea.sflag [#allocation3], %s285
        %s287 = sand.u32 %s46, 1
        %s288 = smul.addr %s287, 8
        %s289 = scalar_lea.vmem [#allocation2], %s288
        %p290 = pneg %p59
        %p291 = pneg %p56
        %p292 = pneg %p80
        %p293 = pneg %p77
        %p294 = pneg %p101
        %p295 = pneg %p98
        %p296 = pneg %p122
        %p297 = pneg %p119
        %p298 = pneg %p143
        %p299 = pneg %p140
        %p300 = pneg %p164
        %p301 = pneg %p161
        %p302 = pneg %p185
        %p303 = pneg %p182
        %p304 = pneg %p213
        %p305 = pneg %p210
        %s306 = sand.u32 %s200, 1
        %s307 = scalar_lea.sflag [#allocation4], %s306
        %s308 = sand.u32 %s200, 1
        %s309 = smul.addr %s308, 8
        %s310 = scalar_lea.vmem [#allocation5], %s309
        %v312 = vld [vmem:[%s280] sm:$0xff]
        %v313 = vld [vmem:[%s1] sm:$0x1]
        %v314 = vld [vmem:[%s2] sm:$0x1]
        %vm315 = vcmask 261120
        %v316 = vsel %vm315, %v312, 0.0
        %317 = vadd.xlane.f32.xlu0 %v316
        %v318 = vpop.xlane.xlu0 %317
        %v319 = vrcp.pop 32.0
        %v320 = vmul.f32 %v318, %v319
        %v321 = vsub.f32 %v312, %v320
        %v322 = vmul.f32 %v321, %v321
        %v323 = vsel %vm315, %v322, 0.0
        %324 = vadd.xlane.f32.xlu0 %v323
        %v325 = vpop.xlane.xlu0 %324
        %v326 = vmul.f32 %v325, %v319
        %v327 = vadd.f32 %v326, 1e-05
        %v328 = vrsqrt.pop %v327
        %v329 = vmul.f32 %v321, %v328
        %v331 = vlaneseq
        %v332 = vshrl.u32 %v331, 7
        %v333 = vsub.s32 0, %v332
        %v334 = vrot.slane %v313, %v333
        %v336 = vmul.f32 %v329, %v334
        %v338 = vlaneseq
        %v339 = vshrl.u32 %v338, 7
        %v340 = vsub.s32 0, %v339
        %v341 = vrot.slane %v314, %v340
        %v343 = vadd.f32 %v336, %v341
        %v344 = vpack.c.bf16 %v343, %v343
        %v345 = vld [vmem:[%s3] sm:$0xf]
        %v346 = vld [vmem:[%s3 + $0x4] sm:$0xf]
        %v347 = vld [vmem:[%s3 + $0x8] sm:$0xf]
        %v348 = vld [vmem:[%s3 + $0xc] sm:$0xf]
        %v349 = vld [vmem:[%s4] sm:$0x1]
        %v351 = vlaneseq
        %v352 = vshrl.u32 %v351, 7
        %v353 = vsub.s32 0, %v352
        %v354 = vrot.slane %v349, %v353
        %v360 = vunpack.c.l.b16 %v345
        %v361 = vunpack.c.l.b16 %v346
        %v362 = vunpack.c.l.b16 %v347
        %v363 = vunpack.c.l.b16 %v348
        %v364 = vpack.c.b16 %v361, %v360
        %v365 = vpack.c.b16 %v363, %v362
        %v369 = vsel %vm315, %v344, 0
        %371 = vmatprep.subr.bf16.mxu0 0
        %372 = vmatpush1.bf16.msra.mxu0 %v364
        %373 = vmatprep.subr.bf16.mxu0 0
        %374 = vmatpush1.bf16.msra.mxu0 %v365
        %375 = vmatprep.subr.bf16.mxu0 0
        %376 = vmatpush1.bf16.msra.mxu0 0
        %377 = vmatprep.subr.bf16.mxu0 0
        %378 = vmatpush1.bf16.msra.mxu0 0
        %379 = vmatprep.subr.bf16.mxu0 0
        %380 = vmatpush1.bf16.msra.mxu0 0
        %381 = vmatprep.subr.bf16.mxu0 0
        %382 = vmatpush1.bf16.msra.mxu0 0
        %383 = vmatprep.subr.bf16.mxu0 0
        %384 = vmatpush1.bf16.msra.mxu0 0
        %385 = vmatprep.subr.bf16.mxu0 0
        %386 = vmatpush1.bf16.msra.mxu0 0
        %387 = vmatprep.subr.bf16.mxu0 0
        %388 = vmatpush1.bf16.msra.mxu0 0
        %389 = vmatprep.subr.bf16.mxu0 0
        %390 = vmatpush1.bf16.msra.mxu0 0
        %391 = vmatprep.subr.bf16.mxu0 0
        %392 = vmatpush1.bf16.msra.mxu0 0
        %393 = vmatprep.subr.bf16.mxu0 0
        %394 = vmatpush1.bf16.msra.mxu0 0
        %395 = vmatprep.subr.bf16.mxu0 0
        %396 = vmatpush1.bf16.msra.mxu0 0
        %397 = vmatprep.subr.bf16.mxu0 0
        %398 = vmatpush1.bf16.msra.mxu0 0
        %399 = vmatprep.subr.bf16.mxu0 0
        %400 = vmatpush1.bf16.msra.mxu0 0
        %401 = vmatprep.subr.bf16.mxu0 0
        %402 = vmatpush1.bf16.msra.mxu0 0
        %403 = vmatprep.mubr.bf16.mxu0 0
        %404 = vmatmul.mubr.bf16.gmra.mrb[0].mxu0 %v369
        %v405 = vpop.f32.mrb[0].mxu0
        %v406 = vadd.f32 %v354, %v405
        %v407 = vpop.f32.mrb[0].mxu0
        %v408 = vpop.f32.mrb[0].mxu0
        %v409 = vpop.f32.mrb[0].mxu0
        %410 = vdwg.mxu0
        %v411 = vmax.f32 %v406, 0.0
        %v412 = vpack.c.bf16 %v411, %v411
        %v413 = vld [vmem:[%s5] sm:$0xf]
        %v414 = vld [vmem:[%s5 + $0x4] sm:$0xf]
        %v415 = vld [vmem:[%s5 + $0x8] sm:$0xf]
        %v416 = vld [vmem:[%s5 + $0xc] sm:$0xf]
        %v417 = vld [vmem:[%s5 + $0x10] sm:$0xf]
        %v418 = vld [vmem:[%s5 + $0x14] sm:$0xf]
        %v419 = vld [vmem:[%s5 + $0x18] sm:$0xf]
        %v420 = vld [vmem:[%s5 + $0x1c] sm:$0xf]
        %v421 = vld [vmem:[%s6] sm:$0x1]
        %v423 = vlaneseq
        %v424 = vshrl.u32 %v423, 7
        %v425 = vsub.s32 0, %v424
        %v426 = vrot.slane %v421, %v425
        %v436 = vunpack.c.l.b16 %v413
        %v437 = vunpack.c.l.b16 %v414
        %v438 = vunpack.c.l.b16 %v415
        %v439 = vunpack.c.l.b16 %v416
        %v440 = vunpack.c.l.b16 %v417
        %v441 = vunpack.c.l.b16 %v418
        %v442 = vunpack.c.l.b16 %v419
        %v443 = vunpack.c.l.b16 %v420
        %v444 = vpack.c.b16 %v437, %v436
        %v445 = vpack.c.b16 %v439, %v438
        %v446 = vpack.c.b16 %v441, %v440
        %v447 = vpack.c.b16 %v443, %v442
        %vm452 = vcmask 523264
        %v454 = vsel %vm452, %v412, 0
        %456 = vmatprep.subr.bf16.mxu0 0
        %457 = vmatpush1.bf16.msra.mxu0 %v444
        %458 = vmatprep.subr.bf16.mxu0 0
        %459 = vmatpush1.bf16.msra.mxu0 %v445
        %460 = vmatprep.subr.bf16.mxu0 0
        %461 = vmatpush1.bf16.msra.mxu0 %v446
        %462 = vmatprep.subr.bf16.mxu0 0
        %463 = vmatpush1.bf16.msra.mxu0 %v447
        %464 = vmatprep.subr.bf16.mxu0 0
        %465 = vmatpush1.bf16.msra.mxu0 0
        %466 = vmatprep.subr.bf16.mxu0 0
        %467 = vmatpush1.bf16.msra.mxu0 0
        %468 = vmatprep.subr.bf16.mxu0 0
        %469 = vmatpush1.bf16.msra.mxu0 0
        %470 = vmatprep.subr.bf16.mxu0 0
        %471 = vmatpush1.bf16.msra.mxu0 0
        %472 = vmatprep.subr.bf16.mxu0 0
        %473 = vmatpush1.bf16.msra.mxu0 0
        %474 = vmatprep.subr.bf16.mxu0 0
        %475 = vmatpush1.bf16.msra.mxu0 0
        %476 = vmatprep.subr.bf16.mxu0 0
        %477 = vmatpush1.bf16.msra.mxu0 0
        %478 = vmatprep.subr.bf16.mxu0 0
        %479 = vmatpush1.bf16.msra.mxu0 0
        %480 = vmatprep.subr.bf16.mxu0 0
        %481 = vmatpush1.bf16.msra.mxu0 0
        %482 = vmatprep.subr.bf16.mxu0 0
        %483 = vmatpush1.bf16.msra.mxu0 0
        %484 = vmatprep.subr.bf16.mxu0 0
        %485 = vmatpush1.bf16.msra.mxu0 0
        %486 = vmatprep.subr.bf16.mxu0 0
        %487 = vmatpush1.bf16.msra.mxu0 0
        %488 = vmatprep.mubr.bf16.mxu0 0
        %489 = vmatmul.mubr.bf16.gmra.mrb[0].mxu0 %v454
        %v490 = vpop.f32.mrb[0].mxu0
        %v491 = vadd.f32 %v426, %v490
        %v492 = vpop.f32.mrb[0].mxu0
        %v493 = vpop.f32.mrb[0].mxu0
        %v494 = vpop.f32.mrb[0].mxu0
        %495 = vdwg.mxu0
        %v496 = vadd.f32 %v312, %v491
        %497 = vst.msk [vmem:[%s310] sm:$0xff] %vm315, %v496
        %s498 = sand.u32 %s200, 1
        %s499 = scalar_lea.sflag [#allocation4], %s498
        %s500 = sand.u32 %s200, 1
        %s501 = smul.addr %s500, 8
        %s502 = scalar_lea.vmem [#allocation5], %s501
        // Predicated region
        $region53: #{decoder_forward.13} parent=47 // pred_check
          %p503 = pneg %p210
        $region54: #{decoder_forward.13} parent=47 // pred_check_branch
          %505 = sbr.rel (%p503) target = $region56
        $region55: #{decoder_forward.13} parent=47 // pred_region
          %s507 = ssub.s32 128, 128
          %508 = vsyncadd %s499, %s507
          %s509 = sadd.s32 %s29, %s28
          %s510 = smul.addr %s509, 128
          %s511 = scalar_lea.hbm %s7, %s510
          %s513 = sshll.u32 %s502, 4
          %s514 = int_to_ptr.vmem [resolvable:$true] %s513
          %516 = dma.vmem_to_hbm [thread:$0]  %s514, 128, %s511, %s499
        $region56: #{decoder_forward.13} parent=47 // pred_fallthru
          _
      $region48: #{decoder_forward.13} parent=5 // pred_fallthru
        _
      %p517 = scmp.le.s32.totalorder 2, %s19
      // Predicated region
      $region57: #{decoder_forward.13} parent=5 // pred_check
        %p518 = pneg %p517
      $region58: #{decoder_forward.13} parent=5 // pred_check_branch
        %520 = sbr.rel (%p518) target = $region60
      $region59: #{decoder_forward.13} parent=5 // pred_region
        %s521 = ssub.s32 %s19, 2
        // Predicated region
        $region61: #{decoder_forward.13} parent=59 // pred_check
          %p522 = pneg %p216
        $region62: #{decoder_forward.13} parent=59 // pred_check_branch
          %524 = sbr.rel (%p522) target = $region64
        $region63: #{decoder_forward.13} parent=59 // pred_region
          %s525 = sand.u32 %s201, 1
          %s526 = scalar_lea.sflag [#allocation4], %s525
          %s527 = sand.u32 %s201, 1
          %s528 = smul.addr %s527, 8
          %s529 = scalar_lea.vmem [#allocation5], %s528
          %530 = dma.done %s526, 128
        $region64: #{decoder_forward.13} parent=59 // pred_fallthru
          _
      $region60: #{decoder_forward.13} parent=5 // pred_fallthru
        _
    $region6: #{decoder_forward.13} parent=1 // loop_footer
      %s23 = sadd.s32 1, %s19
    $region7: #{decoder_forward.13} parent=1 // loop_footer_branch
      %18 = sbr.rel target = $region3
    $region8: #{decoder_forward.13} parent=1 // loop_exit
      _
    %531 = vsyncpa [#allocation3], 1
    %s532 = scalar_lea.sflag [#allocation3], 1
    %533 = vsyncpa %s532, 1
    %534 = vsyncpa [#allocation4], 1
    %s535 = scalar_lea.sflag [#allocation4], 1
    %536 = vsyncpa %s535, 1

</llo_original>
